<compile_context>
chip_gen: v5e
topology: v5e:2x2
jax: 0.10.0
libtpu: 0.0.40
codegen_flags: <defaults>
</compile_context>

<pallas_src>
import math

import jax
import jax.numpy as jnp
from jax.experimental import pallas as pl
from jax.experimental.pallas import tpu as pltpu

# ----------------------------- problem sizes --------------------------------
B = 8                 # batch size
S = 8                 # context sequence length
N_ENT = 256           # num_entities (small synthetic KG)
D_LM = 1024           # T5 hidden size (fixed by nn.Linear(1024, 128))
D_KG = 128            # KG / projected embedding size
VOCAB = 512           # synthetic LM vocab
ENT_LIST_LEN = 3      # length of `ent_list` (list of [B] tensors in torch)
SENTINEL = N_ENT - 1  # stands in for the "no entity" id 24635 in the torch code
TOPK = 50

_INV_SQRT_DK = 1.0 / math.sqrt(D_KG)
_NEG_BIG = -1e30      # finite stand-in for -inf in the eval mask (safer for top_k)


# --------------------------- fused kernel bodies ------------------------------
def _compute_logits(ctx_sel, kg_sel, tok, wctx, ent, plot=None, wplot=None):
    """Shared fused forward (runs entirely in VMEM).

    ctx_sel : [B, VOCAB] f32   row-stochastic token counts / S
    kg_sel  : [B, N_ENT] f32   per-user entity-mean weights (with sentinel fallback)
    tok     : [VOCAB, D_LM] bf16   synthetic T5 token table
    wctx    : [D_LM, D_KG]  bf16   nnlayer_for_context.weight.T
    ent     : [N_ENT, D_KG] bf16   KG entity embeddings
    plot    : [N_ENT, D_LM] bf16   item plot embeddings (optional)
    wplot   : [D_LM, D_KG]  bf16   nnlayer_for_plot.weight.T (optional)
    """
    f32, bf16 = jnp.float32, jnp.bfloat16

    # encoded_context_embs = mean over sequence of token embeddings,
    # expressed as (token-count / S) @ tok_table.
    enc_ctx = jnp.dot(ctx_sel.astype(bf16), tok, preferred_element_type=f32)      # [B, D_LM]

    # nnlayer_for_context (bias-free).  q doubles as user_embs_for_lm (dedup:
    # same layer, same input in the reference -> bit-identical).
    q = jnp.dot(enc_ctx.astype(bf16), wctx, preferred_element_type=f32)           # [B, D_KG]

    # per-user KG embedding = weighted mean of entity embeddings.
    user_kg = jnp.dot(kg_sel, ent.astype(f32), preferred_element_type=f32)        # [B, D_KG]

    # cross attention: query = projected context, key = value = user_kg.
    scores = jax.lax.dot_general(
        q, user_kg, (((1,), (1,)), ((), ())),
        preferred_element_type=f32) * _INV_SQRT_DK                                # [B, B]
    m = jnp.max(scores, axis=-1, keepdims=True)
    e = jnp.exp(scores - m)
    attn_w = e / jnp.sum(e, axis=-1, keepdims=True)
    attn = jnp.dot(attn_w, user_kg, preferred_element_type=f32)                   # [B, D_KG]

    # logits against the KG half of ent_item_plot_embs.
    logits = jax.lax.dot_general(
        attn.astype(bf16), ent, (((1,), (1,)), ((), ())),
        preferred_element_type=f32)                                               # [B, N_ENT]

    if plot is not None:
        # nnlayer_for_plot projection + the user_lm half of the concat logits:
        #   [attn | q] @ [ent | plot_proj].T == attn @ ent.T + q @ plot_proj.T
        plot_proj = jnp.dot(plot, wplot, preferred_element_type=f32)              # [N, D_KG]
        logits = logits + jax.lax.dot_general(
            q.astype(bf16), plot_proj.astype(bf16), (((1,), (1,)), ((), ())),
            preferred_element_type=f32)
    return logits


def _soft_ce(logits, labels):
    # F.cross_entropy(logits, soft_labels, reduction='mean')
    m = jnp.max(logits, axis=-1, keepdims=True)
    lse = m + jnp.log(jnp.sum(jnp.exp(logits - m), axis=-1, keepdims=True))
    per_row = -jnp.sum(labels * (logits - lse), axis=-1, keepdims=True)   # [B, 1]
    return jnp.mean(per_row, axis=0, keepdims=True)                       # [1, 1]


def _rec_train_kernel(ctx_sel_ref, kg_sel_ref, tok_ref, wctx_ref, ent_ref,
                      plot_ref, wplot_ref, labels_ref, loss_ref):
    logits = _compute_logits(ctx_sel_ref[...], kg_sel_ref[...], tok_ref[...],
                             wctx_ref[...], ent_ref[...],
                             plot_ref[...], wplot_ref[...])
    loss_ref[...] = _soft_ce(logits, labels_ref[...])


def _pref_train_kernel(ctx_sel_ref, kg_sel_ref, tok_ref, wctx_ref, ent_ref,
                       labels_ref, loss_ref):
    logits = _compute_logits(ctx_sel_ref[...], kg_sel_ref[...], tok_ref[...],
                             wctx_ref[...], ent_ref[...])
    loss_ref[...] = _soft_ce(logits, labels_ref[...])


def _rec_eval_kernel(ctx_sel_ref, kg_sel_ref, tok_ref, wctx_ref, ent_ref,
                     plot_ref, wplot_ref, mask_ref, logits_ref):
    logits = _compute_logits(ctx_sel_ref[...], kg_sel_ref[...], tok_ref[...],
                             wctx_ref[...], ent_ref[...],
                             plot_ref[...], wplot_ref[...])
    # masked_fill(~item_mask, -inf) -> large finite negative (same top-k ranks).
    logits_ref[...] = jnp.where(mask_ref[...] > 0.0, logits, _NEG_BIG)


# ----------------------------- pallas_call glue --------------------------------
def _full_block(shape):
    zeros = (0,) * len(shape)
    return pl.BlockSpec(shape, lambda i: zeros)


def _run_fused(kernel, out_shape, *arrays):
    return pl.pallas_call(
        kernel,
        grid=(1,),
        in_specs=[_full_block(a.shape) for a in arrays],
        out_specs=_full_block(out_shape.shape),
        out_shape=out_shape,
        compiler_params=pltpu.CompilerParams(
            dimension_semantics=("arbitrary",),
            vmem_limit_bytes=32 * 1024 * 1024,   # ~2.5 MiB resident; safe on v5e/v6e/v7x
        ),
    )(*arrays)


# ------------------------ JAX-side index -> weight prep ------------------------
def _context_selection(context_ids):
    """[B, VOCAB] row weights s.t. sel @ tok_table == gather(tok_table)[.,S,.].mean(1)."""
    oh = jax.nn.one_hot(context_ids, VOCAB, dtype=jnp.float32)   # [B, S, V]
    return jnp.mean(oh, axis=1)                                  # [B, V]


def _kg_selection(ent_list):
    """[B, N_ENT] weights reproducing generate_user_emb_for_preferred_attr's loop:
    mean of entity embeddings up to the first SENTINEL; if the first entry is the
    sentinel, fall back to ent_embs[SENTINEL]."""
    is_sent = ent_list == SENTINEL                                 # [L, B]
    seen = jnp.cumsum(is_sent.astype(jnp.int32), axis=0) > 0      # at/after first sentinel
    valid = (~seen).astype(jnp.float32)                            # [L, B]
    counts = jnp.sum(valid, axis=0)                                # [B]
    oh = jax.nn.one_hot(ent_list, N_ENT, dtype=jnp.float32)        # [L, B, N]
    weights = jnp.sum(oh * valid[..., None], axis=0)               # [B, N]
    weights = weights / jnp.maximum(counts, 1.0)[:, None]
    fallback = jax.nn.one_hot(
        jnp.full((ent_list.shape[1],), SENTINEL, dtype=jnp.int32),
        N_ENT, dtype=jnp.float32)
    return jnp.where(counts[:, None] > 0, weights, fallback)


# --------------------------------- modes ---------------------------------------
def training_recommendation(params, ent_list, rec_label, context_ids):
    labels = jax.nn.one_hot(rec_label, N_ENT, dtype=jnp.float32)   # generate_rec_label
    ctx_sel = _context_selection(context_ids)
    kg_sel = _kg_selection(ent_list)
    loss = _run_fused(
        _rec_train_kernel,
        jax.ShapeDtypeStruct((1, 1), jnp.float32),
        ctx_sel, kg_sel,
        params["ctx_tok_table"], params["w_context_t"], params["ent_embs"],
        params["item_plot_embeddings"], params["w_plot_t"],
        labels)
    return loss[0, 0]


def training_preferred_attrs(params, ent_list, preferred_attr, context_ids):
    labels = jax.nn.one_hot(preferred_attr, N_ENT, dtype=jnp.float32)
    # (the torch code passes the (user_embs, ctx) tuple into the matmul — a bug;
    #  we use the intended user_embs tensor, i.e. the cross-attention output.)
    ctx_sel = _context_selection(context_ids)
    kg_sel = _kg_selection(ent_list)
    loss = _run_fused(
        _pref_train_kernel,
        jax.ShapeDtypeStruct((1, 1), jnp.float32),
        ctx_sel, kg_sel,
        params["ctx_tok_table"], params["w_context_t"], params["ent_embs"],
        labels)
    return loss[0, 0]


def eval_recommendation(params, ent_list, rec_label, context_ids, item_mask):
    ctx_sel = _context_selection(context_ids)
    kg_sel = _kg_selection(ent_list)
    mask_f = item_mask.astype(jnp.float32)[None, :]                # [1, N_ENT]
    masked_logits = _run_fused(
        _rec_eval_kernel,
        jax.ShapeDtypeStruct((ctx_sel.shape[0], N_ENT), jnp.float32),
        ctx_sel, kg_sel,
        params["ctx_tok_table"], params["w_context_t"], params["ent_embs"],
        params["item_plot_embeddings"], params["w_plot_t"],
        mask_f)
    _, ranks = jax.lax.top_k(masked_logits, TOPK)
    return ranks, rec_label


def forward(params, ent_list, rec_label, context_ids, preferred_attr, rec_items,
            item_mask, mode):
    if mode == "training_preferred_attrs":
        return training_preferred_attrs(params, ent_list, preferred_attr, context_ids)
    elif mode == "training_recommendation":
        return training_recommendation(params, ent_list, rec_label, context_ids)
    elif mode in ("eval_recommendation", "eval_recommendation_multiple_rec"):
        return eval_recommendation(params, ent_list, rec_label, context_ids, item_mask)
    # TODO(synk): 'training_recommendation_multiple_rec' (MultiLabelSoftMarginLoss)
    # not implemented.
    return 0


# --------------------------------- main ---------------------------------------
if __name__ == "__main__":
    key = jax.random.PRNGKey(0)
    ks = jax.random.split(key, 8)
    params = {
        # TODO(synk): KGencoder (R-GCN over edge_index/edge_type) replaced by a
        # synthetic learned entity-embedding table.
        "ent_embs": (0.02 * jax.random.normal(ks[0], (N_ENT, D_KG))).astype(jnp.bfloat16),
        # nn.Linear(1024,128,bias=False) weights, stored pre-transposed [in, out].
        "w_plot_t": ((1.0 / math.sqrt(D_LM)) *
                     jax.random.normal(ks[1], (D_LM, D_KG))).astype(jnp.bfloat16),
        "w_context_t": ((1.0 / math.sqrt(D_LM)) *
                        jax.random.normal(ks[2], (D_LM, D_KG))).astype(jnp.bfloat16),
        "item_plot_embeddings": (0.02 *
                                 jax.random.normal(ks[3], (N_ENT, D_LM))).astype(jnp.bfloat16),
        # TODO(synk): frozen T5 encoder replaced by a synthetic token-embedding
        # table; the seq-mean matches `output.last_hidden_state.mean(dim=1)`.
        "ctx_tok_table": (0.02 *
                          jax.random.normal(ks[4], (VOCAB, D_LM))).astype(jnp.bfloat16),
    }
    ent_list = jax.random.randint(ks[5], (ENT_LIST_LEN, B), 0, N_ENT, jnp.int32)
    rec_label = jax.random.randint(ks[6], (B,), 0, N_ENT, jnp.int32)
    preferred_attr = jax.random.randint(ks[7], (B,), 0, N_ENT, jnp.int32)
    context_ids = jax.random.randint(jax.random.fold_in(key, 99), (B, S), 0, VOCAB,
                                     jnp.int32)
    # synthetic "item_ids.json": second half of the entity ids are items
    item_mask = (jnp.arange(N_ENT) >= N_ENT // 2)
    rec_items = None

    fwd = jax.jit(forward, static_argnames=("mode",))

    loss = fwd(params, ent_list, rec_label, context_ids, preferred_attr, rec_items,
               item_mask, mode="training_recommendation")
    jax.block_until_ready(loss)
    assert jnp.isfinite(loss)

    pref_loss = fwd(params, ent_list, rec_label, context_ids, preferred_attr, rec_items,
                    item_mask, mode="training_preferred_attrs")
    jax.block_until_ready(pref_loss)
    assert jnp.isfinite(pref_loss)

    ranks, _ = fwd(params, ent_list, rec_label, context_ids, preferred_attr, rec_items,
                   item_mask, mode="eval_recommendation")
    jax.block_until_ready(ranks)
    assert ranks.shape == (B, TOPK)
    # every returned rank must be an unmasked (item) id
    assert bool(jnp.all(ranks >= N_ENT // 2))

    print("KERNEL_OK")
</pallas_src>

<mosaic_0001>
module attributes {stable_mosaic.version = 11 : i64} {
  func.func @_rec_train_kernel(%arg0: i32, %arg1: memref<8x512xf32, #tpu.memory_space<vmem>>, %arg2: memref<8x256xf32, #tpu.memory_space<vmem>>, %arg3: memref<512x1024xbf16, #tpu.memory_space<vmem>>, %arg4: memref<1024x128xbf16, #tpu.memory_space<vmem>>, %arg5: memref<256x128xbf16, #tpu.memory_space<vmem>>, %arg6: memref<256x1024xbf16, #tpu.memory_space<vmem>>, %arg7: memref<1024x128xbf16, #tpu.memory_space<vmem>>, %arg8: memref<8x256xf32, #tpu.memory_space<vmem>>, %arg9: memref<1x1xf32, #tpu.memory_space<vmem>>) attributes {dimension_semantics = [#tpu.dimension_semantics<arbitrary>], iteration_bounds = array<i64: 1>, scalar_prefetch = 0 : i64, scratch_operands = 0 : i64, tpu.core_type = #tpu.core_type<tc>, window_params = [{pipeline_mode = #tpu.pipeline_mode<synchronous>, transform_indices = @transform_0, window_bounds = array<i64: 8, 512>}, {pipeline_mode = #tpu.pipeline_mode<synchronous>, transform_indices = @transform_1, window_bounds = array<i64: 8, 256>}, {pipeline_mode = #tpu.pipeline_mode<synchronous>, transform_indices = @transform_2, window_bounds = array<i64: 512, 1024>}, {pipeline_mode = #tpu.pipeline_mode<synchronous>, transform_indices = @transform_3, window_bounds = array<i64: 1024, 128>}, {pipeline_mode = #tpu.pipeline_mode<synchronous>, transform_indices = @transform_4, window_bounds = array<i64: 256, 128>}, {pipeline_mode = #tpu.pipeline_mode<synchronous>, transform_indices = @transform_5, window_bounds = array<i64: 256, 1024>}, {pipeline_mode = #tpu.pipeline_mode<synchronous>, transform_indices = @transform_6, window_bounds = array<i64: 1024, 128>}, {pipeline_mode = #tpu.pipeline_mode<synchronous>, transform_indices = @transform_7, window_bounds = array<i64: 8, 256>}, {pipeline_mode = #tpu.pipeline_mode<synchronous>, transform_indices = @transform_8, window_bounds = array<i64: 1, 1>}]} {
    %c0 = arith.constant 0 : index
    %c0_0 = arith.constant 0 : index
    %0 = vector.load %arg1[%c0, %c0_0] : memref<8x512xf32, #tpu.memory_space<vmem>>, vector<8x512xf32>
    %c0_1 = arith.constant 0 : index
    %c0_2 = arith.constant 0 : index
    %1 = vector.load %arg2[%c0_1, %c0_2] : memref<8x256xf32, #tpu.memory_space<vmem>>, vector<8x256xf32>
    %c0_3 = arith.constant 0 : index
    %c0_4 = arith.constant 0 : index
    %2 = vector.load %arg3[%c0_3, %c0_4] : memref<512x1024xbf16, #tpu.memory_space<vmem>>, vector<512x1024xbf16>
    %c0_5 = arith.constant 0 : index
    %c0_6 = arith.constant 0 : index
    %3 = vector.load %arg4[%c0_5, %c0_6] : memref<1024x128xbf16, #tpu.memory_space<vmem>>, vector<1024x128xbf16>
    %c0_7 = arith.constant 0 : index
    %c0_8 = arith.constant 0 : index
    %4 = vector.load %arg5[%c0_7, %c0_8] : memref<256x128xbf16, #tpu.memory_space<vmem>>, vector<256x128xbf16>
    %c0_9 = arith.constant 0 : index
    %c0_10 = arith.constant 0 : index
    %5 = vector.load %arg6[%c0_9, %c0_10] : memref<256x1024xbf16, #tpu.memory_space<vmem>>, vector<256x1024xbf16>
    %c0_11 = arith.constant 0 : index
    %c0_12 = arith.constant 0 : index
    %6 = vector.load %arg7[%c0_11, %c0_12] : memref<1024x128xbf16, #tpu.memory_space<vmem>>, vector<1024x128xbf16>
    %7 = arith.truncf %0 : vector<8x512xf32> to vector<8x512xbf16>
    %cst = arith.constant dense<0.000000e+00> : vector<8x1024xf32>
    %8 = tpu.matmul %7, %2, %cst {dimension_numbers = #tpu.dot_dimension_numbers<[1], [0], [0], [1], [0, 0, 1, 1], [], []>} : vector<8x512xbf16>, vector<512x1024xbf16>, vector<8x1024xf32> -> vector<8x1024xf32>
    %9 = arith.truncf %8 : vector<8x1024xf32> to vector<8x1024xbf16>
    %cst_13 = arith.constant dense<0.000000e+00> : vector<8x128xf32>
    %10 = tpu.matmul %9, %3, %cst_13 {dimension_numbers = #tpu.dot_dimension_numbers<[1], [0], [0], [1], [0, 0, 1, 1], [], []>} : vector<8x1024xbf16>, vector<1024x128xbf16>, vector<8x128xf32> -> vector<8x128xf32>
    %11 = arith.extf %4 : vector<256x128xbf16> to vector<256x128xf32>
    %cst_14 = arith.constant dense<0.000000e+00> : vector<8x128xf32>
    %12 = tpu.matmul %1, %11, %cst_14 {dimension_numbers = #tpu.dot_dimension_numbers<[1], [0], [0], [1], [0, 0, 1, 1], [], []>} : vector<8x256xf32>, vector<256x128xf32>, vector<8x128xf32> -> vector<8x128xf32>
    %cst_15 = arith.constant dense<0.000000e+00> : vector<8x8xf32>
    %13 = tpu.matmul %10, %12, %cst_15 {dimension_numbers = #tpu.dot_dimension_numbers<[1], [1], [0], [0], [0, 0, 1, 0], [], []>} : vector<8x128xf32>, vector<8x128xf32>, vector<8x8xf32> -> vector<8x8xf32>
    %cst_16 = arith.constant 0.0883883461 : f32
    %14 = vector.broadcast %cst_16 : f32 to vector<8x8xf32>
    %15 = arith.mulf %13, %14 : vector<8x8xf32>
    %cst_17 = arith.constant dense<0xFF800000> : vector<8xf32>
    %16 = vector.multi_reduction <maximumf>, %15, %cst_17 [1] : vector<8x8xf32> to vector<8xf32>
    %17 = vector.shape_cast %16 : vector<8xf32> to vector<8x1xf32>
    %18 = vector.broadcast %17 : vector<8x1xf32> to vector<8x8xf32>
    %19 = arith.subf %15, %18 : vector<8x8xf32>
    %20 = math.exp %19 : vector<8x8xf32>
    %cst_18 = arith.constant dense<0.000000e+00> : vector<8xf32>
    %21 = vector.multi_reduction <add>, %20, %cst_18 [1] : vector<8x8xf32> to vector<8xf32>
    %22 = vector.shape_cast %21 : vector<8xf32> to vector<8x1xf32>
    %23 = vector.broadcast %22 : vector<8x1xf32> to vector<8x8xf32>
    %24 = arith.divf %20, %23 : vector<8x8xf32>
    %cst_19 = arith.constant dense<0.000000e+00> : vector<8x128xf32>
    %25 = tpu.matmul %24, %12, %cst_19 {dimension_numbers = #tpu.dot_dimension_numbers<[1], [0], [0], [1], [0, 0, 1, 1], [], []>} : vector<8x8xf32>, vector<8x128xf32>, vector<8x128xf32> -> vector<8x128xf32>
    %26 = arith.truncf %25 : vector<8x128xf32> to vector<8x128xbf16>
    %cst_20 = arith.constant dense<0.000000e+00> : vector<8x256xf32>
    %27 = tpu.matmul %26, %4, %cst_20 {dimension_numbers = #tpu.dot_dimension_numbers<[1], [1], [0], [0], [0, 0, 1, 0], [], []>} : vector<8x128xbf16>, vector<256x128xbf16>, vector<8x256xf32> -> vector<8x256xf32>
    %cst_21 = arith.constant dense<0.000000e+00> : vector<256x128xf32>
    %28 = tpu.matmul %5, %6, %cst_21 {dimension_numbers = #tpu.dot_dimension_numbers<[1], [0], [0], [1], [0, 0, 1, 1], [], []>} : vector<256x1024xbf16>, vector<1024x128xbf16>, vector<256x128xf32> -> vector<256x128xf32>
    %29 = arith.truncf %10 : vector<8x128xf32> to vector<8x128xbf16>
    %30 = arith.truncf %28 : vector<256x128xf32> to vector<256x128xbf16>
    %cst_22 = arith.constant dense<0.000000e+00> : vector<8x256xf32>
    %31 = tpu.matmul %29, %30, %cst_22 {dimension_numbers = #tpu.dot_dimension_numbers<[1], [1], [0], [0], [0, 0, 1, 0], [], []>} : vector<8x128xbf16>, vector<256x128xbf16>, vector<8x256xf32> -> vector<8x256xf32>
    %32 = arith.addf %27, %31 : vector<8x256xf32>
    %c0_23 = arith.constant 0 : index
    %c0_24 = arith.constant 0 : index
    %33 = vector.load %arg8[%c0_23, %c0_24] : memref<8x256xf32, #tpu.memory_space<vmem>>, vector<8x256xf32>
    %cst_25 = arith.constant dense<0xFF800000> : vector<8xf32>
    %34 = vector.multi_reduction <maximumf>, %32, %cst_25 [1] : vector<8x256xf32> to vector<8xf32>
    %35 = vector.shape_cast %34 : vector<8xf32> to vector<8x1xf32>
    %36 = vector.broadcast %35 : vector<8x1xf32> to vector<8x256xf32>
    %37 = arith.subf %32, %36 : vector<8x256xf32>
    %38 = math.exp %37 : vector<8x256xf32>
    %cst_26 = arith.constant dense<0.000000e+00> : vector<8xf32>
    %39 = vector.multi_reduction <add>, %38, %cst_26 [1] : vector<8x256xf32> to vector<8xf32>
    %40 = vector.shape_cast %39 : vector<8xf32> to vector<8x1xf32>
    %41 = math.log %40 : vector<8x1xf32>
    %42 = arith.addf %35, %41 : vector<8x1xf32>
    %43 = vector.broadcast %42 : vector<8x1xf32> to vector<8x256xf32>
    %44 = arith.subf %32, %43 : vector<8x256xf32>
    %45 = arith.mulf %33, %44 : vector<8x256xf32>
    %cst_27 = arith.constant dense<0.000000e+00> : vector<8xf32>
    %46 = vector.multi_reduction <add>, %45, %cst_27 [1] : vector<8x256xf32> to vector<8xf32>
    %47 = vector.shape_cast %46 : vector<8xf32> to vector<8x1xf32>
    %cst_28 = arith.constant 0.000000e+00 : f32
    %48 = vector.broadcast %cst_28 : f32 to vector<8x1xf32>
    %49 = arith.subf %48, %47 : vector<8x1xf32>
    %cst_29 = arith.constant dense<0.000000e+00> : vector<1xf32>
    %50 = vector.multi_reduction <add>, %49, %cst_29 [0] : vector<8x1xf32> to vector<1xf32>
    %51 = vector.shape_cast %50 : vector<1xf32> to vector<1x1xf32>
    %cst_30 = arith.constant 8.000000e+00 : f32
    %52 = vector.broadcast %cst_30 : f32 to vector<1x1xf32>
    %53 = arith.divf %51, %52 : vector<1x1xf32>
    %c0_31 = arith.constant 0 : index
    %c0_32 = arith.constant 0 : index
    %54 = vector.load %arg9[%c0_31, %c0_32] : memref<1x1xf32, #tpu.memory_space<vmem>>, vector<1x1xf32>
    tpu.vector_store %arg9[%c0_31, %c0_32], %53 {strides = array<i32>} : memref<1x1xf32, #tpu.memory_space<vmem>>, vector<1x1xf32>,
    return
  }
  func.func @transform_0(%arg0: i32) -> (i32, i32) {
    %c0_i32 = arith.constant 0 : i32
    %c0_i32_0 = arith.constant 0 : i32
    %c0_i32_1 = arith.constant 0 : i32
    return %c0_i32, %c0_i32_0 : i32, i32
  }
  func.func @transform_1(%arg0: i32) -> (i32, i32) {
    %c0_i32 = arith.constant 0 : i32
    %c0_i32_0 = arith.constant 0 : i32
    %c0_i32_1 = arith.constant 0 : i32
    return %c0_i32, %c0_i32_0 : i32, i32
  }
  func.func @transform_2(%arg0: i32) -> (i32, i32) {
    %c0_i32 = arith.constant 0 : i32
    %c0_i32_0 = arith.constant 0 : i32
    %c0_i32_1 = arith.constant 0 : i32
    return %c0_i32, %c0_i32_0 : i32, i32
  }
  func.func @transform_3(%arg0: i32) -> (i32, i32) {
    %c0_i32 = arith.constant 0 : i32
    %c0_i32_0 = arith.constant 0 : i32
    %c0_i32_1 = arith.constant 0 : i32
    return %c0_i32, %c0_i32_0 : i32, i32
  }
  func.func @transform_4(%arg0: i32) -> (i32, i32) {
    %c0_i32 = arith.constant 0 : i32
    %c0_i32_0 = arith.constant 0 : i32
    %c0_i32_1 = arith.constant 0 : i32
    return %c0_i32, %c0_i32_0 : i32, i32
  }
  func.func @transform_5(%arg0: i32) -> (i32, i32) {
    %c0_i32 = arith.constant 0 : i32
    %c0_i32_0 = arith.constant 0 : i32
    %c0_i32_1 = arith.constant 0 : i32
    return %c0_i32, %c0_i32_0 : i32, i32
  }
  func.func @transform_6(%arg0: i32) -> (i32, i32) {
    %c0_i32 = arith.constant 0 : i32
    %c0_i32_0 = arith.constant 0 : i32
    %c0_i32_1 = arith.constant 0 : i32
    return %c0_i32, %c0_i32_0 : i32, i32
  }
  func.func @transform_7(%arg0: i32) -> (i32, i32) {
    %c0_i32 = arith.constant 0 : i32
    %c0_i32_0 = arith.constant 0 : i32
    %c0_i32_1 = arith.constant 0 : i32
    return %c0_i32, %c0_i32_0 : i32, i32
  }
  func.func @transform_8(%arg0: i32) -> (i32, i32) {
    %c0_i32 = arith.constant 0 : i32
    %c0_i32_0 = arith.constant 0 : i32
    %c0_i32_1 = arith.constant 0 : i32
    return %c0_i32, %c0_i32_0 : i32, i32
  }
}

</mosaic_0001>

<llo_original>
// kernel: forward.1
$region0: #{forward.1}
  #allocation0 [shape = 'u32[]', space=smem, size = 0x4, offset = 0x4, fixed_abs, tag = 'smem constant byte address 0x4 - core index']
  #allocation1 [shape = 'u32[72,128]{1,0:T(1,128)}', space=vmem, size = 0x9000, scoped, tag = 'internal scratch']
  %s0 = inlined_call_operand.vmem [shape: f32[8,512], index: 0, kind: input, shape index: {}]
  %s1 = inlined_call_operand.vmem [shape: f32[8,256], index: 1, kind: input, shape index: {}]
  %s2 = inlined_call_operand.hbm [shape: bf16[512,1024], index: 2, kind: input, shape index: {}]
  %s3 = inlined_call_operand.hbm [shape: bf16[1024,128], index: 3, kind: input, shape index: {}]
  %s4 = inlined_call_operand.hbm [shape: bf16[256,128], index: 4, kind: input, shape index: {}]
  %s5 = inlined_call_operand.hbm [shape: bf16[256,1024], index: 5, kind: input, shape index: {}]
  %s6 = inlined_call_operand.hbm [shape: bf16[1024,128], index: 6, kind: input, shape index: {}]
  %s7 = inlined_call_operand.vmem [shape: f32[8,256], index: 7, kind: input, shape index: {}]
  %s8 = inlined_call_operand.hbm [shape: f32[1,1], index: 8, kind: output, shape index: {}]
  %s9 = sld [smem:[#allocation0]]
  $region62: #{forward.1} parent=0
    _
  %s11 = ssub.s32 1, %s9
  %s12 = scalar_select 0, %s11, %s9
  $region1: #{forward.1} parent=0
    #allocation2 [shape = 'u8[1048576]{0}', space=vmem, size = 0x100000, scoped, tag = 'input window, operand 2, single buffered']
    #allocation3 [shape = 's32[1]{0}', space=sflag, size = 0x4, scoped, tag = 'scoped memory for forward.1']
    #allocation4 [shape = 's32[1]{0}', space=sflag, size = 0x4, scoped, tag = 'scoped memory for forward.1']
    #allocation5 [shape = 'u8[262144]{0}', space=vmem, size = 0x40000, scoped, tag = 'input window, operand 3, single buffered']
    #allocation6 [shape = 's32[1]{0}', space=sflag, size = 0x4, scoped, tag = 'scoped memory for forward.1']
    #allocation7 [shape = 'u8[65536]{0}', space=vmem, size = 0x10000, scoped, tag = 'input window, operand 4, single buffered']
    #allocation8 [shape = 'u8[524288]{0}', space=vmem, size = 0x80000, scoped, tag = 'input window, operand 5, single buffered']
    #allocation9 [shape = 's32[1]{0}', space=sflag, size = 0x4, scoped, tag = 'scoped memory for forward.1']
    #allocation10 [shape = 'u8[262144]{0}', space=vmem, size = 0x40000, scoped, tag = 'input window, operand 6, single buffered']
    #allocation11 [shape = 'u8[512]{0}', space=vmem, size = 0x400, scoped, tag = 'output window, operand 0, single buffered']
    %13 = vsyncpa [#allocation3], 0
    %14 = vsyncpa [#allocation6], 0
    %15 = vsyncpa [#allocation9], 0
    %16 = vsyncpa [#allocation4], 0
    // Predicated region
    $region2: #{forward.1} parent=1 // pred_check
      _
    $region3: #{forward.1} parent=1 // pred_check_branch
      %18 = sbr.rel (0) target = $region5
    $region4: #{forward.1} parent=1 // pred_region
      _
    $region5: #{forward.1} parent=1 // pred_fallthru
      _
    // Predicated region
    $region6: #{forward.1} parent=1 // pred_check
      _
    $region7: #{forward.1} parent=1 // pred_check_branch
      %20 = sbr.rel (0) target = $region9
    $region8: #{forward.1} parent=1 // pred_region
      _
    $region9: #{forward.1} parent=1 // pred_fallthru
      _
    // Predicated region
    $region10: #{forward.1} parent=1 // pred_check
      _
    $region11: #{forward.1} parent=1 // pred_check_branch
      %22 = sbr.rel (0) target = $region13
    $region12: #{forward.1} parent=1 // pred_region
      %24 = vsyncadd [#allocation3], 0
      %s25 = sshll.u32 %s2, 4
      %s26 = int_to_ptr.hbm [resolvable:$true] %s25
      %s27 = sshll.u32 [#allocation2], 4
      %s28 = int_to_ptr.vmem [resolvable:$true] %s27
      %33 = dma.hbm_to_vmem [thread:$0]  %s26, 32768, %s28, [#allocation3], 512, 512, 32
    $region13: #{forward.1} parent=1 // pred_fallthru
      _
    // Predicated region
    $region14: #{forward.1} parent=1 // pred_check
      _
    $region15: #{forward.1} parent=1 // pred_check_branch
      %35 = sbr.rel (0) target = $region17
    $region16: #{forward.1} parent=1 // pred_region
      %37 = vsyncadd [#allocation6], 0
      %s38 = sshll.u32 %s3, 4
      %s39 = int_to_ptr.hbm [resolvable:$true] %s38
      %s40 = sshll.u32 [#allocation5], 4
      %s41 = int_to_ptr.vmem [resolvable:$true] %s40
      %46 = dma.hbm_to_vmem [thread:$0]  %s39, 8192, %s41, [#allocation6], 64, 64, 4
    $region17: #{forward.1} parent=1 // pred_fallthru
      _
    // Predicated region
    $region18: #{forward.1} parent=1 // pred_check
      _
    $region19: #{forward.1} parent=1 // pred_check_branch
      %48 = sbr.rel (0) target = $region21
    $region20: #{forward.1} parent=1 // pred_region
      %50 = vsyncadd [#allocation6], 0
      %s51 = sshll.u32 %s4, 4
      %s52 = int_to_ptr.hbm [resolvable:$true] %s51
      %s53 = sshll.u32 [#allocation7], 4
      %s54 = int_to_ptr.vmem [resolvable:$true] %s53
      %59 = dma.hbm_to_vmem [thread:$0]  %s52, 2048, %s54, [#allocation6], 64, 64, 4
    $region21: #{forward.1} parent=1 // pred_fallthru
      _
    // Predicated region
    $region22: #{forward.1} parent=1 // pred_check
      _
    $region23: #{forward.1} parent=1 // pred_check_branch
      %61 = sbr.rel (0) target = $region25
    $region24: #{forward.1} parent=1 // pred_region
      %63 = vsyncadd [#allocation9], 0
      %s64 = sshll.u32 %s5, 4
      %s65 = int_to_ptr.hbm [resolvable:$true] %s64
      %s66 = sshll.u32 [#allocation8], 4
      %s67 = int_to_ptr.vmem [resolvable:$true] %s66
      %72 = dma.hbm_to_vmem [thread:$0]  %s65, 16384, %s67, [#allocation9], 512, 512, 32
    $region25: #{forward.1} parent=1 // pred_fallthru
      _
    // Predicated region
    $region26: #{forward.1} parent=1 // pred_check
      _
    $region27: #{forward.1} parent=1 // pred_check_branch
      %74 = sbr.rel (0) target = $region29
    $region28: #{forward.1} parent=1 // pred_region
      %76 = vsyncadd [#allocation9], 0
      %s77 = sshll.u32 %s6, 4
      %s78 = int_to_ptr.hbm [resolvable:$true] %s77
      %s79 = sshll.u32 [#allocation10], 4
      %s80 = int_to_ptr.vmem [resolvable:$true] %s79
      %85 = dma.hbm_to_vmem [thread:$0]  %s78, 8192, %s80, [#allocation9], 64, 64, 4
    $region29: #{forward.1} parent=1 // pred_fallthru
      _
    // Predicated region
    $region30: #{forward.1} parent=1 // pred_check
      _
    $region31: #{forward.1} parent=1 // pred_check_branch
      %87 = sbr.rel (0) target = $region33
    $region32: #{forward.1} parent=1 // pred_region
      _
    $region33: #{forward.1} parent=1 // pred_fallthru
      _
    // Predicated region
    $region34: #{forward.1} parent=1 // pred_check
      _
    $region35: #{forward.1} parent=1 // pred_check_branch
      %89 = sbr.rel (0) target = $region37
    $region36: #{forward.1} parent=1 // pred_region
      %91 = dma.done [#allocation3], 32768
    $region37: #{forward.1} parent=1 // pred_fallthru
      _
    // Predicated region
    $region38: #{forward.1} parent=1 // pred_check
      _
    $region39: #{forward.1} parent=1 // pred_check_branch
      %93 = sbr.rel (0) target = $region41
    $region40: #{forward.1} parent=1 // pred_region
      %95 = dma.done [#allocation6], 8192
    $region41: #{forward.1} parent=1 // pred_fallthru
      _
    // Predicated region
    $region42: #{forward.1} parent=1 // pred_check
      _
    $region43: #{forward.1} parent=1 // pred_check_branch
      %97 = sbr.rel (0) target = $region45
    $region44: #{forward.1} parent=1 // pred_region
      %99 = dma.done [#allocation6], 2048
    $region45: #{forward.1} parent=1 // pred_fallthru
      _
    // Predicated region
    $region46: #{forward.1} parent=1 // pred_check
      _
    $region47: #{forward.1} parent=1 // pred_check_branch
      %101 = sbr.rel (0) target = $region49
    $region48: #{forward.1} parent=1 // pred_region
      %103 = dma.done [#allocation9], 16384
    $region49: #{forward.1} parent=1 // pred_fallthru
      _
    // Predicated region
    $region50: #{forward.1} parent=1 // pred_check
      _
    $region51: #{forward.1} parent=1 // pred_check_branch
      %105 = sbr.rel (0) target = $region53
    $region52: #{forward.1} parent=1 // pred_region
      %107 = dma.done [#allocation9], 8192
    $region53: #{forward.1} parent=1 // pred_fallthru
      _
    %v108 = vld [vmem:[%s0] sm:$0xff]
    %v109 = vld [vmem:[%s0 + $0x8] sm:$0xff]
    %v110 = vld [vmem:[%s0 + $0x10] sm:$0xff]
    %v111 = vld [vmem:[%s0 + $0x18] sm:$0xff]
    %v112 = vld [vmem:[%s1] sm:$0xff]
    %v113 = vld [vmem:[%s1 + $0x8] sm:$0xff]
    %v114 = vld [vmem:[#allocation2] sm:$0xff]
    %v115 = vld [vmem:[#allocation2 + $0x8] sm:$0xff]
    %v116 = vld [vmem:[#allocation2 + $0x10] sm:$0xff]
    %v117 = vld [vmem:[#allocation2 + $0x18] sm:$0xff]
    %v118 = vld [vmem:[#allocation2 + $0x20] sm:$0xff]
    %v119 = vld [vmem:[#allocation2 + $0x28] sm:$0xff]
    %v120 = vld [vmem:[#allocation2 + $0x30] sm:$0xff]
    %v121 = vld [vmem:[#allocation2 + $0x38] sm:$0xff]
    %v122 = vld [vmem:[#allocation2 + $0x40] sm:$0xff]
    %v123 = vld [vmem:[#allocation2 + $0x48] sm:$0xff]
    %v124 = vld [vmem:[#allocation2 + $0x50] sm:$0xff]
    %v125 = vld [vmem:[#allocation2 + $0x58] sm:$0xff]
    %v126 = vld [vmem:[#allocation2 + $0x60] sm:$0xff]
    %v127 = vld [vmem:[#allocation2 + $0x68] sm:$0xff]
    %v128 = vld [vmem:[#allocation2 + $0x70] sm:$0xff]
    %v129 = vld [vmem:[#allocation2 + $0x78] sm:$0xff]
    %v130 = vld [vmem:[#allocation2 + $0x80] sm:$0xff]
    %v131 = vld [vmem:[#allocation2 + $0x88] sm:$0xff]
    %v132 = vld [vmem:[#allocation2 + $0x90] sm:$0xff]
    %v133 = vld [vmem:[#allocation2 + $0x98] sm:$0xff]
    %v134 = vld [vmem:[#allocation2 + $0xa0] sm:$0xff]
    %v135 = vld [vmem:[#allocation2 + $0xa8] sm:$0xff]
    %v136 = vld [vmem:[#allocation2 + $0xb0] sm:$0xff]
    %v137 = vld [vmem:[#allocation2 + $0xb8] sm:$0xff]
    %v138 = vld [vmem:[#allocation2 + $0xc0] sm:$0xff]
    %v139 = vld [vmem:[#allocation2 + $0xc8] sm:$0xff]
    %v140 = vld [vmem:[#allocation2 + $0xd0] sm:$0xff]
    %v141 = vld [vmem:[#allocation2 + $0xd8] sm:$0xff]
    %v142 = vld [vmem:[#allocation2 + $0xe0] sm:$0xff]
    %v143 = vld [vmem:[#allocation2 + $0xe8] sm:$0xff]
    %v144 = vld [vmem:[#allocation2 + $0xf0] sm:$0xff]
    %v145 = vld [vmem:[#allocation2 + $0xf8] sm:$0xff]
    %v146 = vld [vmem:[#allocation2 + $0x100] sm:$0xff]
    %v147 = vld [vmem:[#allocation2 + $0x108] sm:$0xff]
    %v148 = vld [vmem:[#allocation2 + $0x110] sm:$0xff]
    %v149 = vld [vmem:[#allocation2 + $0x118] sm:$0xff]
    %v150 = vld [vmem:[#allocation2 + $0x120] sm:$0xff]
    %v151 = vld [vmem:[#allocation2 + $0x128] sm:$0xff]
    %v152 = vld [vmem:[#allocation2 + $0x130] sm:$0xff]
    %v153 = vld [vmem:[#allocation2 + $0x138] sm:$0xff]
    %v154 = vld [vmem:[#allocation2 + $0x140] sm:$0xff]
    %v155 = vld [vmem:[#allocation2 + $0x148] sm:$0xff]
    %v156 = vld [vmem:[#allocation2 + $0x150] sm:$0xff]
    %v157 = vld [vmem:[#allocation2 + $0x158] sm:$0xff]
    %v158 = vld [vmem:[#allocation2 + $0x160] sm:$0xff]
    %v159 = vld [vmem:[#allocation2 + $0x168] sm:$0xff]
    %v160 = vld [vmem:[#allocation2 + $0x170] sm:$0xff]
    %v161 = vld [vmem:[#allocation2 + $0x178] sm:$0xff]
    %v162 = vld [vmem:[#allocation2 + $0x180] sm:$0xff]
    %v163 = vld [vmem:[#allocation2 + $0x188] sm:$0xff]
    %v164 = vld [vmem:[#allocation2 + $0x190] sm:$0xff]
    %v165 = vld [vmem:[#allocation2 + $0x198] sm:$0xff]
    %v166 = vld [vmem:[#allocation2 + $0x1a0] sm:$0xff]
    %v167 = vld [vmem:[#allocation2 + $0x1a8] sm:$0xff]
    %v168 = vld [vmem:[#allocation2 + $0x1b0] sm:$0xff]
    %v169 = vld [vmem:[#allocation2 + $0x1b8] sm:$0xff]
    %v170 = vld [vmem:[#allocation2 + $0x1c0] sm:$0xff]
    %v171 = vld [vmem:[#allocation2 + $0x1c8] sm:$0xff]
    %v172 = vld [vmem:[#allocation2 + $0x1d0] sm:$0xff]
    %v173 = vld [vmem:[#allocation2 + $0x1d8] sm:$0xff]
    %v174 = vld [vmem:[#allocation2 + $0x1e0] sm:$0xff]
    %v175 = vld [vmem:[#allocation2 + $0x1e8] sm:$0xff]
    %v176 = vld [vmem:[#allocation2 + $0x1f0] sm:$0xff]
    %v177 = vld [vmem:[#allocation2 + $0x1f8] sm:$0xff]
    %v178 = vld [vmem:[#allocation2 + $0x200] sm:$0xff]
    %v179 = vld [vmem:[#allocation2 + $0x208] sm:$0xff]
    %v180 = vld [vmem:[#allocation2 + $0x210] sm:$0xff]
    %v181 = vld [vmem:[#allocation2 + $0x218] sm:$0xff]
    %v182 = vld [vmem:[#allocation2 + $0x220] sm:$0xff]
    %v183 = vld [vmem:[#allocation2 + $0x228] sm:$0xff]
    %v184 = vld [vmem:[#allocation2 + $0x230] sm:$0xff]
    %v185 = vld [vmem:[#allocation2 + $0x238] sm:$0xff]
    %v186 = vld [vmem:[#allocation2 + $0x240] sm:$0xff]
    %v187 = vld [vmem:[#allocation2 + $0x248] sm:$0xff]
    %v188 = vld [vmem:[#allocation2 + $0x250] sm:$0xff]
    %v189 = vld [vmem:[#allocation2 + $0x258] sm:$0xff]
    %v190 = vld [vmem:[#allocation2 + $0x260] sm:$0xff]
    %v191 = vld [vmem:[#allocation2 + $0x268] sm:$0xff]
    %v192 = vld [vmem:[#allocation2 + $0x270] sm:$0xff]
    %v193 = vld [vmem:[#allocation2 + $0x278] sm:$0xff]
    %v194 = vld [vmem:[#allocation2 + $0x280] sm:$0xff]
    %v195 = vld [vmem:[#allocation2 + $0x288] sm:$0xff]
    %v196 = vld [vmem:[#allocation2 + $0x290] sm:$0xff]
    %v197 = vld [vmem:[#allocation2 + $0x298] sm:$0xff]
    %v198 = vld [vmem:[#allocation2 + $0x2a0] sm:$0xff]
    %v199 = vld [vmem:[#allocation2 + $0x2a8] sm:$0xff]
    %v200 = vld [vmem:[#allocation2 + $0x2b0] sm:$0xff]
    %v201 = vld [vmem:[#allocation2 + $0x2b8] sm:$0xff]
    %v202 = vld [vmem:[#allocation2 + $0x2c0] sm:$0xff]
    %v203 = vld [vmem:[#allocation2 + $0x2c8] sm:$0xff]
    %v204 = vld [vmem:[#allocation2 + $0x2d0] sm:$0xff]
    %v205 = vld [vmem:[#allocation2 + $0x2d8] sm:$0xff]
    %v206 = vld [vmem:[#allocation2 + $0x2e0] sm:$0xff]
    %v207 = vld [vmem:[#allocation2 + $0x2e8] sm:$0xff]
    %v208 = vld [vmem:[#allocation2 + $0x2f0] sm:$0xff]
    %v209 = vld [vmem:[#allocation2 + $0x2f8] sm:$0xff]
    %v210 = vld [vmem:[#allocation2 + $0x300] sm:$0xff]
    %v211 = vld [vmem:[#allocation2 + $0x308] sm:$0xff]
    %v212 = vld [vmem:[#allocation2 + $0x310] sm:$0xff]
    %v213 = vld [vmem:[#allocation2 + $0x318] sm:$0xff]
    %v214 = vld [vmem:[#allocation2 + $0x320] sm:$0xff]
    %v215 = vld [vmem:[#allocation2 + $0x328] sm:$0xff]
    %v216 = vld [vmem:[#allocation2 + $0x330] sm:$0xff]
    %v217 = vld [vmem:[#allocation2 + $0x338] sm:$0xff]
    %v218 = vld [vmem:[#allocation2 + $0x340] sm:$0xff]
    %v219 = vld [vmem:[#allocation2 + $0x348] sm:$0xff]
    %v220 = vld [vmem:[#allocation2 + $0x350] sm:$0xff]
    %v221 = vld [vmem:[#allocation2 + $0x358] sm:$0xff]
    %v222 = vld [vmem:[#allocation2 + $0x360] sm:$0xff]
    %v223 = vld [vmem:[#allocation2 + $0x368] sm:$0xff]
    %v224 = vld [vmem:[#allocation2 + $0x370] sm:$0xff]
    %v225 = vld [vmem:[#allocation2 + $0x378] sm:$0xff]
    %v226 = vld [vmem:[#allocation2 + $0x380] sm:$0xff]
    %v227 = vld [vmem:[#allocation2 + $0x388] sm:$0xff]
    %v228 = vld [vmem:[#allocation2 + $0x390] sm:$0xff]
    %v229 = vld [vmem:[#allocation2 + $0x398] sm:$0xff]
    %v230 = vld [vmem:[#allocation2 + $0x3a0] sm:$0xff]
    %v231 = vld [vmem:[#allocation2 + $0x3a8] sm:$0xff]
    %v232 = vld [vmem:[#allocation2 + $0x3b0] sm:$0xff]
    %v233 = vld [vmem:[#allocation2 + $0x3b8] sm:$0xff]
    %v234 = vld [vmem:[#allocation2 + $0x3c0] sm:$0xff]
    %v235 = vld [vmem:[#allocation2 + $0x3c8] sm:$0xff]
    %v236 = vld [vmem:[#allocation2 + $0x3d0] sm:$0xff]
    %v237 = vld [vmem:[#allocation2 + $0x3d8] sm:$0xff]
    %v238 = vld [vmem:[#allocation2 + $0x3e0] sm:$0xff]
    %v239 = vld [vmem:[#allocation2 + $0x3e8] sm:$0xff]
    %v240 = vld [vmem:[#allocation2 + $0x3f0] sm:$0xff]
    %v241 = vld [vmem:[#allocation2 + $0x3f8] sm:$0xff]
    %v242 = vld [vmem:[#allocation2 + $0x400] sm:$0xff]
    %v243 = vld [vmem:[#allocation2 + $0x408] sm:$0xff]
    %v244 = vld [vmem:[#allocation2 + $0x410] sm:$0xff]
    %v245 = vld [vmem:[#allocation2 + $0x418] sm:$0xff]
    %v246 = vld [vmem:[#allocation2 + $0x420] sm:$0xff]
    %v247 = vld [vmem:[#allocation2 + $0x428] sm:$0xff]
    %v248 = vld [vmem:[#allocation2 + $0x430] sm:$0xff]
    %v249 = vld [vmem:[#allocation2 + $0x438] sm:$0xff]
    %v250 = vld [vmem:[#allocation2 + $0x440] sm:$0xff]
    %v251 = vld [vmem:[#allocation2 + $0x448] sm:$0xff]
    %v252 = vld [vmem:[#allocation2 + $0x450] sm:$0xff]
    %v253 = vld [vmem:[#allocation2 + $0x458] sm:$0xff]
    %v254 = vld [vmem:[#allocation2 + $0x460] sm:$0xff]
    %v255 = vld [vmem:[#allocation2 + $0x468] sm:$0xff]
    %v256 = vld [vmem:[#allocation2 + $0x470] sm:$0xff]
    %v257 = vld [vmem:[#allocation2 + $0x478] sm:$0xff]
    %v258 = vld [vmem:[#allocation2 + $0x480] sm:$0xff]
    %v259 = vld [vmem:[#allocation2 + $0x488] sm:$0xff]
    %v260 = vld [vmem:[#allocation2 + $0x490] sm:$0xff]
    %v261 = vld [vmem:[#allocation2 + $0x498] sm:$0xff]
    %v262 = vld [vmem:[#allocation2 + $0x4a0] sm:$0xff]
    %v263 = vld [vmem:[#allocation2 + $0x4a8] sm:$0xff]
    %v264 = vld [vmem:[#allocation2 + $0x4b0] sm:$0xff]
    %v265 = vld [vmem:[#allocation2 + $0x4b8] sm:$0xff]
    %v266 = vld [vmem:[#allocation2 + $0x4c0] sm:$0xff]
    %v267 = vld [vmem:[#allocation2 + $0x4c8] sm:$0xff]
    %v268 = vld [vmem:[#allocation2 + $0x4d0] sm:$0xff]
    %v269 = vld [vmem:[#allocation2 + $0x4d8] sm:$0xff]
    %v270 = vld [vmem:[#allocation2 + $0x4e0] sm:$0xff]
    %v271 = vld [vmem:[#allocation2 + $0x4e8] sm:$0xff]
    %v272 = vld [vmem:[#allocation2 + $0x4f0] sm:$0xff]
    %v273 = vld [vmem:[#allocation2 + $0x4f8] sm:$0xff]
    %v274 = vld [vmem:[#allocation2 + $0x500] sm:$0xff]
    %v275 = vld [vmem:[#allocation2 + $0x508] sm:$0xff]
    %v276 = vld [vmem:[#allocation2 + $0x510] sm:$0xff]
    %v277 = vld [vmem:[#allocation2 + $0x518] sm:$0xff]
    %v278 = vld [vmem:[#allocation2 + $0x520] sm:$0xff]
    %v279 = vld [vmem:[#allocation2 + $0x528] sm:$0xff]
    %v280 = vld [vmem:[#allocation2 + $0x530] sm:$0xff]
    %v281 = vld [vmem:[#allocation2 + $0x538] sm:$0xff]
    %v282 = vld [vmem:[#allocation2 + $0x540] sm:$0xff]
    %v283 = vld [vmem:[#allocation2 + $0x548] sm:$0xff]
    %v284 = vld [vmem:[#allocation2 + $0x550] sm:$0xff]
    %v285 = vld [vmem:[#allocation2 + $0x558] sm:$0xff]
    %v286 = vld [vmem:[#allocation2 + $0x560] sm:$0xff]
    %v287 = vld [vmem:[#allocation2 + $0x568] sm:$0xff]
    %v288 = vld [vmem:[#allocation2 + $0x570] sm:$0xff]
    %v289 = vld [vmem:[#allocation2 + $0x578] sm:$0xff]
    %v290 = vld [vmem:[#allocation2 + $0x580] sm:$0xff]
    %v291 = vld [vmem:[#allocation2 + $0x588] sm:$0xff]
    %v292 = vld [vmem:[#allocation2 + $0x590] sm:$0xff]
    %v293 = vld [vmem:[#allocation2 + $0x598] sm:$0xff]
    %v294 = vld [vmem:[#allocation2 + $0x5a0] sm:$0xff]
    %v295 = vld [vmem:[#allocation2 + $0x5a8] sm:$0xff]
    %v296 = vld [vmem:[#allocation2 + $0x5b0] sm:$0xff]
    %v297 = vld [vmem:[#allocation2 + $0x5b8] sm:$0xff]
    %v298 = vld [vmem:[#allocation2 + $0x5c0] sm:$0xff]
    %v299 = vld [vmem:[#allocation2 + $0x5c8] sm:$0xff]
    %v300 = vld [vmem:[#allocation2 + $0x5d0] sm:$0xff]
    %v301 = vld [vmem:[#allocation2 + $0x5d8] sm:$0xff]
    %v302 = vld [vmem:[#allocation2 + $0x5e0] sm:$0xff]
    %v303 = vld [vmem:[#allocation2 + $0x5e8] sm:$0xff]
    %v304 = vld [vmem:[#allocation2 + $0x5f0] sm:$0xff]
    %v305 = vld [vmem:[#allocation2 + $0x5f8] sm:$0xff]
    %v306 = vld [vmem:[#allocation2 + $0x600] sm:$0xff]
    %v307 = vld [vmem:[#allocation2 + $0x608] sm:$0xff]
    %v308 = vld [vmem:[#allocation2 + $0x610] sm:$0xff]
    %v309 = vld [vmem:[#allocation2 + $0x618] sm:$0xff]
    %v310 = vld [vmem:[#allocation2 + $0x620] sm:$0xff]
    %v311 = vld [vmem:[#allocation2 + $0x628] sm:$0xff]
    %v312 = vld [vmem:[#allocation2 + $0x630] sm:$0xff]
    %v313 = vld [vmem:[#allocation2 + $0x638] sm:$0xff]
    %v314 = vld [vmem:[#allocation2 + $0x640] sm:$0xff]
    %v315 = vld [vmem:[#allocation2 + $0x648] sm:$0xff]
    %v316 = vld [vmem:[#allocation2 + $0x650] sm:$0xff]
    %v317 = vld [vmem:[#allocation2 + $0x658] sm:$0xff]
    %v318 = vld [vmem:[#allocation2 + $0x660] sm:$0xff]
    %v319 = vld [vmem:[#allocation2 + $0x668] sm:$0xff]
    %v320 = vld [vmem:[#allocation2 + $0x670] sm:$0xff]
    %v321 = vld [vmem:[#allocation2 + $0x678] sm:$0xff]
    %v322 = vld [vmem:[#allocation2 + $0x680] sm:$0xff]
    %v323 = vld [vmem:[#allocation2 + $0x688] sm:$0xff]
    %v324 = vld [vmem:[#allocation2 + $0x690] sm:$0xff]
    %v325 = vld [vmem:[#allocation2 + $0x698] sm:$0xff]
    %v326 = vld [vmem:[#allocation2 + $0x6a0] sm:$0xff]
    %v327 = vld [vmem:[#allocation2 + $0x6a8] sm:$0xff]
    %v328 = vld [vmem:[#allocation2 + $0x6b0] sm:$0xff]
    %v329 = vld [vmem:[#allocation2 + $0x6b8] sm:$0xff]
    %v330 = vld [vmem:[#allocation2 + $0x6c0] sm:$0xff]
    %v331 = vld [vmem:[#allocation2 + $0x6c8] sm:$0xff]
    %v332 = vld [vmem:[#allocation2 + $0x6d0] sm:$0xff]
    %v333 = vld [vmem:[#allocation2 + $0x6d8] sm:$0xff]
    %v334 = vld [vmem:[#allocation2 + $0x6e0] sm:$0xff]
    %v335 = vld [vmem:[#allocation2 + $0x6e8] sm:$0xff]
    %v336 = vld [vmem:[#allocation2 + $0x6f0] sm:$0xff]
    %v337 = vld [vmem:[#allocation2 + $0x6f8] sm:$0xff]
    %v338 = vld [vmem:[#allocation2 + $0x700] sm:$0xff]
    %v339 = vld [vmem:[#allocation2 + $0x708] sm:$0xff]
    %v340 = vld [vmem:[#allocation2 + $0x710] sm:$0xff]
    %v341 = vld [vmem:[#allocation2 + $0x718] sm:$0xff]
    %v342 = vld [vmem:[#allocation2 + $0x720] sm:$0xff]
    %v343 = vld [vmem:[#allocation2 + $0x728] sm:$0xff]
    %v344 = vld [vmem:[#allocation2 + $0x730] sm:$0xff]
    %v345 = vld [vmem:[#allocation2 + $0x738] sm:$0xff]
    %v346 = vld [vmem:[#allocation2 + $0x740] sm:$0xff]
    %v347 = vld [vmem:[#allocation2 + $0x748] sm:$0xff]
    %v348 = vld [vmem:[#allocation2 + $0x750] sm:$0xff]
    %v349 = vld [vmem:[#allocation2 + $0x758] sm:$0xff]
    %v350 = vld [vmem:[#allocation2 + $0x760] sm:$0xff]
    %v351 = vld [vmem:[#allocation2 + $0x768] sm:$0xff]
    %v352 = vld [vmem:[#allocation2 + $0x770] sm:$0xff]
    %v353 = vld [vmem:[#allocation2 + $0x778] sm:$0xff]
    %v354 = vld [vmem:[#allocation2 + $0x780] sm:$0xff]
    %v355 = vld [vmem:[#allocation2 + $0x788] sm:$0xff]
    %v356 = vld [vmem:[#allocation2 + $0x790] sm:$0xff]
    %v357 = vld [vmem:[#allocation2 + $0x798] sm:$0xff]
    %v358 = vld [vmem:[#allocation2 + $0x7a0] sm:$0xff]
    %v359 = vld [vmem:[#allocation2 + $0x7a8] sm:$0xff]
    %v360 = vld [vmem:[#allocation2 + $0x7b0] sm:$0xff]
    %v361 = vld [vmem:[#allocation2 + $0x7b8] sm:$0xff]
    %v362 = vld [vmem:[#allocation2 + $0x7c0] sm:$0xff]
    %v363 = vld [vmem:[#allocation2 + $0x7c8] sm:$0xff]
    %v364 = vld [vmem:[#allocation2 + $0x7d0] sm:$0xff]
    %v365 = vld [vmem:[#allocation2 + $0x7d8] sm:$0xff]
    %v366 = vld [vmem:[#allocation2 + $0x7e0] sm:$0xff]
    %v367 = vld [vmem:[#allocation2 + $0x7e8] sm:$0xff]
    %v368 = vld [vmem:[#allocation2 + $0x7f0] sm:$0xff]
    %v369 = vld [vmem:[#allocation2 + $0x7f8] sm:$0xff]
    %v370 = vld [vmem:[#allocation5] sm:$0xf]
    %v371 = vld [vmem:[#allocation5 + $0x4] sm:$0xf]
    %v372 = vld [vmem:[#allocation5 + $0x8] sm:$0xf]
    %v373 = vld [vmem:[#allocation5 + $0xc] sm:$0xf]
    %v374 = vld [vmem:[#allocation5 + $0x10] sm:$0xf]
    %v375 = vld [vmem:[#allocation5 + $0x14] sm:$0xf]
    %v376 = vld [vmem:[#allocation5 + $0x18] sm:$0xf]
    %v377 = vld [vmem:[#allocation5 + $0x1c] sm:$0xf]
    %v378 = vld [vmem:[#allocation5 + $0x20] sm:$0xf]
    %v379 = vld [vmem:[#allocation5 + $0x24] sm:$0xf]
    %v380 = vld [vmem:[#allocation5 + $0x28] sm:$0xf]
    %v381 = vld [vmem:[#allocation5 + $0x2c] sm:$0xf]
    %v382 = vld [vmem:[#allocation5 + $0x30] sm:$0xf]
    %v383 = vld [vmem:[#allocation5 + $0x34] sm:$0xf]
    %v384 = vld [vmem:[#allocation5 + $0x38] sm:$0xf]
    %v385 = vld [vmem:[#allocation5 + $0x3c] sm:$0xf]
    %v386 = vld [vmem:[#allocation5 + $0x40] sm:$0xf]
    %v387 = vld [vmem:[#allocation5 + $0x44] sm:$0xf]
    %v388 = vld [vmem:[#allocation5 + $0x48] sm:$0xf]
    %v389 = vld [vmem:[#allocation5 + $0x4c] sm:$0xf]
    %v390 = vld [vmem:[#allocation5 + $0x50] sm:$0xf]
    %v391 = vld [vmem:[#allocation5 + $0x54] sm:$0xf]
    %v392 = vld [vmem:[#allocation5 + $0x58] sm:$0xf]
    %v393 = vld [vmem:[#allocation5 + $0x5c] sm:$0xf]
    %v394 = vld [vmem:[#allocation5 + $0x60] sm:$0xf]
    %v395 = vld [vmem:[#allocation5 + $0x64] sm:$0xf]
    %v396 = vld [vmem:[#allocation5 + $0x68] sm:$0xf]
    %v397 = vld [vmem:[#allocation5 + $0x6c] sm:$0xf]
    %v398 = vld [vmem:[#allocation5 + $0x70] sm:$0xf]
    %v399 = vld [vmem:[#allocation5 + $0x74] sm:$0xf]
    %v400 = vld [vmem:[#allocation5 + $0x78] sm:$0xf]
    %v401 = vld [vmem:[#allocation5 + $0x7c] sm:$0xf]
    %v402 = vld [vmem:[#allocation5 + $0x80] sm:$0xf]
    %v403 = vld [vmem:[#allocation5 + $0x84] sm:$0xf]
    %v404 = vld [vmem:[#allocation5 + $0x88] sm:$0xf]
    %v405 = vld [vmem:[#allocation5 + $0x8c] sm:$0xf]
    %v406 = vld [vmem:[#allocation5 + $0x90] sm:$0xf]
    %v407 = vld [vmem:[#allocation5 + $0x94] sm:$0xf]
    %v408 = vld [vmem:[#allocation5 + $0x98] sm:$0xf]
    %v409 = vld [vmem:[#allocation5 + $0x9c] sm:$0xf]
    %v410 = vld [vmem:[#allocation5 + $0xa0] sm:$0xf]
    %v411 = vld [vmem:[#allocation5 + $0xa4] sm:$0xf]
    %v412 = vld [vmem:[#allocation5 + $0xa8] sm:$0xf]
    %v413 = vld [vmem:[#allocation5 + $0xac] sm:$0xf]
    %v414 = vld [vmem:[#allocation5 + $0xb0] sm:$0xf]
    %v415 = vld [vmem:[#allocation5 + $0xb4] sm:$0xf]
    %v416 = vld [vmem:[#allocation5 + $0xb8] sm:$0xf]
    %v417 = vld [vmem:[#allocation5 + $0xbc] sm:$0xf]
    %v418 = vld [vmem:[#allocation5 + $0xc0] sm:$0xf]
    %v419 = vld [vmem:[#allocation5 + $0xc4] sm:$0xf]
    %v420 = vld [vmem:[#allocation5 + $0xc8] sm:$0xf]
    %v421 = vld [vmem:[#allocation5 + $0xcc] sm:$0xf]
    %v422 = vld [vmem:[#allocation5 + $0xd0] sm:$0xf]
    %v423 = vld [vmem:[#allocation5 + $0xd4] sm:$0xf]
    %v424 = vld [vmem:[#allocation5 + $0xd8] sm:$0xf]
    %v425 = vld [vmem:[#allocation5 + $0xdc] sm:$0xf]
    %v426 = vld [vmem:[#allocation5 + $0xe0] sm:$0xf]
    %v427 = vld [vmem:[#allocation5 + $0xe4] sm:$0xf]
    %v428 = vld [vmem:[#allocation5 + $0xe8] sm:$0xf]
    %v429 = vld [vmem:[#allocation5 + $0xec] sm:$0xf]
    %v430 = vld [vmem:[#allocation5 + $0xf0] sm:$0xf]
    %v431 = vld [vmem:[#allocation5 + $0xf4] sm:$0xf]
    %v432 = vld [vmem:[#allocation5 + $0xf8] sm:$0xf]
    %v433 = vld [vmem:[#allocation5 + $0xfc] sm:$0xf]
    %v434 = vld [vmem:[#allocation5 + $0x100] sm:$0xf]
    %v435 = vld [vmem:[#allocation5 + $0x104] sm:$0xf]
    %v436 = vld [vmem:[#allocation5 + $0x108] sm:$0xf]
    %v437 = vld [vmem:[#allocation5 + $0x10c] sm:$0xf]
    %v438 = vld [vmem:[#allocation5 + $0x110] sm:$0xf]
    %v439 = vld [vmem:[#allocation5 + $0x114] sm:$0xf]
    %v440 = vld [vmem:[#allocation5 + $0x118] sm:$0xf]
    %v441 = vld [vmem:[#allocation5 + $0x11c] sm:$0xf]
    %v442 = vld [vmem:[#allocation5 + $0x120] sm:$0xf]
    %v443 = vld [vmem:[#allocation5 + $0x124] sm:$0xf]
    %v444 = vld [vmem:[#allocation5 + $0x128] sm:$0xf]
    %v445 = vld [vmem:[#allocation5 + $0x12c] sm:$0xf]
    %v446 = vld [vmem:[#allocation5 + $0x130] sm:$0xf]
    %v447 = vld [vmem:[#allocation5 + $0x134] sm:$0xf]
    %v448 = vld [vmem:[#allocation5 + $0x138] sm:$0xf]
    %v449 = vld [vmem:[#allocation5 + $0x13c] sm:$0xf]
    %v450 = vld [vmem:[#allocation5 + $0x140] sm:$0xf]
    %v451 = vld [vmem:[#allocation5 + $0x144] sm:$0xf]
    %v452 = vld [vmem:[#allocation5 + $0x148] sm:$0xf]
    %v453 = vld [vmem:[#allocation5 + $0x14c] sm:$0xf]
    %v454 = vld [vmem:[#allocation5 + $0x150] sm:$0xf]
    %v455 = vld [vmem:[#allocation5 + $0x154] sm:$0xf]
    %v456 = vld [vmem:[#allocation5 + $0x158] sm:$0xf]
    %v457 = vld [vmem:[#allocation5 + $0x15c] sm:$0xf]
    %v458 = vld [vmem:[#allocation5 + $0x160] sm:$0xf]
    %v459 = vld [vmem:[#allocation5 + $0x164] sm:$0xf]
    %v460 = vld [vmem:[#allocation5 + $0x168] sm:$0xf]
    %v461 = vld [vmem:[#allocation5 + $0x16c] sm:$0xf]
    %v462 = vld [vmem:[#allocation5 + $0x170] sm:$0xf]
    %v463 = vld [vmem:[#allocation5 + $0x174] sm:$0xf]
    %v464 = vld [vmem:[#allocation5 + $0x178] sm:$0xf]
    %v465 = vld [vmem:[#allocation5 + $0x17c] sm:$0xf]
    %v466 = vld [vmem:[#allocation5 + $0x180] sm:$0xf]
    %v467 = vld [vmem:[#allocation5 + $0x184] sm:$0xf]
    %v468 = vld [vmem:[#allocation5 + $0x188] sm:$0xf]
    %v469 = vld [vmem:[#allocation5 + $0x18c] sm:$0xf]
    %v470 = vld [vmem:[#allocation5 + $0x190] sm:$0xf]
    %v471 = vld [vmem:[#allocation5 + $0x194] sm:$0xf]
    %v472 = vld [vmem:[#allocation5 + $0x198] sm:$0xf]
    %v473 = vld [vmem:[#allocation5 + $0x19c] sm:$0xf]
    %v474 = vld [vmem:[#allocation5 + $0x1a0] sm:$0xf]
    %v475 = vld [vmem:[#allocation5 + $0x1a4] sm:$0xf]
    %v476 = vld [vmem:[#allocation5 + $0x1a8] sm:$0xf]
    %v477 = vld [vmem:[#allocation5 + $0x1ac] sm:$0xf]
    %v478 = vld [vmem:[#allocation5 + $0x1b0] sm:$0xf]
    %v479 = vld [vmem:[#allocation5 + $0x1b4] sm:$0xf]
    %v480 = vld [vmem:[#allocation5 + $0x1b8] sm:$0xf]
    %v481 = vld [vmem:[#allocation5 + $0x1bc] sm:$0xf]
    %v482 = vld [vmem:[#allocation5 + $0x1c0] sm:$0xf]
    %v483 = vld [vmem:[#allocation5 + $0x1c4] sm:$0xf]
    %v484 = vld [vmem:[#allocation5 + $0x1c8] sm:$0xf]
    %v485 = vld [vmem:[#allocation5 + $0x1cc] sm:$0xf]
    %v486 = vld [vmem:[#allocation5 + $0x1d0] sm:$0xf]
    %v487 = vld [vmem:[#allocation5 + $0x1d4] sm:$0xf]
    %v488 = vld [vmem:[#allocation5 + $0x1d8] sm:$0xf]
    %v489 = vld [vmem:[#allocation5 + $0x1dc] sm:$0xf]
    %v490 = vld [vmem:[#allocation5 + $0x1e0] sm:$0xf]
    %v491 = vld [vmem:[#allocation5 + $0x1e4] sm:$0xf]
    %v492 = vld [vmem:[#allocation5 + $0x1e8] sm:$0xf]
    %v493 = vld [vmem:[#allocation5 + $0x1ec] sm:$0xf]
    %v494 = vld [vmem:[#allocation5 + $0x1f0] sm:$0xf]
    %v495 = vld [vmem:[#allocation5 + $0x1f4] sm:$0xf]
    %v496 = vld [vmem:[#allocation5 + $0x1f8] sm:$0xf]
    %v497 = vld [vmem:[#allocation5 + $0x1fc] sm:$0xf]
    %v498 = vld [vmem:[#allocation7] sm:$0xf]
    %v499 = vld [vmem:[#allocation7 + $0x4] sm:$0xf]
    %v500 = vld [vmem:[#allocation7 + $0x8] sm:$0xf]
    %v501 = vld [vmem:[#allocation7 + $0xc] sm:$0xf]
    %v502 = vld [vmem:[#allocation7 + $0x10] sm:$0xf]
    %v503 = vld [vmem:[#allocation7 + $0x14] sm:$0xf]
    %v504 = vld [vmem:[#allocation7 + $0x18] sm:$0xf]
    %v505 = vld [vmem:[#allocation7 + $0x1c] sm:$0xf]
    %v506 = vld [vmem:[#allocation7 + $0x20] sm:$0xf]
    %v507 = vld [vmem:[#allocation7 + $0x24] sm:$0xf]
    %v508 = vld [vmem:[#allocation7 + $0x28] sm:$0xf]
    %v509 = vld [vmem:[#allocation7 + $0x2c] sm:$0xf]
    %v510 = vld [vmem:[#allocation7 + $0x30] sm:$0xf]
    %v511 = vld [vmem:[#allocation7 + $0x34] sm:$0xf]
    %v512 = vld [vmem:[#allocation7 + $0x38] sm:$0xf]
    %v513 = vld [vmem:[#allocation7 + $0x3c] sm:$0xf]
    %v514 = vld [vmem:[#allocation7 + $0x40] sm:$0xf]
    %v515 = vld [vmem:[#allocation7 + $0x44] sm:$0xf]
    %v516 = vld [vmem:[#allocation7 + $0x48] sm:$0xf]
    %v517 = vld [vmem:[#allocation7 + $0x4c] sm:$0xf]
    %v518 = vld [vmem:[#allocation7 + $0x50] sm:$0xf]
    %v519 = vld [vmem:[#allocation7 + $0x54] sm:$0xf]
    %v520 = vld [vmem:[#allocation7 + $0x58] sm:$0xf]
    %v521 = vld [vmem:[#allocation7 + $0x5c] sm:$0xf]
    %v522 = vld [vmem:[#allocation7 + $0x60] sm:$0xf]
    %v523 = vld [vmem:[#allocation7 + $0x64] sm:$0xf]
    %v524 = vld [vmem:[#allocation7 + $0x68] sm:$0xf]
    %v525 = vld [vmem:[#allocation7 + $0x6c] sm:$0xf]
    %v526 = vld [vmem:[#allocation7 + $0x70] sm:$0xf]
    %v527 = vld [vmem:[#allocation7 + $0x74] sm:$0xf]
    %v528 = vld [vmem:[#allocation7 + $0x78] sm:$0xf]
    %v529 = vld [vmem:[#allocation7 + $0x7c] sm:$0xf]
    %v530 = vld [vmem:[#allocation8] sm:$0xff]
    %v531 = vld [vmem:[#allocation8 + $0x8] sm:$0xff]
    %v532 = vld [vmem:[#allocation8 + $0x10] sm:$0xff]
    %v533 = vld [vmem:[#allocation8 + $0x18] sm:$0xff]
    %v534 = vld [vmem:[#allocation8 + $0x20] sm:$0xff]
    %v535 = vld [vmem:[#allocation8 + $0x28] sm:$0xff]
    %v536 = vld [vmem:[#allocation8 + $0x30] sm:$0xff]
    %v537 = vld [vmem:[#allocation8 + $0x38] sm:$0xff]
    %v538 = vld [vmem:[#allocation8 + $0x40] sm:$0xff]
    %v539 = vld [vmem:[#allocation8 + $0x48] sm:$0xff]
    %v540 = vld [vmem:[#allocation8 + $0x50] sm:$0xff]
    %v541 = vld [vmem:[#allocation8 + $0x58] sm:$0xff]
    %v542 = vld [vmem:[#allocation8 + $0x60] sm:$0xff]
    %v543 = vld [vmem:[#allocation8 + $0x68] sm:$0xff]
    %v544 = vld [vmem:[#allocation8 + $0x70] sm:$0xff]
    %v545 = vld [vmem:[#allocation8 + $0x78] sm:$0xff]
    %v546 = vld [vmem:[#allocation8 + $0x80] sm:$0xff]
    %v547 = vld [vmem:[#allocation8 + $0x88] sm:$0xff]
    %v548 = vld [vmem:[#allocation8 + $0x90] sm:$0xff]
    %v549 = vld [vmem:[#allocation8 + $0x98] sm:$0xff]
    %v550 = vld [vmem:[#allocation8 + $0xa0] sm:$0xff]
    %v551 = vld [vmem:[#allocation8 + $0xa8] sm:$0xff]
    %v552 = vld [vmem:[#allocation8 + $0xb0] sm:$0xff]
    %v553 = vld [vmem:[#allocation8 + $0xb8] sm:$0xff]
    %v554 = vld [vmem:[#allocation8 + $0xc0] sm:$0xff]
    %v555 = vld [vmem:[#allocation8 + $0xc8] sm:$0xff]
    %v556 = vld [vmem:[#allocation8 + $0xd0] sm:$0xff]
    %v557 = vld [vmem:[#allocation8 + $0xd8] sm:$0xff]
    %v558 = vld [vmem:[#allocation8 + $0xe0] sm:$0xff]
    %v559 = vld [vmem:[#allocation8 + $0xe8] sm:$0xff]
    %v560 = vld [vmem:[#allocation8 + $0xf0] sm:$0xff]
    %v561 = vld [vmem:[#allocation8 + $0xf8] sm:$0xff]
    %v562 = vld [vmem:[#allocation8 + $0x100] sm:$0xff]
    %v563 = vld [vmem:[#allocation8 + $0x108] sm:$0xff]
    %v564 = vld [vmem:[#allocation8 + $0x110] sm:$0xff]
    %v565 = vld [vmem:[#allocation8 + $0x118] sm:$0xff]
    %v566 = vld [vmem:[#allocation8 + $0x120] sm:$0xff]
    %v567 = vld [vmem:[#allocation8 + $0x128] sm:$0xff]
    %v568 = vld [vmem:[#allocation8 + $0x130] sm:$0xff]
    %v569 = vld [vmem:[#allocation8 + $0x138] sm:$0xff]
    %v570 = vld [vmem:[#allocation8 + $0x140] sm:$0xff]
    %v571 = vld [vmem:[#allocation8 + $0x148] sm:$0xff]
    %v572 = vld [vmem:[#allocation8 + $0x150] sm:$0xff]
    %v573 = vld [vmem:[#allocation8 + $0x158] sm:$0xff]
    %v574 = vld [vmem:[#allocation8 + $0x160] sm:$0xff]
    %v575 = vld [vmem:[#allocation8 + $0x168] sm:$0xff]
    %v576 = vld [vmem:[#allocation8 + $0x170] sm:$0xff]
    %v577 = vld [vmem:[#allocation8 + $0x178] sm:$0xff]
    %v578 = vld [vmem:[#allocation8 + $0x180] sm:$0xff]
    %v579 = vld [vmem:[#allocation8 + $0x188] sm:$0xff]
    %v580 = vld [vmem:[#allocation8 + $0x190] sm:$0xff]
    %v581 = vld [vmem:[#allocation8 + $0x198] sm:$0xff]
    %v582 = vld [vmem:[#allocation8 + $0x1a0] sm:$0xff]
    %v583 = vld [vmem:[#allocation8 + $0x1a8] sm:$0xff]
    %v584 = vld [vmem:[#allocation8 + $0x1b0] sm:$0xff]
    %v585 = vld [vmem:[#allocation8 + $0x1b8] sm:$0xff]
    %v586 = vld [vmem:[#allocation8 + $0x1c0] sm:$0xff]
    %v587 = vld [vmem:[#allocation8 + $0x1c8] sm:$0xff]
    %v588 = vld [vmem:[#allocation8 + $0x1d0] sm:$0xff]
    %v589 = vld [vmem:[#allocation8 + $0x1d8] sm:$0xff]
    %v590 = vld [vmem:[#allocation8 + $0x1e0] sm:$0xff]
    %v591 = vld [vmem:[#allocation8 + $0x1e8] sm:$0xff]
    %v592 = vld [vmem:[#allocation8 + $0x1f0] sm:$0xff]
    %v593 = vld [vmem:[#allocation8 + $0x1f8] sm:$0xff]
    %v594 = vld [vmem:[#allocation8 + $0x200] sm:$0xff]
    %v595 = vld [vmem:[#allocation8 + $0x208] sm:$0xff]
    %v596 = vld [vmem:[#allocation8 + $0x210] sm:$0xff]
    %v597 = vld [vmem:[#allocation8 + $0x218] sm:$0xff]
    %v598 = vld [vmem:[#allocation8 + $0x220] sm:$0xff]
    %v599 = vld [vmem:[#allocation8 + $0x228] sm:$0xff]
    %v600 = vld [vmem:[#allocation8 + $0x230] sm:$0xff]
    %v601 = vld [vmem:[#allocation8 + $0x238] sm:$0xff]
    %v602 = vld [vmem:[#allocation8 + $0x240] sm:$0xff]
    %v603 = vld [vmem:[#allocation8 + $0x248] sm:$0xff]
    %v604 = vld [vmem:[#allocation8 + $0x250] sm:$0xff]
    %v605 = vld [vmem:[#allocation8 + $0x258] sm:$0xff]
    %v606 = vld [vmem:[#allocation8 + $0x260] sm:$0xff]
    %v607 = vld [vmem:[#allocation8 + $0x268] sm:$0xff]
    %v608 = vld [vmem:[#allocation8 + $0x270] sm:$0xff]
    %v609 = vld [vmem:[#allocation8 + $0x278] sm:$0xff]
    %v610 = vld [vmem:[#allocation8 + $0x280] sm:$0xff]
    %v611 = vld [vmem:[#allocation8 + $0x288] sm:$0xff]
    %v612 = vld [vmem:[#allocation8 + $0x290] sm:$0xff]
    %v613 = vld [vmem:[#allocation8 + $0x298] sm:$0xff]
    %v614 = vld [vmem:[#allocation8 + $0x2a0] sm:$0xff]
    %v615 = vld [vmem:[#allocation8 + $0x2a8] sm:$0xff]
    %v616 = vld [vmem:[#allocation8 + $0x2b0] sm:$0xff]
    %v617 = vld [vmem:[#allocation8 + $0x2b8] sm:$0xff]
    %v618 = vld [vmem:[#allocation8 + $0x2c0] sm:$0xff]
    %v619 = vld [vmem:[#allocation8 + $0x2c8] sm:$0xff]
    %v620 = vld [vmem:[#allocation8 + $0x2d0] sm:$0xff]
    %v621 = vld [vmem:[#allocation8 + $0x2d8] sm:$0xff]
    %v622 = vld [vmem:[#allocation8 + $0x2e0] sm:$0xff]
    %v623 = vld [vmem:[#allocation8 + $0x2e8] sm:$0xff]
    %v624 = vld [vmem:[#allocation8 + $0x2f0] sm:$0xff]
    %v625 = vld [vmem:[#allocation8 + $0x2f8] sm:$0xff]
    %v626 = vld [vmem:[#allocation8 + $0x300] sm:$0xff]
    %v627 = vld [vmem:[#allocation8 + $0x308] sm:$0xff]
    %v628 = vld [vmem:[#allocation8 + $0x310] sm:$0xff]
    %v629 = vld [vmem:[#allocation8 + $0x318] sm:$0xff]
    %v630 = vld [vmem:[#allocation8 + $0x320] sm:$0xff]
    %v631 = vld [vmem:[#allocation8 + $0x328] sm:$0xff]
    %v632 = vld [vmem:[#allocation8 + $0x330] sm:$0xff]
    %v633 = vld [vmem:[#allocation8 + $0x338] sm:$0xff]
    %v634 = vld [vmem:[#allocation8 + $0x340] sm:$0xff]
    %v635 = vld [vmem:[#allocation8 + $0x348] sm:$0xff]
    %v636 = vld [vmem:[#allocation8 + $0x350] sm:$0xff]
    %v637 = vld [vmem:[#allocation8 + $0x358] sm:$0xff]
    %v638 = vld [vmem:[#allocation8 + $0x360] sm:$0xff]
    %v639 = vld [vmem:[#allocation8 + $0x368] sm:$0xff]
    %v640 = vld [vmem:[#allocation8 + $0x370] sm:$0xff]
    %v641 = vld [vmem:[#allocation8 + $0x378] sm:$0xff]
    %v642 = vld [vmem:[#allocation8 + $0x380] sm:$0xff]
    %v643 = vld [vmem:[#allocation8 + $0x388] sm:$0xff]
    %v644 = vld [vmem:[#allocation8 + $0x390] sm:$0xff]
    %v645 = vld [vmem:[#allocation8 + $0x398] sm:$0xff]
    %v646 = vld [vmem:[#allocation8 + $0x3a0] sm:$0xff]
    %v647 = vld [vmem:[#allocation8 + $0x3a8] sm:$0xff]
    %v648 = vld [vmem:[#allocation8 + $0x3b0] sm:$0xff]
    %v649 = vld [vmem:[#allocation8 + $0x3b8] sm:$0xff]
    %v650 = vld [vmem:[#allocation8 + $0x3c0] sm:$0xff]
    %v651 = vld [vmem:[#allocation8 + $0x3c8] sm:$0xff]
    %v652 = vld [vmem:[#allocation8 + $0x3d0] sm:$0xff]
    %v653 = vld [vmem:[#allocation8 + $0x3d8] sm:$0xff]
    %v654 = vld [vmem:[#allocation8 + $0x3e0] sm:$0xff]
    %v655 = vld [vmem:[#allocation8 + $0x3e8] sm:$0xff]
    %v656 = vld [vmem:[#allocation8 + $0x3f0] sm:$0xff]
    %v657 = vld [vmem:[#allocation8 + $0x3f8] sm:$0xff]
    %v658 = vld [vmem:[#allocation10] sm:$0xf]
    %v659 = vld [vmem:[#allocation10 + $0x4] sm:$0xf]
    %v660 = vld [vmem:[#allocation10 + $0x8] sm:$0xf]
    %v661 = vld [vmem:[#allocation10 + $0xc] sm:$0xf]
    %v662 = vld [vmem:[#allocation10 + $0x10] sm:$0xf]
    %v663 = vld [vmem:[#allocation10 + $0x14] sm:$0xf]
    %v664 = vld [vmem:[#allocation10 + $0x18] sm:$0xf]
    %v665 = vld [vmem:[#allocation10 + $0x1c] sm:$0xf]
    %v666 = vld [vmem:[#allocation10 + $0x20] sm:$0xf]
    %v667 = vld [vmem:[#allocation10 + $0x24] sm:$0xf]
    %v668 = vld [vmem:[#allocation10 + $0x28] sm:$0xf]
    %v669 = vld [vmem:[#allocation10 + $0x2c] sm:$0xf]
    %v670 = vld [vmem:[#allocation10 + $0x30] sm:$0xf]
    %v671 = vld [vmem:[#allocation10 + $0x34] sm:$0xf]
    %v672 = vld [vmem:[#allocation10 + $0x38] sm:$0xf]
    %v673 = vld [vmem:[#allocation10 + $0x3c] sm:$0xf]
    %v674 = vld [vmem:[#allocation10 + $0x40] sm:$0xf]
    %v675 = vld [vmem:[#allocation10 + $0x44] sm:$0xf]
    %v676 = vld [vmem:[#allocation10 + $0x48] sm:$0xf]
    %v677 = vld [vmem:[#allocation10 + $0x4c] sm:$0xf]
    %v678 = vld [vmem:[#allocation10 + $0x50] sm:$0xf]
    %v679 = vld [vmem:[#allocation10 + $0x54] sm:$0xf]
    %v680 = vld [vmem:[#allocation10 + $0x58] sm:$0xf]
    %v681 = vld [vmem:[#allocation10 + $0x5c] sm:$0xf]
    %v682 = vld [vmem:[#allocation10 + $0x60] sm:$0xf]
    %v683 = vld [vmem:[#allocation10 + $0x64] sm:$0xf]
    %v684 = vld [vmem:[#allocation10 + $0x68] sm:$0xf]
    %v685 = vld [vmem:[#allocation10 + $0x6c] sm:$0xf]
    %v686 = vld [vmem:[#allocation10 + $0x70] sm:$0xf]
    %v687 = vld [vmem:[#allocation10 + $0x74] sm:$0xf]
    %v688 = vld [vmem:[#allocation10 + $0x78] sm:$0xf]
    %v689 = vld [vmem:[#allocation10 + $0x7c] sm:$0xf]
    %v690 = vld [vmem:[#allocation10 + $0x80] sm:$0xf]
    %v691 = vld [vmem:[#allocation10 + $0x84] sm:$0xf]
    %v692 = vld [vmem:[#allocation10 + $0x88] sm:$0xf]
    %v693 = vld [vmem:[#allocation10 + $0x8c] sm:$0xf]
    %v694 = vld [vmem:[#allocation10 + $0x90] sm:$0xf]
    %v695 = vld [vmem:[#allocation10 + $0x94] sm:$0xf]
    %v696 = vld [vmem:[#allocation10 + $0x98] sm:$0xf]
    %v697 = vld [vmem:[#allocation10 + $0x9c] sm:$0xf]
    %v698 = vld [vmem:[#allocation10 + $0xa0] sm:$0xf]
    %v699 = vld [vmem:[#allocation10 + $0xa4] sm:$0xf]
    %v700 = vld [vmem:[#allocation10 + $0xa8] sm:$0xf]
    %v701 = vld [vmem:[#allocation10 + $0xac] sm:$0xf]
    %v702 = vld [vmem:[#allocation10 + $0xb0] sm:$0xf]
    %v703 = vld [vmem:[#allocation10 + $0xb4] sm:$0xf]
    %v704 = vld [vmem:[#allocation10 + $0xb8] sm:$0xf]
    %v705 = vld [vmem:[#allocation10 + $0xbc] sm:$0xf]
    %v706 = vld [vmem:[#allocation10 + $0xc0] sm:$0xf]
    %v707 = vld [vmem:[#allocation10 + $0xc4] sm:$0xf]
    %v708 = vld [vmem:[#allocation10 + $0xc8] sm:$0xf]
    %v709 = vld [vmem:[#allocation10 + $0xcc] sm:$0xf]
    %v710 = vld [vmem:[#allocation10 + $0xd0] sm:$0xf]
    %v711 = vld [vmem:[#allocation10 + $0xd4] sm:$0xf]
    %v712 = vld [vmem:[#allocation10 + $0xd8] sm:$0xf]
    %v713 = vld [vmem:[#allocation10 + $0xdc] sm:$0xf]
    %v714 = vld [vmem:[#allocation10 + $0xe0] sm:$0xf]
    %v715 = vld [vmem:[#allocation10 + $0xe4] sm:$0xf]
    %v716 = vld [vmem:[#allocation10 + $0xe8] sm:$0xf]
    %v717 = vld [vmem:[#allocation10 + $0xec] sm:$0xf]
    %v718 = vld [vmem:[#allocation10 + $0xf0] sm:$0xf]
    %v719 = vld [vmem:[#allocation10 + $0xf4] sm:$0xf]
    %v720 = vld [vmem:[#allocation10 + $0xf8] sm:$0xf]
    %v721 = vld [vmem:[#allocation10 + $0xfc] sm:$0xf]
    %v722 = vld [vmem:[#allocation10 + $0x100] sm:$0xf]
    %v723 = vld [vmem:[#allocation10 + $0x104] sm:$0xf]
    %v724 = vld [vmem:[#allocation10 + $0x108] sm:$0xf]
    %v725 = vld [vmem:[#allocation10 + $0x10c] sm:$0xf]
    %v726 = vld [vmem:[#allocation10 + $0x110] sm:$0xf]
    %v727 = vld [vmem:[#allocation10 + $0x114] sm:$0xf]
    %v728 = vld [vmem:[#allocation10 + $0x118] sm:$0xf]
    %v729 = vld [vmem:[#allocation10 + $0x11c] sm:$0xf]
    %v730 = vld [vmem:[#allocation10 + $0x120] sm:$0xf]
    %v731 = vld [vmem:[#allocation10 + $0x124] sm:$0xf]
    %v732 = vld [vmem:[#allocation10 + $0x128] sm:$0xf]
    %v733 = vld [vmem:[#allocation10 + $0x12c] sm:$0xf]
    %v734 = vld [vmem:[#allocation10 + $0x130] sm:$0xf]
    %v735 = vld [vmem:[#allocation10 + $0x134] sm:$0xf]
    %v736 = vld [vmem:[#allocation10 + $0x138] sm:$0xf]
    %v737 = vld [vmem:[#allocation10 + $0x13c] sm:$0xf]
    %v738 = vld [vmem:[#allocation10 + $0x140] sm:$0xf]
    %v739 = vld [vmem:[#allocation10 + $0x144] sm:$0xf]
    %v740 = vld [vmem:[#allocation10 + $0x148] sm:$0xf]
    %v741 = vld [vmem:[#allocation10 + $0x14c] sm:$0xf]
    %v742 = vld [vmem:[#allocation10 + $0x150] sm:$0xf]
    %v743 = vld [vmem:[#allocation10 + $0x154] sm:$0xf]
    %v744 = vld [vmem:[#allocation10 + $0x158] sm:$0xf]
    %v745 = vld [vmem:[#allocation10 + $0x15c] sm:$0xf]
    %v746 = vld [vmem:[#allocation10 + $0x160] sm:$0xf]
    %v747 = vld [vmem:[#allocation10 + $0x164] sm:$0xf]
    %v748 = vld [vmem:[#allocation10 + $0x168] sm:$0xf]
    %v749 = vld [vmem:[#allocation10 + $0x16c] sm:$0xf]
    %v750 = vld [vmem:[#allocation10 + $0x170] sm:$0xf]
    %v751 = vld [vmem:[#allocation10 + $0x174] sm:$0xf]
    %v752 = vld [vmem:[#allocation10 + $0x178] sm:$0xf]
    %v753 = vld [vmem:[#allocation10 + $0x17c] sm:$0xf]
    %v754 = vld [vmem:[#allocation10 + $0x180] sm:$0xf]
    %v755 = vld [vmem:[#allocation10 + $0x184] sm:$0xf]
    %v756 = vld [vmem:[#allocation10 + $0x188] sm:$0xf]
    %v757 = vld [vmem:[#allocation10 + $0x18c] sm:$0xf]
    %v758 = vld [vmem:[#allocation10 + $0x190] sm:$0xf]
    %v759 = vld [vmem:[#allocation10 + $0x194] sm:$0xf]
    %v760 = vld [vmem:[#allocation10 + $0x198] sm:$0xf]
    %v761 = vld [vmem:[#allocation10 + $0x19c] sm:$0xf]
    %v762 = vld [vmem:[#allocation10 + $0x1a0] sm:$0xf]
    %v763 = vld [vmem:[#allocation10 + $0x1a4] sm:$0xf]
    %v764 = vld [vmem:[#allocation10 + $0x1a8] sm:$0xf]
    %v765 = vld [vmem:[#allocation10 + $0x1ac] sm:$0xf]
    %v766 = vld [vmem:[#allocation10 + $0x1b0] sm:$0xf]
    %v767 = vld [vmem:[#allocation10 + $0x1b4] sm:$0xf]
    %v768 = vld [vmem:[#allocation10 + $0x1b8] sm:$0xf]
    %v769 = vld [vmem:[#allocation10 + $0x1bc] sm:$0xf]
    %v770 = vld [vmem:[#allocation10 + $0x1c0] sm:$0xf]
    %v771 = vld [vmem:[#allocation10 + $0x1c4] sm:$0xf]
    %v772 = vld [vmem:[#allocation10 + $0x1c8] sm:$0xf]
    %v773 = vld [vmem:[#allocation10 + $0x1cc] sm:$0xf]
    %v774 = vld [vmem:[#allocation10 + $0x1d0] sm:$0xf]
    %v775 = vld [vmem:[#allocation10 + $0x1d4] sm:$0xf]
    %v776 = vld [vmem:[#allocation10 + $0x1d8] sm:$0xf]
    %v777 = vld [vmem:[#allocation10 + $0x1dc] sm:$0xf]
    %v778 = vld [vmem:[#allocation10 + $0x1e0] sm:$0xf]
    %v779 = vld [vmem:[#allocation10 + $0x1e4] sm:$0xf]
    %v780 = vld [vmem:[#allocation10 + $0x1e8] sm:$0xf]
    %v781 = vld [vmem:[#allocation10 + $0x1ec] sm:$0xf]
    %v782 = vld [vmem:[#allocation10 + $0x1f0] sm:$0xf]
    %v783 = vld [vmem:[#allocation10 + $0x1f4] sm:$0xf]
    %v784 = vld [vmem:[#allocation10 + $0x1f8] sm:$0xf]
    %v785 = vld [vmem:[#allocation10 + $0x1fc] sm:$0xf]
    %v786 = vpack.c.bf16 %v108, %v108
    %v787 = vpack.c.bf16 %v109, %v109
    %v788 = vpack.c.bf16 %v110, %v110
    %v789 = vpack.c.bf16 %v111, %v111
    %v1046 = vunpack.c.l.b16 %v114
    %v1047 = vunpack.c.h.b16 %v114
    %v1048 = vunpack.c.l.b16 %v115
    %v1049 = vunpack.c.h.b16 %v115
    %v1050 = vunpack.c.l.b16 %v116
    %v1051 = vunpack.c.h.b16 %v116
    %v1052 = vunpack.c.l.b16 %v117
    %v1053 = vunpack.c.h.b16 %v117
    %v1054 = vunpack.c.l.b16 %v118
    %v1055 = vunpack.c.h.b16 %v118
    %v1056 = vunpack.c.l.b16 %v119
    %v1057 = vunpack.c.h.b16 %v119
    %v1058 = vunpack.c.l.b16 %v120
    %v1059 = vunpack.c.h.b16 %v120
    %v1060 = vunpack.c.l.b16 %v121
    %v1061 = vunpack.c.h.b16 %v121
    %v1062 = vunpack.c.l.b16 %v122
    %v1063 = vunpack.c.h.b16 %v122
    %v1064 = vunpack.c.l.b16 %v123
    %v1065 = vunpack.c.h.b16 %v123
    %v1066 = vunpack.c.l.b16 %v124
    %v1067 = vunpack.c.h.b16 %v124
    %v1068 = vunpack.c.l.b16 %v125
    %v1069 = vunpack.c.h.b16 %v125
    %v1070 = vunpack.c.l.b16 %v126
    %v1071 = vunpack.c.h.b16 %v126
    %v1072 = vunpack.c.l.b16 %v127
    %v1073 = vunpack.c.h.b16 %v127
    %v1074 = vunpack.c.l.b16 %v128
    %v1075 = vunpack.c.h.b16 %v128
    %v1076 = vunpack.c.l.b16 %v129
    %v1077 = vunpack.c.h.b16 %v129
    %v1078 = vunpack.c.l.b16 %v130
    %v1079 = vunpack.c.h.b16 %v130
    %v1080 = vunpack.c.l.b16 %v131
    %v1081 = vunpack.c.h.b16 %v131
    %v1082 = vunpack.c.l.b16 %v132
    %v1083 = vunpack.c.h.b16 %v132
    %v1084 = vunpack.c.l.b16 %v133
    %v1085 = vunpack.c.h.b16 %v133
    %v1086 = vunpack.c.l.b16 %v134
    %v1087 = vunpack.c.h.b16 %v134
    %v1088 = vunpack.c.l.b16 %v135
    %v1089 = vunpack.c.h.b16 %v135
    %v1090 = vunpack.c.l.b16 %v136
    %v1091 = vunpack.c.h.b16 %v136
    %v1092 = vunpack.c.l.b16 %v137
    %v1093 = vunpack.c.h.b16 %v137
    %v1094 = vunpack.c.l.b16 %v138
    %v1095 = vunpack.c.h.b16 %v138
    %v1096 = vunpack.c.l.b16 %v139
    %v1097 = vunpack.c.h.b16 %v139
    %v1098 = vunpack.c.l.b16 %v140
    %v1099 = vunpack.c.h.b16 %v140
    %v1100 = vunpack.c.l.b16 %v141
    %v1101 = vunpack.c.h.b16 %v141
    %v1102 = vunpack.c.l.b16 %v142
    %v1103 = vunpack.c.h.b16 %v142
    %v1104 = vunpack.c.l.b16 %v143
    %v1105 = vunpack.c.h.b16 %v143
    %v1106 = vunpack.c.l.b16 %v144
    %v1107 = vunpack.c.h.b16 %v144
    %v1108 = vunpack.c.l.b16 %v145
    %v1109 = vunpack.c.h.b16 %v145
    %v1110 = vunpack.c.l.b16 %v146
    %v1111 = vunpack.c.h.b16 %v146
    %v1112 = vunpack.c.l.b16 %v147
    %v1113 = vunpack.c.h.b16 %v147
    %v1114 = vunpack.c.l.b16 %v148
    %v1115 = vunpack.c.h.b16 %v148
    %v1116 = vunpack.c.l.b16 %v149
    %v1117 = vunpack.c.h.b16 %v149
    %v1118 = vunpack.c.l.b16 %v150
    %v1119 = vunpack.c.h.b16 %v150
    %v1120 = vunpack.c.l.b16 %v151
    %v1121 = vunpack.c.h.b16 %v151
    %v1122 = vunpack.c.l.b16 %v152
    %v1123 = vunpack.c.h.b16 %v152
    %v1124 = vunpack.c.l.b16 %v153
    %v1125 = vunpack.c.h.b16 %v153
    %v1126 = vunpack.c.l.b16 %v154
    %v1127 = vunpack.c.h.b16 %v154
    %v1128 = vunpack.c.l.b16 %v155
    %v1129 = vunpack.c.h.b16 %v155
    %v1130 = vunpack.c.l.b16 %v156
    %v1131 = vunpack.c.h.b16 %v156
    %v1132 = vunpack.c.l.b16 %v157
    %v1133 = vunpack.c.h.b16 %v157
    %v1134 = vunpack.c.l.b16 %v158
    %v1135 = vunpack.c.h.b16 %v158
    %v1136 = vunpack.c.l.b16 %v159
    %v1137 = vunpack.c.h.b16 %v159
    %v1138 = vunpack.c.l.b16 %v160
    %v1139 = vunpack.c.h.b16 %v160
    %v1140 = vunpack.c.l.b16 %v161
    %v1141 = vunpack.c.h.b16 %v161
    %v1142 = vunpack.c.l.b16 %v162
    %v1143 = vunpack.c.h.b16 %v162
    %v1144 = vunpack.c.l.b16 %v163
    %v1145 = vunpack.c.h.b16 %v163
    %v1146 = vunpack.c.l.b16 %v164
    %v1147 = vunpack.c.h.b16 %v164
    %v1148 = vunpack.c.l.b16 %v165
    %v1149 = vunpack.c.h.b16 %v165
    %v1150 = vunpack.c.l.b16 %v166
    %v1151 = vunpack.c.h.b16 %v166
    %v1152 = vunpack.c.l.b16 %v167
    %v1153 = vunpack.c.h.b16 %v167
    %v1154 = vunpack.c.l.b16 %v168
    %v1155 = vunpack.c.h.b16 %v168
    %v1156 = vunpack.c.l.b16 %v169
    %v1157 = vunpack.c.h.b16 %v169
    %v1158 = vunpack.c.l.b16 %v170
    %v1159 = vunpack.c.h.b16 %v170
    %v1160 = vunpack.c.l.b16 %v171
    %v1161 = vunpack.c.h.b16 %v171
    %v1162 = vunpack.c.l.b16 %v172
    %v1163 = vunpack.c.h.b16 %v172
    %v1164 = vunpack.c.l.b16 %v173
    %v1165 = vunpack.c.h.b16 %v173
    %v1166 = vunpack.c.l.b16 %v174
    %v1167 = vunpack.c.h.b16 %v174
    %v1168 = vunpack.c.l.b16 %v175
    %v1169 = vunpack.c.h.b16 %v175
    %v1170 = vunpack.c.l.b16 %v176
    %v1171 = vunpack.c.h.b16 %v176
    %v1172 = vunpack.c.l.b16 %v177
    %v1173 = vunpack.c.h.b16 %v177
    %v1174 = vunpack.c.l.b16 %v178
    %v1175 = vunpack.c.h.b16 %v178
    %v1176 = vunpack.c.l.b16 %v179
    %v1177 = vunpack.c.h.b16 %v179
    %v1178 = vunpack.c.l.b16 %v180
    %v1179 = vunpack.c.h.b16 %v180
    %v1180 = vunpack.c.l.b16 %v181
    %v1181 = vunpack.c.h.b16 %v181
    %v1182 = vunpack.c.l.b16 %v182
    %v1183 = vunpack.c.h.b16 %v182
    %v1184 = vunpack.c.l.b16 %v183
    %v1185 = vunpack.c.h.b16 %v183
    %v1186 = vunpack.c.l.b16 %v184
    %v1187 = vunpack.c.h.b16 %v184
    %v1188 = vunpack.c.l.b16 %v185
    %v1189 = vunpack.c.h.b16 %v185
    %v1190 = vunpack.c.l.b16 %v186
    %v1191 = vunpack.c.h.b16 %v186
    %v1192 = vunpack.c.l.b16 %v187
    %v1193 = vunpack.c.h.b16 %v187
    %v1194 = vunpack.c.l.b16 %v188
    %v1195 = vunpack.c.h.b16 %v188
    %v1196 = vunpack.c.l.b16 %v189
    %v1197 = vunpack.c.h.b16 %v189
    %v1198 = vunpack.c.l.b16 %v190
    %v1199 = vunpack.c.h.b16 %v190
    %v1200 = vunpack.c.l.b16 %v191
    %v1201 = vunpack.c.h.b16 %v191
    %v1202 = vunpack.c.l.b16 %v192
    %v1203 = vunpack.c.h.b16 %v192
    %v1204 = vunpack.c.l.b16 %v193
    %v1205 = vunpack.c.h.b16 %v193
    %v1206 = vunpack.c.l.b16 %v194
    %v1207 = vunpack.c.h.b16 %v194
    %v1208 = vunpack.c.l.b16 %v195
    %v1209 = vunpack.c.h.b16 %v195
    %v1210 = vunpack.c.l.b16 %v196
    %v1211 = vunpack.c.h.b16 %v196
    %v1212 = vunpack.c.l.b16 %v197
    %v1213 = vunpack.c.h.b16 %v197
    %v1214 = vunpack.c.l.b16 %v198
    %v1215 = vunpack.c.h.b16 %v198
    %v1216 = vunpack.c.l.b16 %v199
    %v1217 = vunpack.c.h.b16 %v199
    %v1218 = vunpack.c.l.b16 %v200
    %v1219 = vunpack.c.h.b16 %v200
    %v1220 = vunpack.c.l.b16 %v201
    %v1221 = vunpack.c.h.b16 %v201
    %v1222 = vunpack.c.l.b16 %v202
    %v1223 = vunpack.c.h.b16 %v202
    %v1224 = vunpack.c.l.b16 %v203
    %v1225 = vunpack.c.h.b16 %v203
    %v1226 = vunpack.c.l.b16 %v204
    %v1227 = vunpack.c.h.b16 %v204
    %v1228 = vunpack.c.l.b16 %v205
    %v1229 = vunpack.c.h.b16 %v205
    %v1230 = vunpack.c.l.b16 %v206
    %v1231 = vunpack.c.h.b16 %v206
    %v1232 = vunpack.c.l.b16 %v207
    %v1233 = vunpack.c.h.b16 %v207
    %v1234 = vunpack.c.l.b16 %v208
    %v1235 = vunpack.c.h.b16 %v208
    %v1236 = vunpack.c.l.b16 %v209
    %v1237 = vunpack.c.h.b16 %v209
    %v1238 = vunpack.c.l.b16 %v210
    %v1239 = vunpack.c.h.b16 %v210
    %v1240 = vunpack.c.l.b16 %v211
    %v1241 = vunpack.c.h.b16 %v211
    %v1242 = vunpack.c.l.b16 %v212
    %v1243 = vunpack.c.h.b16 %v212
    %v1244 = vunpack.c.l.b16 %v213
    %v1245 = vunpack.c.h.b16 %v213
    %v1246 = vunpack.c.l.b16 %v214
    %v1247 = vunpack.c.h.b16 %v214
    %v1248 = vunpack.c.l.b16 %v215
    %v1249 = vunpack.c.h.b16 %v215
    %v1250 = vunpack.c.l.b16 %v216
    %v1251 = vunpack.c.h.b16 %v216
    %v1252 = vunpack.c.l.b16 %v217
    %v1253 = vunpack.c.h.b16 %v217
    %v1254 = vunpack.c.l.b16 %v218
    %v1255 = vunpack.c.h.b16 %v218
    %v1256 = vunpack.c.l.b16 %v219
    %v1257 = vunpack.c.h.b16 %v219
    %v1258 = vunpack.c.l.b16 %v220
    %v1259 = vunpack.c.h.b16 %v220
    %v1260 = vunpack.c.l.b16 %v221
    %v1261 = vunpack.c.h.b16 %v221
    %v1262 = vunpack.c.l.b16 %v222
    %v1263 = vunpack.c.h.b16 %v222
    %v1264 = vunpack.c.l.b16 %v223
    %v1265 = vunpack.c.h.b16 %v223
    %v1266 = vunpack.c.l.b16 %v224
    %v1267 = vunpack.c.h.b16 %v224
    %v1268 = vunpack.c.l.b16 %v225
    %v1269 = vunpack.c.h.b16 %v225
    %v1270 = vunpack.c.l.b16 %v226
    %v1271 = vunpack.c.h.b16 %v226
    %v1272 = vunpack.c.l.b16 %v227
    %v1273 = vunpack.c.h.b16 %v227
    %v1274 = vunpack.c.l.b16 %v228
    %v1275 = vunpack.c.h.b16 %v228
    %v1276 = vunpack.c.l.b16 %v229
    %v1277 = vunpack.c.h.b16 %v229
    %v1278 = vunpack.c.l.b16 %v230
    %v1279 = vunpack.c.h.b16 %v230
    %v1280 = vunpack.c.l.b16 %v231
    %v1281 = vunpack.c.h.b16 %v231
    %v1282 = vunpack.c.l.b16 %v232
    %v1283 = vunpack.c.h.b16 %v232
    %v1284 = vunpack.c.l.b16 %v233
    %v1285 = vunpack.c.h.b16 %v233
    %v1286 = vunpack.c.l.b16 %v234
    %v1287 = vunpack.c.h.b16 %v234
    %v1288 = vunpack.c.l.b16 %v235
    %v1289 = vunpack.c.h.b16 %v235
    %v1290 = vunpack.c.l.b16 %v236
    %v1291 = vunpack.c.h.b16 %v236
    %v1292 = vunpack.c.l.b16 %v237
    %v1293 = vunpack.c.h.b16 %v237
    %v1294 = vunpack.c.l.b16 %v238
    %v1295 = vunpack.c.h.b16 %v238
    %v1296 = vunpack.c.l.b16 %v239
    %v1297 = vunpack.c.h.b16 %v239
    %v1298 = vunpack.c.l.b16 %v240
    %v1299 = vunpack.c.h.b16 %v240
    %v1300 = vunpack.c.l.b16 %v241
    %v1301 = vunpack.c.h.b16 %v241
    %v1302 = vunpack.c.l.b16 %v242
    %v1303 = vunpack.c.h.b16 %v242
    %v1304 = vunpack.c.l.b16 %v243
    %v1305 = vunpack.c.h.b16 %v243
    %v1306 = vunpack.c.l.b16 %v244
    %v1307 = vunpack.c.h.b16 %v244
    %v1308 = vunpack.c.l.b16 %v245
    %v1309 = vunpack.c.h.b16 %v245
    %v1310 = vunpack.c.l.b16 %v246
    %v1311 = vunpack.c.h.b16 %v246
    %v1312 = vunpack.c.l.b16 %v247
    %v1313 = vunpack.c.h.b16 %v247
    %v1314 = vunpack.c.l.b16 %v248
    %v1315 = vunpack.c.h.b16 %v248
    %v1316 = vunpack.c.l.b16 %v249
    %v1317 = vunpack.c.h.b16 %v249
    %v1318 = vunpack.c.l.b16 %v250
    %v1319 = vunpack.c.h.b16 %v250
    %v1320 = vunpack.c.l.b16 %v251
    %v1321 = vunpack.c.h.b16 %v251
    %v1322 = vunpack.c.l.b16 %v252
    %v1323 = vunpack.c.h.b16 %v252
    %v1324 = vunpack.c.l.b16 %v253
    %v1325 = vunpack.c.h.b16 %v253
    %v1326 = vunpack.c.l.b16 %v254
    %v1327 = vunpack.c.h.b16 %v254
    %v1328 = vunpack.c.l.b16 %v255
    %v1329 = vunpack.c.h.b16 %v255
    %v1330 = vunpack.c.l.b16 %v256
    %v1331 = vunpack.c.h.b16 %v256
    %v1332 = vunpack.c.l.b16 %v257
    %v1333 = vunpack.c.h.b16 %v257
    %v1334 = vunpack.c.l.b16 %v258
    %v1335 = vunpack.c.h.b16 %v258
    %v1336 = vunpack.c.l.b16 %v259
    %v1337 = vunpack.c.h.b16 %v259
    %v1338 = vunpack.c.l.b16 %v260
    %v1339 = vunpack.c.h.b16 %v260
    %v1340 = vunpack.c.l.b16 %v261
    %v1341 = vunpack.c.h.b16 %v261
    %v1342 = vunpack.c.l.b16 %v262
    %v1343 = vunpack.c.h.b16 %v262
    %v1344 = vunpack.c.l.b16 %v263
    %v1345 = vunpack.c.h.b16 %v263
    %v1346 = vunpack.c.l.b16 %v264
    %v1347 = vunpack.c.h.b16 %v264
    %v1348 = vunpack.c.l.b16 %v265
    %v1349 = vunpack.c.h.b16 %v265
    %v1350 = vunpack.c.l.b16 %v266
    %v1351 = vunpack.c.h.b16 %v266
    %v1352 = vunpack.c.l.b16 %v267
    %v1353 = vunpack.c.h.b16 %v267
    %v1354 = vunpack.c.l.b16 %v268
    %v1355 = vunpack.c.h.b16 %v268
    %v1356 = vunpack.c.l.b16 %v269
    %v1357 = vunpack.c.h.b16 %v269
    %v1358 = vunpack.c.l.b16 %v270
    %v1359 = vunpack.c.h.b16 %v270
    %v1360 = vunpack.c.l.b16 %v271
    %v1361 = vunpack.c.h.b16 %v271
    %v1362 = vunpack.c.l.b16 %v272
    %v1363 = vunpack.c.h.b16 %v272
    %v1364 = vunpack.c.l.b16 %v273
    %v1365 = vunpack.c.h.b16 %v273
    %v1366 = vunpack.c.l.b16 %v274
    %v1367 = vunpack.c.h.b16 %v274
    %v1368 = vunpack.c.l.b16 %v275
    %v1369 = vunpack.c.h.b16 %v275
    %v1370 = vunpack.c.l.b16 %v276
    %v1371 = vunpack.c.h.b16 %v276
    %v1372 = vunpack.c.l.b16 %v277
    %v1373 = vunpack.c.h.b16 %v277
    %v1374 = vunpack.c.l.b16 %v278
    %v1375 = vunpack.c.h.b16 %v278
    %v1376 = vunpack.c.l.b16 %v279
    %v1377 = vunpack.c.h.b16 %v279
    %v1378 = vunpack.c.l.b16 %v280
    %v1379 = vunpack.c.h.b16 %v280
    %v1380 = vunpack.c.l.b16 %v281
    %v1381 = vunpack.c.h.b16 %v281
    %v1382 = vunpack.c.l.b16 %v282
    %v1383 = vunpack.c.h.b16 %v282
    %v1384 = vunpack.c.l.b16 %v283
    %v1385 = vunpack.c.h.b16 %v283
    %v1386 = vunpack.c.l.b16 %v284
    %v1387 = vunpack.c.h.b16 %v284
    %v1388 = vunpack.c.l.b16 %v285
    %v1389 = vunpack.c.h.b16 %v285
    %v1390 = vunpack.c.l.b16 %v286
    %v1391 = vunpack.c.h.b16 %v286
    %v1392 = vunpack.c.l.b16 %v287
    %v1393 = vunpack.c.h.b16 %v287
    %v1394 = vunpack.c.l.b16 %v288
    %v1395 = vunpack.c.h.b16 %v288
    %v1396 = vunpack.c.l.b16 %v289
    %v1397 = vunpack.c.h.b16 %v289
    %v1398 = vunpack.c.l.b16 %v290
    %v1399 = vunpack.c.h.b16 %v290
    %v1400 = vunpack.c.l.b16 %v291
    %v1401 = vunpack.c.h.b16 %v291
    %v1402 = vunpack.c.l.b16 %v292
    %v1403 = vunpack.c.h.b16 %v292
    %v1404 = vunpack.c.l.b16 %v293
    %v1405 = vunpack.c.h.b16 %v293
    %v1406 = vunpack.c.l.b16 %v294
    %v1407 = vunpack.c.h.b16 %v294
    %v1408 = vunpack.c.l.b16 %v295
    %v1409 = vunpack.c.h.b16 %v295
    %v1410 = vunpack.c.l.b16 %v296
    %v1411 = vunpack.c.h.b16 %v296
    %v1412 = vunpack.c.l.b16 %v297
    %v1413 = vunpack.c.h.b16 %v297
    %v1414 = vunpack.c.l.b16 %v298
    %v1415 = vunpack.c.h.b16 %v298
    %v1416 = vunpack.c.l.b16 %v299
    %v1417 = vunpack.c.h.b16 %v299
    %v1418 = vunpack.c.l.b16 %v300
    %v1419 = vunpack.c.h.b16 %v300
    %v1420 = vunpack.c.l.b16 %v301
    %v1421 = vunpack.c.h.b16 %v301
    %v1422 = vunpack.c.l.b16 %v302
    %v1423 = vunpack.c.h.b16 %v302
    %v1424 = vunpack.c.l.b16 %v303
    %v1425 = vunpack.c.h.b16 %v303
    %v1426 = vunpack.c.l.b16 %v304
    %v1427 = vunpack.c.h.b16 %v304
    %v1428 = vunpack.c.l.b16 %v305
    %v1429 = vunpack.c.h.b16 %v305
    %v1430 = vunpack.c.l.b16 %v306
    %v1431 = vunpack.c.h.b16 %v306
    %v1432 = vunpack.c.l.b16 %v307
    %v1433 = vunpack.c.h.b16 %v307
    %v1434 = vunpack.c.l.b16 %v308
    %v1435 = vunpack.c.h.b16 %v308
    %v1436 = vunpack.c.l.b16 %v309
    %v1437 = vunpack.c.h.b16 %v309
    %v1438 = vunpack.c.l.b16 %v310
    %v1439 = vunpack.c.h.b16 %v310
    %v1440 = vunpack.c.l.b16 %v311
    %v1441 = vunpack.c.h.b16 %v311
    %v1442 = vunpack.c.l.b16 %v312
    %v1443 = vunpack.c.h.b16 %v312
    %v1444 = vunpack.c.l.b16 %v313
    %v1445 = vunpack.c.h.b16 %v313
    %v1446 = vunpack.c.l.b16 %v314
    %v1447 = vunpack.c.h.b16 %v314
    %v1448 = vunpack.c.l.b16 %v315
    %v1449 = vunpack.c.h.b16 %v315
    %v1450 = vunpack.c.l.b16 %v316
    %v1451 = vunpack.c.h.b16 %v316
    %v1452 = vunpack.c.l.b16 %v317
    %v1453 = vunpack.c.h.b16 %v317
    %v1454 = vunpack.c.l.b16 %v318
    %v1455 = vunpack.c.h.b16 %v318
    %v1456 = vunpack.c.l.b16 %v319
    %v1457 = vunpack.c.h.b16 %v319
    %v1458 = vunpack.c.l.b16 %v320
    %v1459 = vunpack.c.h.b16 %v320
    %v1460 = vunpack.c.l.b16 %v321
    %v1461 = vunpack.c.h.b16 %v321
    %v1462 = vunpack.c.l.b16 %v322
    %v1463 = vunpack.c.h.b16 %v322
    %v1464 = vunpack.c.l.b16 %v323
    %v1465 = vunpack.c.h.b16 %v323
    %v1466 = vunpack.c.l.b16 %v324
    %v1467 = vunpack.c.h.b16 %v324
    %v1468 = vunpack.c.l.b16 %v325
    %v1469 = vunpack.c.h.b16 %v325
    %v1470 = vunpack.c.l.b16 %v326
    %v1471 = vunpack.c.h.b16 %v326
    %v1472 = vunpack.c.l.b16 %v327
    %v1473 = vunpack.c.h.b16 %v327
    %v1474 = vunpack.c.l.b16 %v328
    %v1475 = vunpack.c.h.b16 %v328
    %v1476 = vunpack.c.l.b16 %v329
    %v1477 = vunpack.c.h.b16 %v329
    %v1478 = vunpack.c.l.b16 %v330
    %v1479 = vunpack.c.h.b16 %v330
    %v1480 = vunpack.c.l.b16 %v331
    %v1481 = vunpack.c.h.b16 %v331
    %v1482 = vunpack.c.l.b16 %v332
    %v1483 = vunpack.c.h.b16 %v332
    %v1484 = vunpack.c.l.b16 %v333
    %v1485 = vunpack.c.h.b16 %v333
    %v1486 = vunpack.c.l.b16 %v334
    %v1487 = vunpack.c.h.b16 %v334
    %v1488 = vunpack.c.l.b16 %v335
    %v1489 = vunpack.c.h.b16 %v335
    %v1490 = vunpack.c.l.b16 %v336
    %v1491 = vunpack.c.h.b16 %v336
    %v1492 = vunpack.c.l.b16 %v337
    %v1493 = vunpack.c.h.b16 %v337
    %v1494 = vunpack.c.l.b16 %v338
    %v1495 = vunpack.c.h.b16 %v338
    %v1496 = vunpack.c.l.b16 %v339
    %v1497 = vunpack.c.h.b16 %v339
    %v1498 = vunpack.c.l.b16 %v340
    %v1499 = vunpack.c.h.b16 %v340
    %v1500 = vunpack.c.l.b16 %v341
    %v1501 = vunpack.c.h.b16 %v341
    %v1502 = vunpack.c.l.b16 %v342
    %v1503 = vunpack.c.h.b16 %v342
    %v1504 = vunpack.c.l.b16 %v343
    %v1505 = vunpack.c.h.b16 %v343
    %v1506 = vunpack.c.l.b16 %v344
    %v1507 = vunpack.c.h.b16 %v344
    %v1508 = vunpack.c.l.b16 %v345
    %v1509 = vunpack.c.h.b16 %v345
    %v1510 = vunpack.c.l.b16 %v346
    %v1511 = vunpack.c.h.b16 %v346
    %v1512 = vunpack.c.l.b16 %v347
    %v1513 = vunpack.c.h.b16 %v347
    %v1514 = vunpack.c.l.b16 %v348
    %v1515 = vunpack.c.h.b16 %v348
    %v1516 = vunpack.c.l.b16 %v349
    %v1517 = vunpack.c.h.b16 %v349
    %v1518 = vunpack.c.l.b16 %v350
    %v1519 = vunpack.c.h.b16 %v350
    %v1520 = vunpack.c.l.b16 %v351
    %v1521 = vunpack.c.h.b16 %v351
    %v1522 = vunpack.c.l.b16 %v352
    %v1523 = vunpack.c.h.b16 %v352
    %v1524 = vunpack.c.l.b16 %v353
    %v1525 = vunpack.c.h.b16 %v353
    %v1526 = vunpack.c.l.b16 %v354
    %v1527 = vunpack.c.h.b16 %v354
    %v1528 = vunpack.c.l.b16 %v355
    %v1529 = vunpack.c.h.b16 %v355
    %v1530 = vunpack.c.l.b16 %v356
    %v1531 = vunpack.c.h.b16 %v356
    %v1532 = vunpack.c.l.b16 %v357
    %v1533 = vunpack.c.h.b16 %v357
    %v1534 = vunpack.c.l.b16 %v358
    %v1535 = vunpack.c.h.b16 %v358
    %v1536 = vunpack.c.l.b16 %v359
    %v1537 = vunpack.c.h.b16 %v359
    %v1538 = vunpack.c.l.b16 %v360
    %v1539 = vunpack.c.h.b16 %v360
    %v1540 = vunpack.c.l.b16 %v361
    %v1541 = vunpack.c.h.b16 %v361
    %v1542 = vunpack.c.l.b16 %v362
    %v1543 = vunpack.c.h.b16 %v362
    %v1544 = vunpack.c.l.b16 %v363
    %v1545 = vunpack.c.h.b16 %v363
    %v1546 = vunpack.c.l.b16 %v364
    %v1547 = vunpack.c.h.b16 %v364
    %v1548 = vunpack.c.l.b16 %v365
    %v1549 = vunpack.c.h.b16 %v365
    %v1550 = vunpack.c.l.b16 %v366
    %v1551 = vunpack.c.h.b16 %v366
    %v1552 = vunpack.c.l.b16 %v367
    %v1553 = vunpack.c.h.b16 %v367
    %v1554 = vunpack.c.l.b16 %v368
    %v1555 = vunpack.c.h.b16 %v368
    %v1556 = vunpack.c.l.b16 %v369
    %v1557 = vunpack.c.h.b16 %v369
    %v1558 = vpack.c.b16 %v1054, %v1046
    %v1559 = vpack.c.b16 %v1055, %v1047
    %v1560 = vpack.c.b16 %v1056, %v1048
    %v1561 = vpack.c.b16 %v1057, %v1049
    %v1562 = vpack.c.b16 %v1058, %v1050
    %v1563 = vpack.c.b16 %v1059, %v1051
    %v1564 = vpack.c.b16 %v1060, %v1052
    %v1565 = vpack.c.b16 %v1061, %v1053
    %v1566 = vpack.c.b16 %v1070, %v1062
    %v1567 = vpack.c.b16 %v1071, %v1063
    %v1568 = vpack.c.b16 %v1072, %v1064
    %v1569 = vpack.c.b16 %v1073, %v1065
    %v1570 = vpack.c.b16 %v1074, %v1066
    %v1571 = vpack.c.b16 %v1075, %v1067
    %v1572 = vpack.c.b16 %v1076, %v1068
    %v1573 = vpack.c.b16 %v1077, %v1069
    %v1574 = vpack.c.b16 %v1086, %v1078
    %v1575 = vpack.c.b16 %v1087, %v1079
    %v1576 = vpack.c.b16 %v1088, %v1080
    %v1577 = vpack.c.b16 %v1089, %v1081
    %v1578 = vpack.c.b16 %v1090, %v1082
    %v1579 = vpack.c.b16 %v1091, %v1083
    %v1580 = vpack.c.b16 %v1092, %v1084
    %v1581 = vpack.c.b16 %v1093, %v1085
    %v1582 = vpack.c.b16 %v1102, %v1094
    %v1583 = vpack.c.b16 %v1103, %v1095
    %v1584 = vpack.c.b16 %v1104, %v1096
    %v1585 = vpack.c.b16 %v1105, %v1097
    %v1586 = vpack.c.b16 %v1106, %v1098
    %v1587 = vpack.c.b16 %v1107, %v1099
    %v1588 = vpack.c.b16 %v1108, %v1100
    %v1589 = vpack.c.b16 %v1109, %v1101
    %v1590 = vpack.c.b16 %v1118, %v1110
    %v1591 = vpack.c.b16 %v1119, %v1111
    %v1592 = vpack.c.b16 %v1120, %v1112
    %v1593 = vpack.c.b16 %v1121, %v1113
    %v1594 = vpack.c.b16 %v1122, %v1114
    %v1595 = vpack.c.b16 %v1123, %v1115
    %v1596 = vpack.c.b16 %v1124, %v1116
    %v1597 = vpack.c.b16 %v1125, %v1117
    %v1598 = vpack.c.b16 %v1134, %v1126
    %v1599 = vpack.c.b16 %v1135, %v1127
    %v1600 = vpack.c.b16 %v1136, %v1128
    %v1601 = vpack.c.b16 %v1137, %v1129
    %v1602 = vpack.c.b16 %v1138, %v1130
    %v1603 = vpack.c.b16 %v1139, %v1131
    %v1604 = vpack.c.b16 %v1140, %v1132
    %v1605 = vpack.c.b16 %v1141, %v1133
    %v1606 = vpack.c.b16 %v1150, %v1142
    %v1607 = vpack.c.b16 %v1151, %v1143
    %v1608 = vpack.c.b16 %v1152, %v1144
    %v1609 = vpack.c.b16 %v1153, %v1145
    %v1610 = vpack.c.b16 %v1154, %v1146
    %v1611 = vpack.c.b16 %v1155, %v1147
    %v1612 = vpack.c.b16 %v1156, %v1148
    %v1613 = vpack.c.b16 %v1157, %v1149
    %v1614 = vpack.c.b16 %v1166, %v1158
    %v1615 = vpack.c.b16 %v1167, %v1159
    %v1616 = vpack.c.b16 %v1168, %v1160
    %v1617 = vpack.c.b16 %v1169, %v1161
    %v1618 = vpack.c.b16 %v1170, %v1162
    %v1619 = vpack.c.b16 %v1171, %v1163
    %v1620 = vpack.c.b16 %v1172, %v1164
    %v1621 = vpack.c.b16 %v1173, %v1165
    %v1622 = vpack.c.b16 %v1182, %v1174
    %v1623 = vpack.c.b16 %v1183, %v1175
    %v1624 = vpack.c.b16 %v1184, %v1176
    %v1625 = vpack.c.b16 %v1185, %v1177
    %v1626 = vpack.c.b16 %v1186, %v1178
    %v1627 = vpack.c.b16 %v1187, %v1179
    %v1628 = vpack.c.b16 %v1188, %v1180
    %v1629 = vpack.c.b16 %v1189, %v1181
    %v1630 = vpack.c.b16 %v1198, %v1190
    %v1631 = vpack.c.b16 %v1199, %v1191
    %v1632 = vpack.c.b16 %v1200, %v1192
    %v1633 = vpack.c.b16 %v1201, %v1193
    %v1634 = vpack.c.b16 %v1202, %v1194
    %v1635 = vpack.c.b16 %v1203, %v1195
    %v1636 = vpack.c.b16 %v1204, %v1196
    %v1637 = vpack.c.b16 %v1205, %v1197
    %v1638 = vpack.c.b16 %v1214, %v1206
    %v1639 = vpack.c.b16 %v1215, %v1207
    %v1640 = vpack.c.b16 %v1216, %v1208
    %v1641 = vpack.c.b16 %v1217, %v1209
    %v1642 = vpack.c.b16 %v1218, %v1210
    %v1643 = vpack.c.b16 %v1219, %v1211
    %v1644 = vpack.c.b16 %v1220, %v1212
    %v1645 = vpack.c.b16 %v1221, %v1213
    %v1646 = vpack.c.b16 %v1230, %v1222
    %v1647 = vpack.c.b16 %v1231, %v1223
    %v1648 = vpack.c.b16 %v1232, %v1224
    %v1649 = vpack.c.b16 %v1233, %v1225
    %v1650 = vpack.c.b16 %v1234, %v1226
    %v1651 = vpack.c.b16 %v1235, %v1227
    %v1652 = vpack.c.b16 %v1236, %v1228
    %v1653 = vpack.c.b16 %v1237, %v1229
    %v1654 = vpack.c.b16 %v1246, %v1238
    %v1655 = vpack.c.b16 %v1247, %v1239
    %v1656 = vpack.c.b16 %v1248, %v1240
    %v1657 = vpack.c.b16 %v1249, %v1241
    %v1658 = vpack.c.b16 %v1250, %v1242
    %v1659 = vpack.c.b16 %v1251, %v1243
    %v1660 = vpack.c.b16 %v1252, %v1244
    %v1661 = vpack.c.b16 %v1253, %v1245
    %v1662 = vpack.c.b16 %v1262, %v1254
    %v1663 = vpack.c.b16 %v1263, %v1255
    %v1664 = vpack.c.b16 %v1264, %v1256
    %v1665 = vpack.c.b16 %v1265, %v1257
    %v1666 = vpack.c.b16 %v1266, %v1258
    %v1667 = vpack.c.b16 %v1267, %v1259
    %v1668 = vpack.c.b16 %v1268, %v1260
    %v1669 = vpack.c.b16 %v1269, %v1261
    %v1670 = vpack.c.b16 %v1278, %v1270
    %v1671 = vpack.c.b16 %v1279, %v1271
    %v1672 = vpack.c.b16 %v1280, %v1272
    %v1673 = vpack.c.b16 %v1281, %v1273
    %v1674 = vpack.c.b16 %v1282, %v1274
    %v1675 = vpack.c.b16 %v1283, %v1275
    %v1676 = vpack.c.b16 %v1284, %v1276
    %v1677 = vpack.c.b16 %v1285, %v1277
    %v1678 = vpack.c.b16 %v1294, %v1286
    %v1679 = vpack.c.b16 %v1295, %v1287
    %v1680 = vpack.c.b16 %v1296, %v1288
    %v1681 = vpack.c.b16 %v1297, %v1289
    %v1682 = vpack.c.b16 %v1298, %v1290
    %v1683 = vpack.c.b16 %v1299, %v1291
    %v1684 = vpack.c.b16 %v1300, %v1292
    %v1685 = vpack.c.b16 %v1301, %v1293
    %v1686 = vpack.c.b16 %v1310, %v1302
    %v1687 = vpack.c.b16 %v1311, %v1303
    %v1688 = vpack.c.b16 %v1312, %v1304
    %v1689 = vpack.c.b16 %v1313, %v1305
    %v1690 = vpack.c.b16 %v1314, %v1306
    %v1691 = vpack.c.b16 %v1315, %v1307
    %v1692 = vpack.c.b16 %v1316, %v1308
    %v1693 = vpack.c.b16 %v1317, %v1309
    %v1694 = vpack.c.b16 %v1326, %v1318
    %v1695 = vpack.c.b16 %v1327, %v1319
    %v1696 = vpack.c.b16 %v1328, %v1320
    %v1697 = vpack.c.b16 %v1329, %v1321
    %v1698 = vpack.c.b16 %v1330, %v1322
    %v1699 = vpack.c.b16 %v1331, %v1323
    %v1700 = vpack.c.b16 %v1332, %v1324
    %v1701 = vpack.c.b16 %v1333, %v1325
    %v1702 = vpack.c.b16 %v1342, %v1334
    %v1703 = vpack.c.b16 %v1343, %v1335
    %v1704 = vpack.c.b16 %v1344, %v1336
    %v1705 = vpack.c.b16 %v1345, %v1337
    %v1706 = vpack.c.b16 %v1346, %v1338
    %v1707 = vpack.c.b16 %v1347, %v1339
    %v1708 = vpack.c.b16 %v1348, %v1340
    %v1709 = vpack.c.b16 %v1349, %v1341
    %v1710 = vpack.c.b16 %v1358, %v1350
    %v1711 = vpack.c.b16 %v1359, %v1351
    %v1712 = vpack.c.b16 %v1360, %v1352
    %v1713 = vpack.c.b16 %v1361, %v1353
    %v1714 = vpack.c.b16 %v1362, %v1354
    %v1715 = vpack.c.b16 %v1363, %v1355
    %v1716 = vpack.c.b16 %v1364, %v1356
    %v1717 = vpack.c.b16 %v1365, %v1357
    %v1718 = vpack.c.b16 %v1374, %v1366
    %v1719 = vpack.c.b16 %v1375, %v1367
    %v1720 = vpack.c.b16 %v1376, %v1368
    %v1721 = vpack.c.b16 %v1377, %v1369
    %v1722 = vpack.c.b16 %v1378, %v1370
    %v1723 = vpack.c.b16 %v1379, %v1371
    %v1724 = vpack.c.b16 %v1380, %v1372
    %v1725 = vpack.c.b16 %v1381, %v1373
    %v1726 = vpack.c.b16 %v1390, %v1382
    %v1727 = vpack.c.b16 %v1391, %v1383
    %v1728 = vpack.c.b16 %v1392, %v1384
    %v1729 = vpack.c.b16 %v1393, %v1385
    %v1730 = vpack.c.b16 %v1394, %v1386
    %v1731 = vpack.c.b16 %v1395, %v1387
    %v1732 = vpack.c.b16 %v1396, %v1388
    %v1733 = vpack.c.b16 %v1397, %v1389
    %v1734 = vpack.c.b16 %v1406, %v1398
    %v1735 = vpack.c.b16 %v1407, %v1399
    %v1736 = vpack.c.b16 %v1408, %v1400
    %v1737 = vpack.c.b16 %v1409, %v1401
    %v1738 = vpack.c.b16 %v1410, %v1402
    %v1739 = vpack.c.b16 %v1411, %v1403
    %v1740 = vpack.c.b16 %v1412, %v1404
    %v1741 = vpack.c.b16 %v1413, %v1405
    %v1742 = vpack.c.b16 %v1422, %v1414
    %v1743 = vpack.c.b16 %v1423, %v1415
    %v1744 = vpack.c.b16 %v1424, %v1416
    %v1745 = vpack.c.b16 %v1425, %v1417
    %v1746 = vpack.c.b16 %v1426, %v1418
    %v1747 = vpack.c.b16 %v1427, %v1419
    %v1748 = vpack.c.b16 %v1428, %v1420
    %v1749 = vpack.c.b16 %v1429, %v1421
    %v1750 = vpack.c.b16 %v1438, %v1430
    %v1751 = vpack.c.b16 %v1439, %v1431
    %v1752 = vpack.c.b16 %v1440, %v1432
    %v1753 = vpack.c.b16 %v1441, %v1433
    %v1754 = vpack.c.b16 %v1442, %v1434
    %v1755 = vpack.c.b16 %v1443, %v1435
    %v1756 = vpack.c.b16 %v1444, %v1436
    %v1757 = vpack.c.b16 %v1445, %v1437
    %v1758 = vpack.c.b16 %v1454, %v1446
    %v1759 = vpack.c.b16 %v1455, %v1447
    %v1760 = vpack.c.b16 %v1456, %v1448
    %v1761 = vpack.c.b16 %v1457, %v1449
    %v1762 = vpack.c.b16 %v1458, %v1450
    %v1763 = vpack.c.b16 %v1459, %v1451
    %v1764 = vpack.c.b16 %v1460, %v1452
    %v1765 = vpack.c.b16 %v1461, %v1453
    %v1766 = vpack.c.b16 %v1470, %v1462
    %v1767 = vpack.c.b16 %v1471, %v1463
    %v1768 = vpack.c.b16 %v1472, %v1464
    %v1769 = vpack.c.b16 %v1473, %v1465
    %v1770 = vpack.c.b16 %v1474, %v1466
    %v1771 = vpack.c.b16 %v1475, %v1467
    %v1772 = vpack.c.b16 %v1476, %v1468
    %v1773 = vpack.c.b16 %v1477, %v1469
    %v1774 = vpack.c.b16 %v1486, %v1478
    %v1775 = vpack.c.b16 %v1487, %v1479
    %v1776 = vpack.c.b16 %v1488, %v1480
    %v1777 = vpack.c.b16 %v1489, %v1481
    %v1778 = vpack.c.b16 %v1490, %v1482
    %v1779 = vpack.c.b16 %v1491, %v1483
    %v1780 = vpack.c.b16 %v1492, %v1484
    %v1781 = vpack.c.b16 %v1493, %v1485
    %v1782 = vpack.c.b16 %v1502, %v1494
    %v1783 = vpack.c.b16 %v1503, %v1495
    %v1784 = vpack.c.b16 %v1504, %v1496
    %v1785 = vpack.c.b16 %v1505, %v1497
    %v1786 = vpack.c.b16 %v1506, %v1498
    %v1787 = vpack.c.b16 %v1507, %v1499
    %v1788 = vpack.c.b16 %v1508, %v1500
    %v1789 = vpack.c.b16 %v1509, %v1501
    %v1790 = vpack.c.b16 %v1518, %v1510
    %v1791 = vpack.c.b16 %v1519, %v1511
    %v1792 = vpack.c.b16 %v1520, %v1512
    %v1793 = vpack.c.b16 %v1521, %v1513
    %v1794 = vpack.c.b16 %v1522, %v1514
    %v1795 = vpack.c.b16 %v1523, %v1515
    %v1796 = vpack.c.b16 %v1524, %v1516
    %v1797 = vpack.c.b16 %v1525, %v1517
    %v1798 = vpack.c.b16 %v1534, %v1526
    %v1799 = vpack.c.b16 %v1535, %v1527
    %v1800 = vpack.c.b16 %v1536, %v1528
    %v1801 = vpack.c.b16 %v1537, %v1529
    %v1802 = vpack.c.b16 %v1538, %v1530
    %v1803 = vpack.c.b16 %v1539, %v1531
    %v1804 = vpack.c.b16 %v1540, %v1532
    %v1805 = vpack.c.b16 %v1541, %v1533
    %v1806 = vpack.c.b16 %v1550, %v1542
    %v1807 = vpack.c.b16 %v1551, %v1543
    %v1808 = vpack.c.b16 %v1552, %v1544
    %v1809 = vpack.c.b16 %v1553, %v1545
    %v1810 = vpack.c.b16 %v1554, %v1546
    %v1811 = vpack.c.b16 %v1555, %v1547
    %v1812 = vpack.c.b16 %v1556, %v1548
    %v1813 = vpack.c.b16 %v1557, %v1549
    %2070 = vmatpush.bf16.msra.mxu0 %v1614
    %2071 = vmatpush.bf16.msra.mxu0 %v1606
    %2072 = vmatpush.bf16.msra.mxu0 %v1598
    %2073 = vmatpush.bf16.msra.mxu0 %v1590
    %2074 = vmatpush.bf16.msra.mxu0 %v1582
    %2075 = vmatpush.bf16.msra.mxu0 %v1574
    %2076 = vmatpush.bf16.msra.mxu0 %v1566
    %2077 = vmatpush.bf16.msra.mxu0 %v1558
    %2078 = vmatmul.bf16.gmra.mxu0 %v786
    %v2079 = vpop.f32.mrf.mxu0
    %v2080 = vadd.f32 0.0, %v2079
    %v2081 = vpop.f32.mrf.mxu0
    %2082 = vdwg.mxu0
    %2083 = vmatpush.bf16.msra.mxu0 %v1678
    %2084 = vmatpush.bf16.msra.mxu0 %v1670
    %2085 = vmatpush.bf16.msra.mxu0 %v1662
    %2086 = vmatpush.bf16.msra.mxu0 %v1654
    %2087 = vmatpush.bf16.msra.mxu0 %v1646
    %2088 = vmatpush.bf16.msra.mxu0 %v1638
    %2089 = vmatpush.bf16.msra.mxu0 %v1630
    %2090 = vmatpush.bf16.msra.mxu0 %v1622
    %2091 = vmatmul.bf16.gmra.mxu0 %v787
    %v2092 = vpop.f32.mrf.mxu0
    %v2093 = vadd.f32 %v2080, %v2092
    %v2094 = vpop.f32.mrf.mxu0
    %2095 = vdwg.mxu0
    %2096 = vmatpush.bf16.msra.mxu0 %v1742
    %2097 = vmatpush.bf16.msra.mxu0 %v1734
    %2098 = vmatpush.bf16.msra.mxu0 %v1726
    %2099 = vmatpush.bf16.msra.mxu0 %v1718
    %2100 = vmatpush.bf16.msra.mxu0 %v1710
    %2101 = vmatpush.bf16.msra.mxu0 %v1702
    %2102 = vmatpush.bf16.msra.mxu0 %v1694
    %2103 = vmatpush.bf16.msra.mxu0 %v1686
    %2104 = vmatmul.bf16.gmra.mxu0 %v788
    %v2105 = vpop.f32.mrf.mxu0
    %v2106 = vadd.f32 %v2093, %v2105
    %v2107 = vpop.f32.mrf.mxu0
    %2108 = vdwg.mxu0
    %2109 = vmatpush.bf16.msra.mxu0 %v1806
    %2110 = vmatpush.bf16.msra.mxu0 %v1798
    %2111 = vmatpush.bf16.msra.mxu0 %v1790
    %2112 = vmatpush.bf16.msra.mxu0 %v1782
    %2113 = vmatpush.bf16.msra.mxu0 %v1774
    %2114 = vmatpush.bf16.msra.mxu0 %v1766
    %2115 = vmatpush.bf16.msra.mxu0 %v1758
    %2116 = vmatpush.bf16.msra.mxu0 %v1750
    %2117 = vmatmul.bf16.gmra.mxu0 %v789
    %v2118 = vpop.f32.mrf.mxu0
    %v2119 = vadd.f32 %v2106, %v2118
    %v2120 = vpop.f32.mrf.mxu0
    %2121 = vdwg.mxu0
    %2122 = vmatpush.bf16.msra.mxu0 %v1615
    %2123 = vmatpush.bf16.msra.mxu0 %v1607
    %2124 = vmatpush.bf16.msra.mxu0 %v1599
    %2125 = vmatpush.bf16.msra.mxu0 %v1591
    %2126 = vmatpush.bf16.msra.mxu0 %v1583
    %2127 = vmatpush.bf16.msra.mxu0 %v1575
    %2128 = vmatpush.bf16.msra.mxu0 %v1567
    %2129 = vmatpush.bf16.msra.mxu0 %v1559
    %2130 = vmatmul.bf16.gmra.mxu0 %v786
    %v2131 = vpop.f32.mrf.mxu0
    %v2132 = vadd.f32 0.0, %v2131
    %v2133 = vpop.f32.mrf.mxu0
    %2134 = vdwg.mxu0
    %2135 = vmatpush.bf16.msra.mxu0 %v1679
    %2136 = vmatpush.bf16.msra.mxu0 %v1671
    %2137 = vmatpush.bf16.msra.mxu0 %v1663
    %2138 = vmatpush.bf16.msra.mxu0 %v1655
    %2139 = vmatpush.bf16.msra.mxu0 %v1647
    %2140 = vmatpush.bf16.msra.mxu0 %v1639
    %2141 = vmatpush.bf16.msra.mxu0 %v1631
    %2142 = vmatpush.bf16.msra.mxu0 %v1623
    %2143 = vmatmul.bf16.gmra.mxu0 %v787
    %v2144 = vpop.f32.mrf.mxu0
    %v2145 = vadd.f32 %v2132, %v2144
    %v2146 = vpop.f32.mrf.mxu0
    %2147 = vdwg.mxu0
    %2148 = vmatpush.bf16.msra.mxu0 %v1743
    %2149 = vmatpush.bf16.msra.mxu0 %v1735
    %2150 = vmatpush.bf16.msra.mxu0 %v1727
    %2151 = vmatpush.bf16.msra.mxu0 %v1719
    %2152 = vmatpush.bf16.msra.mxu0 %v1711
    %2153 = vmatpush.bf16.msra.mxu0 %v1703
    %2154 = vmatpush.bf16.msra.mxu0 %v1695
    %2155 = vmatpush.bf16.msra.mxu0 %v1687
    %2156 = vmatmul.bf16.gmra.mxu0 %v788
    %v2157 = vpop.f32.mrf.mxu0
    %v2158 = vadd.f32 %v2145, %v2157
    %v2159 = vpop.f32.mrf.mxu0
    %2160 = vdwg.mxu0
    %2161 = vmatpush.bf16.msra.mxu0 %v1807
    %2162 = vmatpush.bf16.msra.mxu0 %v1799
    %2163 = vmatpush.bf16.msra.mxu0 %v1791
    %2164 = vmatpush.bf16.msra.mxu0 %v1783
    %2165 = vmatpush.bf16.msra.mxu0 %v1775
    %2166 = vmatpush.bf16.msra.mxu0 %v1767
    %2167 = vmatpush.bf16.msra.mxu0 %v1759
    %2168 = vmatpush.bf16.msra.mxu0 %v1751
    %2169 = vmatmul.bf16.gmra.mxu0 %v789
    %v2170 = vpop.f32.mrf.mxu0
    %v2171 = vadd.f32 %v2158, %v2170
    %v2172 = vpop.f32.mrf.mxu0
    %2173 = vdwg.mxu0
    %2174 = vmatpush.bf16.msra.mxu0 %v1616
    %2175 = vmatpush.bf16.msra.mxu0 %v1608
    %2176 = vmatpush.bf16.msra.mxu0 %v1600
    %2177 = vmatpush.bf16.msra.mxu0 %v1592
    %2178 = vmatpush.bf16.msra.mxu0 %v1584
    %2179 = vmatpush.bf16.msra.mxu0 %v1576
    %2180 = vmatpush.bf16.msra.mxu0 %v1568
    %2181 = vmatpush.bf16.msra.mxu0 %v1560
    %2182 = vmatmul.bf16.gmra.mxu0 %v786
    %v2183 = vpop.f32.mrf.mxu0
    %v2184 = vadd.f32 0.0, %v2183
    %v2185 = vpop.f32.mrf.mxu0
    %2186 = vdwg.mxu0
    %2187 = vmatpush.bf16.msra.mxu0 %v1680
    %2188 = vmatpush.bf16.msra.mxu0 %v1672
    %2189 = vmatpush.bf16.msra.mxu0 %v1664
    %2190 = vmatpush.bf16.msra.mxu0 %v1656
    %2191 = vmatpush.bf16.msra.mxu0 %v1648
    %2192 = vmatpush.bf16.msra.mxu0 %v1640
    %2193 = vmatpush.bf16.msra.mxu0 %v1632
    %2194 = vmatpush.bf16.msra.mxu0 %v1624
    %2195 = vmatmul.bf16.gmra.mxu0 %v787
    %v2196 = vpop.f32.mrf.mxu0
    %v2197 = vadd.f32 %v2184, %v2196
    %v2198 = vpop.f32.mrf.mxu0
    %2199 = vdwg.mxu0
    %2200 = vmatpush.bf16.msra.mxu0 %v1744
    %2201 = vmatpush.bf16.msra.mxu0 %v1736
    %2202 = vmatpush.bf16.msra.mxu0 %v1728
    %2203 = vmatpush.bf16.msra.mxu0 %v1720
    %2204 = vmatpush.bf16.msra.mxu0 %v1712
    %2205 = vmatpush.bf16.msra.mxu0 %v1704
    %2206 = vmatpush.bf16.msra.mxu0 %v1696
    %2207 = vmatpush.bf16.msra.mxu0 %v1688
    %2208 = vmatmul.bf16.gmra.mxu0 %v788
    %v2209 = vpop.f32.mrf.mxu0
    %v2210 = vadd.f32 %v2197, %v2209
    %v2211 = vpop.f32.mrf.mxu0
    %2212 = vdwg.mxu0
    %2213 = vmatpush.bf16.msra.mxu0 %v1808
    %2214 = vmatpush.bf16.msra.mxu0 %v1800
    %2215 = vmatpush.bf16.msra.mxu0 %v1792
    %2216 = vmatpush.bf16.msra.mxu0 %v1784
    %2217 = vmatpush.bf16.msra.mxu0 %v1776
    %2218 = vmatpush.bf16.msra.mxu0 %v1768
    %2219 = vmatpush.bf16.msra.mxu0 %v1760
    %2220 = vmatpush.bf16.msra.mxu0 %v1752
    %2221 = vmatmul.bf16.gmra.mxu0 %v789
    %v2222 = vpop.f32.mrf.mxu0
    %v2223 = vadd.f32 %v2210, %v2222
    %v2224 = vpop.f32.mrf.mxu0
    %2225 = vdwg.mxu0
    %2226 = vmatpush.bf16.msra.mxu0 %v1617
    %2227 = vmatpush.bf16.msra.mxu0 %v1609
    %2228 = vmatpush.bf16.msra.mxu0 %v1601
    %2229 = vmatpush.bf16.msra.mxu0 %v1593
    %2230 = vmatpush.bf16.msra.mxu0 %v1585
    %2231 = vmatpush.bf16.msra.mxu0 %v1577
    %2232 = vmatpush.bf16.msra.mxu0 %v1569
    %2233 = vmatpush.bf16.msra.mxu0 %v1561
    %2234 = vmatmul.bf16.gmra.mxu0 %v786
    %v2235 = vpop.f32.mrf.mxu0
    %v2236 = vadd.f32 0.0, %v2235
    %v2237 = vpop.f32.mrf.mxu0
    %2238 = vdwg.mxu0
    %2239 = vmatpush.bf16.msra.mxu0 %v1681
    %2240 = vmatpush.bf16.msra.mxu0 %v1673
    %2241 = vmatpush.bf16.msra.mxu0 %v1665
    %2242 = vmatpush.bf16.msra.mxu0 %v1657
    %2243 = vmatpush.bf16.msra.mxu0 %v1649
    %2244 = vmatpush.bf16.msra.mxu0 %v1641
    %2245 = vmatpush.bf16.msra.mxu0 %v1633
    %2246 = vmatpush.bf16.msra.mxu0 %v1625
    %2247 = vmatmul.bf16.gmra.mxu0 %v787
    %v2248 = vpop.f32.mrf.mxu0
    %v2249 = vadd.f32 %v2236, %v2248
    %v2250 = vpop.f32.mrf.mxu0
    %2251 = vdwg.mxu0
    %2252 = vmatpush.bf16.msra.mxu0 %v1745
    %2253 = vmatpush.bf16.msra.mxu0 %v1737
    %2254 = vmatpush.bf16.msra.mxu0 %v1729
    %2255 = vmatpush.bf16.msra.mxu0 %v1721
    %2256 = vmatpush.bf16.msra.mxu0 %v1713
    %2257 = vmatpush.bf16.msra.mxu0 %v1705
    %2258 = vmatpush.bf16.msra.mxu0 %v1697
    %2259 = vmatpush.bf16.msra.mxu0 %v1689
    %2260 = vmatmul.bf16.gmra.mxu0 %v788
    %v2261 = vpop.f32.mrf.mxu0
    %v2262 = vadd.f32 %v2249, %v2261
    %v2263 = vpop.f32.mrf.mxu0
    %2264 = vdwg.mxu0
    %2265 = vmatpush.bf16.msra.mxu0 %v1809
    %2266 = vmatpush.bf16.msra.mxu0 %v1801
    %2267 = vmatpush.bf16.msra.mxu0 %v1793
    %2268 = vmatpush.bf16.msra.mxu0 %v1785
    %2269 = vmatpush.bf16.msra.mxu0 %v1777
    %2270 = vmatpush.bf16.msra.mxu0 %v1769
    %2271 = vmatpush.bf16.msra.mxu0 %v1761
    %2272 = vmatpush.bf16.msra.mxu0 %v1753
    %2273 = vmatmul.bf16.gmra.mxu0 %v789
    %v2274 = vpop.f32.mrf.mxu0
    %v2275 = vadd.f32 %v2262, %v2274
    %v2276 = vpop.f32.mrf.mxu0
    %2277 = vdwg.mxu0
    %2278 = vmatpush.bf16.msra.mxu0 %v1618
    %2279 = vmatpush.bf16.msra.mxu0 %v1610
    %2280 = vmatpush.bf16.msra.mxu0 %v1602
    %2281 = vmatpush.bf16.msra.mxu0 %v1594
    %2282 = vmatpush.bf16.msra.mxu0 %v1586
    %2283 = vmatpush.bf16.msra.mxu0 %v1578
    %2284 = vmatpush.bf16.msra.mxu0 %v1570
    %2285 = vmatpush.bf16.msra.mxu0 %v1562
    %2286 = vmatmul.bf16.gmra.mxu0 %v786
    %v2287 = vpop.f32.mrf.mxu0
    %v2288 = vadd.f32 0.0, %v2287
    %v2289 = vpop.f32.mrf.mxu0
    %2290 = vdwg.mxu0
    %2291 = vmatpush.bf16.msra.mxu0 %v1682
    %2292 = vmatpush.bf16.msra.mxu0 %v1674
    %2293 = vmatpush.bf16.msra.mxu0 %v1666
    %2294 = vmatpush.bf16.msra.mxu0 %v1658
    %2295 = vmatpush.bf16.msra.mxu0 %v1650
    %2296 = vmatpush.bf16.msra.mxu0 %v1642
    %2297 = vmatpush.bf16.msra.mxu0 %v1634
    %2298 = vmatpush.bf16.msra.mxu0 %v1626
    %2299 = vmatmul.bf16.gmra.mxu0 %v787
    %v2300 = vpop.f32.mrf.mxu0
    %v2301 = vadd.f32 %v2288, %v2300
    %v2302 = vpop.f32.mrf.mxu0
    %2303 = vdwg.mxu0
    %2304 = vmatpush.bf16.msra.mxu0 %v1746
    %2305 = vmatpush.bf16.msra.mxu0 %v1738
    %2306 = vmatpush.bf16.msra.mxu0 %v1730
    %2307 = vmatpush.bf16.msra.mxu0 %v1722
    %2308 = vmatpush.bf16.msra.mxu0 %v1714
    %2309 = vmatpush.bf16.msra.mxu0 %v1706
    %2310 = vmatpush.bf16.msra.mxu0 %v1698
    %2311 = vmatpush.bf16.msra.mxu0 %v1690
    %2312 = vmatmul.bf16.gmra.mxu0 %v788
    %v2313 = vpop.f32.mrf.mxu0
    %v2314 = vadd.f32 %v2301, %v2313
    %v2315 = vpop.f32.mrf.mxu0
    %2316 = vdwg.mxu0
    %2317 = vmatpush.bf16.msra.mxu0 %v1810
    %2318 = vmatpush.bf16.msra.mxu0 %v1802
    %2319 = vmatpush.bf16.msra.mxu0 %v1794
    %2320 = vmatpush.bf16.msra.mxu0 %v1786
    %2321 = vmatpush.bf16.msra.mxu0 %v1778
    %2322 = vmatpush.bf16.msra.mxu0 %v1770
    %2323 = vmatpush.bf16.msra.mxu0 %v1762
    %2324 = vmatpush.bf16.msra.mxu0 %v1754
    %2325 = vmatmul.bf16.gmra.mxu0 %v789
    %v2326 = vpop.f32.mrf.mxu0
    %v2327 = vadd.f32 %v2314, %v2326
    %v2328 = vpop.f32.mrf.mxu0
    %2329 = vdwg.mxu0
    %2330 = vmatpush.bf16.msra.mxu0 %v1619
    %2331 = vmatpush.bf16.msra.mxu0 %v1611
    %2332 = vmatpush.bf16.msra.mxu0 %v1603
    %2333 = vmatpush.bf16.msra.mxu0 %v1595
    %2334 = vmatpush.bf16.msra.mxu0 %v1587
    %2335 = vmatpush.bf16.msra.mxu0 %v1579
    %2336 = vmatpush.bf16.msra.mxu0 %v1571
    %2337 = vmatpush.bf16.msra.mxu0 %v1563
    %2338 = vmatmul.bf16.gmra.mxu0 %v786
    %v2339 = vpop.f32.mrf.mxu0
    %v2340 = vadd.f32 0.0, %v2339
    %v2341 = vpop.f32.mrf.mxu0
    %2342 = vdwg.mxu0
    %2343 = vmatpush.bf16.msra.mxu0 %v1683
    %2344 = vmatpush.bf16.msra.mxu0 %v1675
    %2345 = vmatpush.bf16.msra.mxu0 %v1667
    %2346 = vmatpush.bf16.msra.mxu0 %v1659
    %2347 = vmatpush.bf16.msra.mxu0 %v1651
    %2348 = vmatpush.bf16.msra.mxu0 %v1643
    %2349 = vmatpush.bf16.msra.mxu0 %v1635
    %2350 = vmatpush.bf16.msra.mxu0 %v1627
    %2351 = vmatmul.bf16.gmra.mxu0 %v787
    %v2352 = vpop.f32.mrf.mxu0
    %v2353 = vadd.f32 %v2340, %v2352
    %v2354 = vpop.f32.mrf.mxu0
    %2355 = vdwg.mxu0
    %2356 = vmatpush.bf16.msra.mxu0 %v1747
    %2357 = vmatpush.bf16.msra.mxu0 %v1739
    %2358 = vmatpush.bf16.msra.mxu0 %v1731
    %2359 = vmatpush.bf16.msra.mxu0 %v1723
    %2360 = vmatpush.bf16.msra.mxu0 %v1715
    %2361 = vmatpush.bf16.msra.mxu0 %v1707
    %2362 = vmatpush.bf16.msra.mxu0 %v1699
    %2363 = vmatpush.bf16.msra.mxu0 %v1691
    %2364 = vmatmul.bf16.gmra.mxu0 %v788
    %v2365 = vpop.f32.mrf.mxu0
    %v2366 = vadd.f32 %v2353, %v2365
    %v2367 = vpop.f32.mrf.mxu0
    %2368 = vdwg.mxu0
    %2369 = vmatpush.bf16.msra.mxu0 %v1811
    %2370 = vmatpush.bf16.msra.mxu0 %v1803
    %2371 = vmatpush.bf16.msra.mxu0 %v1795
    %2372 = vmatpush.bf16.msra.mxu0 %v1787
    %2373 = vmatpush.bf16.msra.mxu0 %v1779
    %2374 = vmatpush.bf16.msra.mxu0 %v1771
    %2375 = vmatpush.bf16.msra.mxu0 %v1763
    %2376 = vmatpush.bf16.msra.mxu0 %v1755
    %2377 = vmatmul.bf16.gmra.mxu0 %v789
    %v2378 = vpop.f32.mrf.mxu0
    %v2379 = vadd.f32 %v2366, %v2378
    %v2380 = vpop.f32.mrf.mxu0
    %2381 = vdwg.mxu0
    %2382 = vmatpush.bf16.msra.mxu0 %v1620
    %2383 = vmatpush.bf16.msra.mxu0 %v1612
    %2384 = vmatpush.bf16.msra.mxu0 %v1604
    %2385 = vmatpush.bf16.msra.mxu0 %v1596
    %2386 = vmatpush.bf16.msra.mxu0 %v1588
    %2387 = vmatpush.bf16.msra.mxu0 %v1580
    %2388 = vmatpush.bf16.msra.mxu0 %v1572
    %2389 = vmatpush.bf16.msra.mxu0 %v1564
    %2390 = vmatmul.bf16.gmra.mxu0 %v786
    %v2391 = vpop.f32.mrf.mxu0
    %v2392 = vadd.f32 0.0, %v2391
    %v2393 = vpop.f32.mrf.mxu0
    %2394 = vdwg.mxu0
    %2395 = vmatpush.bf16.msra.mxu0 %v1684
    %2396 = vmatpush.bf16.msra.mxu0 %v1676
    %2397 = vmatpush.bf16.msra.mxu0 %v1668
    %2398 = vmatpush.bf16.msra.mxu0 %v1660
    %2399 = vmatpush.bf16.msra.mxu0 %v1652
    %2400 = vmatpush.bf16.msra.mxu0 %v1644
    %2401 = vmatpush.bf16.msra.mxu0 %v1636
    %2402 = vmatpush.bf16.msra.mxu0 %v1628
    %2403 = vmatmul.bf16.gmra.mxu0 %v787
    %v2404 = vpop.f32.mrf.mxu0
    %v2405 = vadd.f32 %v2392, %v2404
    %v2406 = vpop.f32.mrf.mxu0
    %2407 = vdwg.mxu0
    %2408 = vmatpush.bf16.msra.mxu0 %v1748
    %2409 = vmatpush.bf16.msra.mxu0 %v1740
    %2410 = vmatpush.bf16.msra.mxu0 %v1732
    %2411 = vmatpush.bf16.msra.mxu0 %v1724
    %2412 = vmatpush.bf16.msra.mxu0 %v1716
    %2413 = vmatpush.bf16.msra.mxu0 %v1708
    %2414 = vmatpush.bf16.msra.mxu0 %v1700
    %2415 = vmatpush.bf16.msra.mxu0 %v1692
    %2416 = vmatmul.bf16.gmra.mxu0 %v788
    %v2417 = vpop.f32.mrf.mxu0
    %v2418 = vadd.f32 %v2405, %v2417
    %v2419 = vpop.f32.mrf.mxu0
    %2420 = vdwg.mxu0
    %2421 = vmatpush.bf16.msra.mxu0 %v1812
    %2422 = vmatpush.bf16.msra.mxu0 %v1804
    %2423 = vmatpush.bf16.msra.mxu0 %v1796
    %2424 = vmatpush.bf16.msra.mxu0 %v1788
    %2425 = vmatpush.bf16.msra.mxu0 %v1780
    %2426 = vmatpush.bf16.msra.mxu0 %v1772
    %2427 = vmatpush.bf16.msra.mxu0 %v1764
    %2428 = vmatpush.bf16.msra.mxu0 %v1756
    %2429 = vmatmul.bf16.gmra.mxu0 %v789
    %v2430 = vpop.f32.mrf.mxu0
    %v2431 = vadd.f32 %v2418, %v2430
    %v2432 = vpop.f32.mrf.mxu0
    %2433 = vdwg.mxu0
    %2434 = vmatpush.bf16.msra.mxu0 %v1621
    %2435 = vmatpush.bf16.msra.mxu0 %v1613
    %2436 = vmatpush.bf16.msra.mxu0 %v1605
    %2437 = vmatpush.bf16.msra.mxu0 %v1597
    %2438 = vmatpush.bf16.msra.mxu0 %v1589
    %2439 = vmatpush.bf16.msra.mxu0 %v1581
    %2440 = vmatpush.bf16.msra.mxu0 %v1573
    %2441 = vmatpush.bf16.msra.mxu0 %v1565
    %2442 = vmatmul.bf16.gmra.mxu0 %v786
    %v2443 = vpop.f32.mrf.mxu0
    %v2444 = vadd.f32 0.0, %v2443
    %v2445 = vpop.f32.mrf.mxu0
    %2446 = vdwg.mxu0
    %2447 = vmatpush.bf16.msra.mxu0 %v1685
    %2448 = vmatpush.bf16.msra.mxu0 %v1677
    %2449 = vmatpush.bf16.msra.mxu0 %v1669
    %2450 = vmatpush.bf16.msra.mxu0 %v1661
    %2451 = vmatpush.bf16.msra.mxu0 %v1653
    %2452 = vmatpush.bf16.msra.mxu0 %v1645
    %2453 = vmatpush.bf16.msra.mxu0 %v1637
    %2454 = vmatpush.bf16.msra.mxu0 %v1629
    %2455 = vmatmul.bf16.gmra.mxu0 %v787
    %v2456 = vpop.f32.mrf.mxu0
    %v2457 = vadd.f32 %v2444, %v2456
    %v2458 = vpop.f32.mrf.mxu0
    %2459 = vdwg.mxu0
    %2460 = vmatpush.bf16.msra.mxu0 %v1749
    %2461 = vmatpush.bf16.msra.mxu0 %v1741
    %2462 = vmatpush.bf16.msra.mxu0 %v1733
    %2463 = vmatpush.bf16.msra.mxu0 %v1725
    %2464 = vmatpush.bf16.msra.mxu0 %v1717
    %2465 = vmatpush.bf16.msra.mxu0 %v1709
    %2466 = vmatpush.bf16.msra.mxu0 %v1701
    %2467 = vmatpush.bf16.msra.mxu0 %v1693
    %2468 = vmatmul.bf16.gmra.mxu0 %v788
    %v2469 = vpop.f32.mrf.mxu0
    %v2470 = vadd.f32 %v2457, %v2469
    %v2471 = vpop.f32.mrf.mxu0
    %2472 = vdwg.mxu0
    %2473 = vmatpush.bf16.msra.mxu0 %v1813
    %2474 = vmatpush.bf16.msra.mxu0 %v1805
    %2475 = vmatpush.bf16.msra.mxu0 %v1797
    %2476 = vmatpush.bf16.msra.mxu0 %v1789
    %2477 = vmatpush.bf16.msra.mxu0 %v1781
    %2478 = vmatpush.bf16.msra.mxu0 %v1773
    %2479 = vmatpush.bf16.msra.mxu0 %v1765
    %2480 = vmatpush.bf16.msra.mxu0 %v1757
    %2481 = vmatmul.bf16.gmra.mxu0 %v789
    %v2482 = vpop.f32.mrf.mxu0
    %v2483 = vadd.f32 %v2470, %v2482
    %v2484 = vpop.f32.mrf.mxu0
    %2485 = vdwg.mxu0
    %v2486 = vpack.c.bf16 %v2119, %v2119
    %v2487 = vpack.c.bf16 %v2171, %v2171
    %v2488 = vpack.c.bf16 %v2223, %v2223
    %v2489 = vpack.c.bf16 %v2275, %v2275
    %v2490 = vpack.c.bf16 %v2327, %v2327
    %v2491 = vpack.c.bf16 %v2379, %v2379
    %v2492 = vpack.c.bf16 %v2431, %v2431
    %v2493 = vpack.c.bf16 %v2483, %v2483
    %v2622 = vunpack.c.l.b16 %v370
    %v2623 = vunpack.c.l.b16 %v371
    %v2624 = vunpack.c.l.b16 %v372
    %v2625 = vunpack.c.l.b16 %v373
    %v2626 = vunpack.c.l.b16 %v374
    %v2627 = vunpack.c.l.b16 %v375
    %v2628 = vunpack.c.l.b16 %v376
    %v2629 = vunpack.c.l.b16 %v377
    %v2630 = vunpack.c.l.b16 %v378
    %v2631 = vunpack.c.l.b16 %v379
    %v2632 = vunpack.c.l.b16 %v380
    %v2633 = vunpack.c.l.b16 %v381
    %v2634 = vunpack.c.l.b16 %v382
    %v2635 = vunpack.c.l.b16 %v383
    %v2636 = vunpack.c.l.b16 %v384
    %v2637 = vunpack.c.l.b16 %v385
    %v2638 = vunpack.c.l.b16 %v386
    %v2639 = vunpack.c.l.b16 %v387
    %v2640 = vunpack.c.l.b16 %v388
    %v2641 = vunpack.c.l.b16 %v389
    %v2642 = vunpack.c.l.b16 %v390
    %v2643 = vunpack.c.l.b16 %v391
    %v2644 = vunpack.c.l.b16 %v392
    %v2645 = vunpack.c.l.b16 %v393
    %v2646 = vunpack.c.l.b16 %v394
    %v2647 = vunpack.c.l.b16 %v395
    %v2648 = vunpack.c.l.b16 %v396
    %v2649 = vunpack.c.l.b16 %v397
    %v2650 = vunpack.c.l.b16 %v398
    %v2651 = vunpack.c.l.b16 %v399
    %v2652 = vunpack.c.l.b16 %v400
    %v2653 = vunpack.c.l.b16 %v401
    %v2654 = vunpack.c.l.b16 %v402
    %v2655 = vunpack.c.l.b16 %v403
    %v2656 = vunpack.c.l.b16 %v404
    %v2657 = vunpack.c.l.b16 %v405
    %v2658 = vunpack.c.l.b16 %v406
    %v2659 = vunpack.c.l.b16 %v407
    %v2660 = vunpack.c.l.b16 %v408
    %v2661 = vunpack.c.l.b16 %v409
    %v2662 = vunpack.c.l.b16 %v410
    %v2663 = vunpack.c.l.b16 %v411
    %v2664 = vunpack.c.l.b16 %v412
    %v2665 = vunpack.c.l.b16 %v413
    %v2666 = vunpack.c.l.b16 %v414
    %v2667 = vunpack.c.l.b16 %v415
    %v2668 = vunpack.c.l.b16 %v416
    %v2669 = vunpack.c.l.b16 %v417
    %v2670 = vunpack.c.l.b16 %v418
    %v2671 = vunpack.c.l.b16 %v419
    %v2672 = vunpack.c.l.b16 %v420
    %v2673 = vunpack.c.l.b16 %v421
    %v2674 = vunpack.c.l.b16 %v422
    %v2675 = vunpack.c.l.b16 %v423
    %v2676 = vunpack.c.l.b16 %v424
    %v2677 = vunpack.c.l.b16 %v425
    %v2678 = vunpack.c.l.b16 %v426
    %v2679 = vunpack.c.l.b16 %v427
    %v2680 = vunpack.c.l.b16 %v428
    %v2681 = vunpack.c.l.b16 %v429
    %v2682 = vunpack.c.l.b16 %v430
    %v2683 = vunpack.c.l.b16 %v431
    %v2684 = vunpack.c.l.b16 %v432
    %v2685 = vunpack.c.l.b16 %v433
    %v2686 = vunpack.c.l.b16 %v434
    %v2687 = vunpack.c.l.b16 %v435
    %v2688 = vunpack.c.l.b16 %v436
    %v2689 = vunpack.c.l.b16 %v437
    %v2690 = vunpack.c.l.b16 %v438
    %v2691 = vunpack.c.l.b16 %v439
    %v2692 = vunpack.c.l.b16 %v440
    %v2693 = vunpack.c.l.b16 %v441
    %v2694 = vunpack.c.l.b16 %v442
    %v2695 = vunpack.c.l.b16 %v443
    %v2696 = vunpack.c.l.b16 %v444
    %v2697 = vunpack.c.l.b16 %v445
    %v2698 = vunpack.c.l.b16 %v446
    %v2699 = vunpack.c.l.b16 %v447
    %v2700 = vunpack.c.l.b16 %v448
    %v2701 = vunpack.c.l.b16 %v449
    %v2702 = vunpack.c.l.b16 %v450
    %v2703 = vunpack.c.l.b16 %v451
    %v2704 = vunpack.c.l.b16 %v452
    %v2705 = vunpack.c.l.b16 %v453
    %v2706 = vunpack.c.l.b16 %v454
    %v2707 = vunpack.c.l.b16 %v455
    %v2708 = vunpack.c.l.b16 %v456
    %v2709 = vunpack.c.l.b16 %v457
    %v2710 = vunpack.c.l.b16 %v458
    %v2711 = vunpack.c.l.b16 %v459
    %v2712 = vunpack.c.l.b16 %v460
    %v2713 = vunpack.c.l.b16 %v461
    %v2714 = vunpack.c.l.b16 %v462
    %v2715 = vunpack.c.l.b16 %v463
    %v2716 = vunpack.c.l.b16 %v464
    %v2717 = vunpack.c.l.b16 %v465
    %v2718 = vunpack.c.l.b16 %v466
    %v2719 = vunpack.c.l.b16 %v467
    %v2720 = vunpack.c.l.b16 %v468
    %v2721 = vunpack.c.l.b16 %v469
    %v2722 = vunpack.c.l.b16 %v470
    %v2723 = vunpack.c.l.b16 %v471
    %v2724 = vunpack.c.l.b16 %v472
    %v2725 = vunpack.c.l.b16 %v473
    %v2726 = vunpack.c.l.b16 %v474
    %v2727 = vunpack.c.l.b16 %v475
    %v2728 = vunpack.c.l.b16 %v476
    %v2729 = vunpack.c.l.b16 %v477
    %v2730 = vunpack.c.l.b16 %v478
    %v2731 = vunpack.c.l.b16 %v479
    %v2732 = vunpack.c.l.b16 %v480
    %v2733 = vunpack.c.l.b16 %v481
    %v2734 = vunpack.c.l.b16 %v482
    %v2735 = vunpack.c.l.b16 %v483
    %v2736 = vunpack.c.l.b16 %v484
    %v2737 = vunpack.c.l.b16 %v485
    %v2738 = vunpack.c.l.b16 %v486
    %v2739 = vunpack.c.l.b16 %v487
    %v2740 = vunpack.c.l.b16 %v488
    %v2741 = vunpack.c.l.b16 %v489
    %v2742 = vunpack.c.l.b16 %v490
    %v2743 = vunpack.c.l.b16 %v491
    %v2744 = vunpack.c.l.b16 %v492
    %v2745 = vunpack.c.l.b16 %v493
    %v2746 = vunpack.c.l.b16 %v494
    %v2747 = vunpack.c.l.b16 %v495
    %v2748 = vunpack.c.l.b16 %v496
    %v2749 = vunpack.c.l.b16 %v497
    %v2750 = vpack.c.b16 %v2623, %v2622
    %v2751 = vpack.c.b16 %v2625, %v2624
    %v2752 = vpack.c.b16 %v2627, %v2626
    %v2753 = vpack.c.b16 %v2629, %v2628
    %v2754 = vpack.c.b16 %v2631, %v2630
    %v2755 = vpack.c.b16 %v2633, %v2632
    %v2756 = vpack.c.b16 %v2635, %v2634
    %v2757 = vpack.c.b16 %v2637, %v2636
    %v2758 = vpack.c.b16 %v2639, %v2638
    %v2759 = vpack.c.b16 %v2641, %v2640
    %v2760 = vpack.c.b16 %v2643, %v2642
    %v2761 = vpack.c.b16 %v2645, %v2644
    %v2762 = vpack.c.b16 %v2647, %v2646
    %v2763 = vpack.c.b16 %v2649, %v2648
    %v2764 = vpack.c.b16 %v2651, %v2650
    %v2765 = vpack.c.b16 %v2653, %v2652
    %v2766 = vpack.c.b16 %v2655, %v2654
    %v2767 = vpack.c.b16 %v2657, %v2656
    %v2768 = vpack.c.b16 %v2659, %v2658
    %v2769 = vpack.c.b16 %v2661, %v2660
    %v2770 = vpack.c.b16 %v2663, %v2662
    %v2771 = vpack.c.b16 %v2665, %v2664
    %v2772 = vpack.c.b16 %v2667, %v2666
    %v2773 = vpack.c.b16 %v2669, %v2668
    %v2774 = vpack.c.b16 %v2671, %v2670
    %v2775 = vpack.c.b16 %v2673, %v2672
    %v2776 = vpack.c.b16 %v2675, %v2674
    %v2777 = vpack.c.b16 %v2677, %v2676
    %v2778 = vpack.c.b16 %v2679, %v2678
    %v2779 = vpack.c.b16 %v2681, %v2680
    %v2780 = vpack.c.b16 %v2683, %v2682
    %v2781 = vpack.c.b16 %v2685, %v2684
    %v2782 = vpack.c.b16 %v2687, %v2686
    %v2783 = vpack.c.b16 %v2689, %v2688
    %v2784 = vpack.c.b16 %v2691, %v2690
    %v2785 = vpack.c.b16 %v2693, %v2692
    %v2786 = vpack.c.b16 %v2695, %v2694
    %v2787 = vpack.c.b16 %v2697, %v2696
    %v2788 = vpack.c.b16 %v2699, %v2698
    %v2789 = vpack.c.b16 %v2701, %v2700
    %v2790 = vpack.c.b16 %v2703, %v2702
    %v2791 = vpack.c.b16 %v2705, %v2704
    %v2792 = vpack.c.b16 %v2707, %v2706
    %v2793 = vpack.c.b16 %v2709, %v2708
    %v2794 = vpack.c.b16 %v2711, %v2710
    %v2795 = vpack.c.b16 %v2713, %v2712
    %v2796 = vpack.c.b16 %v2715, %v2714
    %v2797 = vpack.c.b16 %v2717, %v2716
    %v2798 = vpack.c.b16 %v2719, %v2718
    %v2799 = vpack.c.b16 %v2721, %v2720
    %v2800 = vpack.c.b16 %v2723, %v2722
    %v2801 = vpack.c.b16 %v2725, %v2724
    %v2802 = vpack.c.b16 %v2727, %v2726
    %v2803 = vpack.c.b16 %v2729, %v2728
    %v2804 = vpack.c.b16 %v2731, %v2730
    %v2805 = vpack.c.b16 %v2733, %v2732
    %v2806 = vpack.c.b16 %v2735, %v2734
    %v2807 = vpack.c.b16 %v2737, %v2736
    %v2808 = vpack.c.b16 %v2739, %v2738
    %v2809 = vpack.c.b16 %v2741, %v2740
    %v2810 = vpack.c.b16 %v2743, %v2742
    %v2811 = vpack.c.b16 %v2745, %v2744
    %v2812 = vpack.c.b16 %v2747, %v2746
    %v2813 = vpack.c.b16 %v2749, %v2748
    %2878 = vmatpush.bf16.msra.mxu0 %v2757
    %2879 = vmatpush.bf16.msra.mxu0 %v2756
    %2880 = vmatpush.bf16.msra.mxu0 %v2755
    %2881 = vmatpush.bf16.msra.mxu0 %v2754
    %2882 = vmatpush.bf16.msra.mxu0 %v2753
    %2883 = vmatpush.bf16.msra.mxu0 %v2752
    %2884 = vmatpush.bf16.msra.mxu0 %v2751
    %2885 = vmatpush.bf16.msra.mxu0 %v2750
    %2886 = vmatmul.bf16.gmra.mxu0 %v2486
    %v2887 = vpop.f32.mrf.mxu0
    %v2888 = vadd.f32 0.0, %v2887
    %v2889 = vpop.f32.mrf.mxu0
    %2890 = vdwg.mxu0
    %2891 = vmatpush.bf16.msra.mxu0 %v2765
    %2892 = vmatpush.bf16.msra.mxu0 %v2764
    %2893 = vmatpush.bf16.msra.mxu0 %v2763
    %2894 = vmatpush.bf16.msra.mxu0 %v2762
    %2895 = vmatpush.bf16.msra.mxu0 %v2761
    %2896 = vmatpush.bf16.msra.mxu0 %v2760
    %2897 = vmatpush.bf16.msra.mxu0 %v2759
    %2898 = vmatpush.bf16.msra.mxu0 %v2758
    %2899 = vmatmul.bf16.gmra.mxu0 %v2487
    %v2900 = vpop.f32.mrf.mxu0
    %v2901 = vadd.f32 %v2888, %v2900
    %v2902 = vpop.f32.mrf.mxu0
    %2903 = vdwg.mxu0
    %2904 = vmatpush.bf16.msra.mxu0 %v2773
    %2905 = vmatpush.bf16.msra.mxu0 %v2772
    %2906 = vmatpush.bf16.msra.mxu0 %v2771
    %2907 = vmatpush.bf16.msra.mxu0 %v2770
    %2908 = vmatpush.bf16.msra.mxu0 %v2769
    %2909 = vmatpush.bf16.msra.mxu0 %v2768
    %2910 = vmatpush.bf16.msra.mxu0 %v2767
    %2911 = vmatpush.bf16.msra.mxu0 %v2766
    %2912 = vmatmul.bf16.gmra.mxu0 %v2488
    %v2913 = vpop.f32.mrf.mxu0
    %v2914 = vadd.f32 %v2901, %v2913
    %v2915 = vpop.f32.mrf.mxu0
    %2916 = vdwg.mxu0
    %2917 = vmatpush.bf16.msra.mxu0 %v2781
    %2918 = vmatpush.bf16.msra.mxu0 %v2780
    %2919 = vmatpush.bf16.msra.mxu0 %v2779
    %2920 = vmatpush.bf16.msra.mxu0 %v2778
    %2921 = vmatpush.bf16.msra.mxu0 %v2777
    %2922 = vmatpush.bf16.msra.mxu0 %v2776
    %2923 = vmatpush.bf16.msra.mxu0 %v2775
    %2924 = vmatpush.bf16.msra.mxu0 %v2774
    %2925 = vmatmul.bf16.gmra.mxu0 %v2489
    %v2926 = vpop.f32.mrf.mxu0
    %v2927 = vadd.f32 %v2914, %v2926
    %v2928 = vpop.f32.mrf.mxu0
    %2929 = vdwg.mxu0
    %2930 = vmatpush.bf16.msra.mxu0 %v2789
    %2931 = vmatpush.bf16.msra.mxu0 %v2788
    %2932 = vmatpush.bf16.msra.mxu0 %v2787
    %2933 = vmatpush.bf16.msra.mxu0 %v2786
    %2934 = vmatpush.bf16.msra.mxu0 %v2785
    %2935 = vmatpush.bf16.msra.mxu0 %v2784
    %2936 = vmatpush.bf16.msra.mxu0 %v2783
    %2937 = vmatpush.bf16.msra.mxu0 %v2782
    %2938 = vmatmul.bf16.gmra.mxu0 %v2490
    %v2939 = vpop.f32.mrf.mxu0
    %v2940 = vadd.f32 %v2927, %v2939
    %v2941 = vpop.f32.mrf.mxu0
    %2942 = vdwg.mxu0
    %2943 = vmatpush.bf16.msra.mxu0 %v2797
    %2944 = vmatpush.bf16.msra.mxu0 %v2796
    %2945 = vmatpush.bf16.msra.mxu0 %v2795
    %2946 = vmatpush.bf16.msra.mxu0 %v2794
    %2947 = vmatpush.bf16.msra.mxu0 %v2793
    %2948 = vmatpush.bf16.msra.mxu0 %v2792
    %2949 = vmatpush.bf16.msra.mxu0 %v2791
    %2950 = vmatpush.bf16.msra.mxu0 %v2790
    %2951 = vmatmul.bf16.gmra.mxu0 %v2491
    %v2952 = vpop.f32.mrf.mxu0
    %v2953 = vadd.f32 %v2940, %v2952
    %v2954 = vpop.f32.mrf.mxu0
    %2955 = vdwg.mxu0
    %2956 = vmatpush.bf16.msra.mxu0 %v2805
    %2957 = vmatpush.bf16.msra.mxu0 %v2804
    %2958 = vmatpush.bf16.msra.mxu0 %v2803
    %2959 = vmatpush.bf16.msra.mxu0 %v2802
    %2960 = vmatpush.bf16.msra.mxu0 %v2801
    %2961 = vmatpush.bf16.msra.mxu0 %v2800
    %2962 = vmatpush.bf16.msra.mxu0 %v2799
    %2963 = vmatpush.bf16.msra.mxu0 %v2798
    %2964 = vmatmul.bf16.gmra.mxu0 %v2492
    %v2965 = vpop.f32.mrf.mxu0
    %v2966 = vadd.f32 %v2953, %v2965
    %v2967 = vpop.f32.mrf.mxu0
    %2968 = vdwg.mxu0
    %2969 = vmatpush.bf16.msra.mxu0 %v2813
    %2970 = vmatpush.bf16.msra.mxu0 %v2812
    %2971 = vmatpush.bf16.msra.mxu0 %v2811
    %2972 = vmatpush.bf16.msra.mxu0 %v2810
    %2973 = vmatpush.bf16.msra.mxu0 %v2809
    %2974 = vmatpush.bf16.msra.mxu0 %v2808
    %2975 = vmatpush.bf16.msra.mxu0 %v2807
    %2976 = vmatpush.bf16.msra.mxu0 %v2806
    %2977 = vmatmul.bf16.gmra.mxu0 %v2493
    %v2978 = vpop.f32.mrf.mxu0
    %v2979 = vadd.f32 %v2966, %v2978
    %v2980 = vpop.f32.mrf.mxu0
    %2981 = vdwg.mxu0
    %v2982 = vunpack.c.l.bf16 %v498
    %v2983 = vunpack.c.l.bf16 %v499
    %v2984 = vunpack.c.l.bf16 %v500
    %v2985 = vunpack.c.l.bf16 %v501
    %v2986 = vunpack.c.l.bf16 %v502
    %v2987 = vunpack.c.l.bf16 %v503
    %v2988 = vunpack.c.l.bf16 %v504
    %v2989 = vunpack.c.l.bf16 %v505
    %v2990 = vunpack.c.l.bf16 %v506
    %v2991 = vunpack.c.l.bf16 %v507
    %v2992 = vunpack.c.l.bf16 %v508
    %v2993 = vunpack.c.l.bf16 %v509
    %v2994 = vunpack.c.l.bf16 %v510
    %v2995 = vunpack.c.l.bf16 %v511
    %v2996 = vunpack.c.l.bf16 %v512
    %v2997 = vunpack.c.l.bf16 %v513
    %v2998 = vunpack.c.l.bf16 %v514
    %v2999 = vunpack.c.l.bf16 %v515
    %v3000 = vunpack.c.l.bf16 %v516
    %v3001 = vunpack.c.l.bf16 %v517
    %v3002 = vunpack.c.l.bf16 %v518
    %v3003 = vunpack.c.l.bf16 %v519
    %v3004 = vunpack.c.l.bf16 %v520
    %v3005 = vunpack.c.l.bf16 %v521
    %v3006 = vunpack.c.l.bf16 %v522
    %v3007 = vunpack.c.l.bf16 %v523
    %v3008 = vunpack.c.l.bf16 %v524
    %v3009 = vunpack.c.l.bf16 %v525
    %v3010 = vunpack.c.l.bf16 %v526
    %v3011 = vunpack.c.l.bf16 %v527
    %v3012 = vunpack.c.l.bf16 %v528
    %v3013 = vunpack.c.l.bf16 %v529
    %3014 = vmatpush.msra.mxu0 %v2997
    %3015 = vmatpush.msra.mxu0 %v2996
    %3016 = vmatpush.msra.mxu0 %v2995
    %3017 = vmatpush.msra.mxu0 %v2994
    %3018 = vmatpush.msra.mxu0 %v2993
    %3019 = vmatpush.msra.mxu0 %v2992
    %3020 = vmatpush.msra.mxu0 %v2991
    %3021 = vmatpush.msra.mxu0 %v2990
    %3022 = vmatpush.msra.mxu0 %v2989
    %3023 = vmatpush.msra.mxu0 %v2988
    %3024 = vmatpush.msra.mxu0 %v2987
    %3025 = vmatpush.msra.mxu0 %v2986
    %3026 = vmatpush.msra.mxu0 %v2985
    %3027 = vmatpush.msra.mxu0 %v2984
    %3028 = vmatpush.msra.mxu0 %v2983
    %3029 = vmatpush.msra.mxu0 %v2982
    %3030 = vmatmul.f32.gmra.mxu0 %v112
    %v3031 = vpop.f32.mrf.mxu0
    %v3032 = vadd.f32 0.0, %v3031
    %3033 = vdwg.mxu0
    %3034 = vmatpush.msra.mxu0 %v3013
    %3035 = vmatpush.msra.mxu0 %v3012
    %3036 = vmatpush.msra.mxu0 %v3011
    %3037 = vmatpush.msra.mxu0 %v3010
    %3038 = vmatpush.msra.mxu0 %v3009
    %3039 = vmatpush.msra.mxu0 %v3008
    %3040 = vmatpush.msra.mxu0 %v3007
    %3041 = vmatpush.msra.mxu0 %v3006
    %3042 = vmatpush.msra.mxu0 %v3005
    %3043 = vmatpush.msra.mxu0 %v3004
    %3044 = vmatpush.msra.mxu0 %v3003
    %3045 = vmatpush.msra.mxu0 %v3002
    %3046 = vmatpush.msra.mxu0 %v3001
    %3047 = vmatpush.msra.mxu0 %v3000
    %3048 = vmatpush.msra.mxu0 %v2999
    %3049 = vmatpush.msra.mxu0 %v2998
    %3050 = vmatmul.f32.gmra.mxu0 %v113
    %v3051 = vpop.f32.mrf.mxu0
    %v3052 = vadd.f32 %v3032, %v3051
    %3053 = vdwg.mxu0
    %3054 = vmatpush.xpose.msra.mxu0 0.0
    %3055 = vmatpush.xpose.msra.mxu0 0.0
    %3056 = vmatpush.xpose.msra.mxu0 0.0
    %3057 = vmatpush.xpose.msra.mxu0 0.0
    %3058 = vmatpush.xpose.msra.mxu0 0.0
    %3059 = vmatpush.xpose.msra.mxu0 0.0
    %3060 = vmatpush.xpose.msra.mxu0 0.0
    %3061 = vmatpush.xpose.msra.mxu0 0.0
    %3062 = vmatpush.xpose.msra.mxu0 0.0
    %3063 = vmatpush.xpose.msra.mxu0 0.0
    %3064 = vmatpush.xpose.msra.mxu0 0.0
    %3065 = vmatpush.xpose.msra.mxu0 0.0
    %3066 = vmatpush.xpose.msra.mxu0 0.0
    %3067 = vmatpush.xpose.msra.mxu0 0.0
    %3068 = vmatpush.xpose.msra.mxu0 0.0
    %3069 = vmatpush.xpose.msra.mxu0 %v3052
    %3070 = vmatmul.f32.gmra.mxu0 %v2979
    %v3071 = vpop.f32.mrf.mxu0
    %v3072 = vadd.f32 0.0, %v3071
    %3073 = vdwg.mxu0
    %v3074 = vmul.f32 %v3072, 0.088388346
    %vm3075 = vcmask 64512
    %v3076 = vsel %vm3075, %v3074, -inf
    %3077 = vmax.xlane.f32.xlu0 %v3076
    %v3078 = vpop.xlane.xlu0 %3077
    %v3079 = vsub.f32 %v3074, %v3078
    %v3080 = vmul.f32 %v3079, 1.442695
    %v3081 = vpow.pop %v3080
    %v3082 = vsel %vm3075, %v3081, 0.0
    %3083 = vadd.xlane.f32.xlu0 %v3082
    %v3084 = vpop.xlane.xlu0 %3083
    %v3085 = vrcp.pop %v3084
    %v3086 = vmul.f32 %v3084, %v3085
    %v3087 = vsub.f32 1.0, %v3086
    %v3088 = vmul.f32 %v3085, %v3087
    %v3089 = vadd.f32 %v3085, %v3088
    %vm3090 = vweird.f32 %v3084
    %vm3091 = vweird.f32 %v3085
    %vm3092 = vmor %vm3090, %vm3091
    %v3093 = vsel %vm3092, %v3085, %v3089
    %v3094 = vand.u32 2147483647, %v3084
    %vm3095 = vcmp.eq.f32.partialorder %v3094, 8.507059e+37
    %v3096 = vand.u32 %v3084, 2147483648
    %v3097 = vor.u32 1.1754944e-38, %v3096
    %v3098 = vsel %vm3095, %v3097, %v3093
    %v3099 = vmul.f32 %v3081, %v3098
    %v3101 = vsel %vm3075, %v3099, 0
    %3103 = vmatpush.msra.mxu0 0.0
    %3104 = vmatpush.msra.mxu0 0.0
    %3105 = vmatpush.msra.mxu0 0.0
    %3106 = vmatpush.msra.mxu0 0.0
    %3107 = vmatpush.msra.mxu0 0.0
    %3108 = vmatpush.msra.mxu0 0.0
    %3109 = vmatpush.msra.mxu0 0.0
    %3110 = vmatpush.msra.mxu0 0.0
    %3111 = vmatpush.msra.mxu0 0.0
    %3112 = vmatpush.msra.mxu0 0.0
    %3113 = vmatpush.msra.mxu0 0.0
    %3114 = vmatpush.msra.mxu0 0.0
    %3115 = vmatpush.msra.mxu0 0.0
    %3116 = vmatpush.msra.mxu0 0.0
    %3117 = vmatpush.msra.mxu0 0.0
    %3118 = vmatpush.msra.mxu0 %v3052
    %3119 = vmatmul.f32.gmra.mxu0 %v3101
    %v3120 = vpop.f32.mrf.mxu0
    %v3121 = vadd.f32 0.0, %v3120
    %3122 = vdwg.mxu0
    %v3123 = vpack.c.bf16 %v3121, %v3121
    %v3252 = vunpack.c.l.b16 %v530
    %v3253 = vunpack.c.h.b16 %v530
    %v3254 = vunpack.c.l.b16 %v531
    %v3255 = vunpack.c.h.b16 %v531
    %v3256 = vunpack.c.l.b16 %v532
    %v3257 = vunpack.c.h.b16 %v532
    %v3258 = vunpack.c.l.b16 %v533
    %v3259 = vunpack.c.h.b16 %v533
    %v3260 = vunpack.c.l.b16 %v534
    %v3261 = vunpack.c.h.b16 %v534
    %v3262 = vunpack.c.l.b16 %v535
    %v3263 = vunpack.c.h.b16 %v535
    %v3264 = vunpack.c.l.b16 %v536
    %v3265 = vunpack.c.h.b16 %v536
    %v3266 = vunpack.c.l.b16 %v537
    %v3267 = vunpack.c.h.b16 %v537
    %v3268 = vunpack.c.l.b16 %v538
    %v3269 = vunpack.c.h.b16 %v538
    %v3270 = vunpack.c.l.b16 %v539
    %v3271 = vunpack.c.h.b16 %v539
    %v3272 = vunpack.c.l.b16 %v540
    %v3273 = vunpack.c.h.b16 %v540
    %v3274 = vunpack.c.l.b16 %v541
    %v3275 = vunpack.c.h.b16 %v541
    %v3276 = vunpack.c.l.b16 %v542
    %v3277 = vunpack.c.h.b16 %v542
    %v3278 = vunpack.c.l.b16 %v543
    %v3279 = vunpack.c.h.b16 %v543
    %v3280 = vunpack.c.l.b16 %v544
    %v3281 = vunpack.c.h.b16 %v544
    %v3282 = vunpack.c.l.b16 %v545
    %v3283 = vunpack.c.h.b16 %v545
    %v3284 = vunpack.c.l.b16 %v546
    %v3285 = vunpack.c.h.b16 %v546
    %v3286 = vunpack.c.l.b16 %v547
    %v3287 = vunpack.c.h.b16 %v547
    %v3288 = vunpack.c.l.b16 %v548
    %v3289 = vunpack.c.h.b16 %v548
    %v3290 = vunpack.c.l.b16 %v549
    %v3291 = vunpack.c.h.b16 %v549
    %v3292 = vunpack.c.l.b16 %v550
    %v3293 = vunpack.c.h.b16 %v550
    %v3294 = vunpack.c.l.b16 %v551
    %v3295 = vunpack.c.h.b16 %v551
    %v3296 = vunpack.c.l.b16 %v552
    %v3297 = vunpack.c.h.b16 %v552
    %v3298 = vunpack.c.l.b16 %v553
    %v3299 = vunpack.c.h.b16 %v553
    %v3300 = vunpack.c.l.b16 %v554
    %v3301 = vunpack.c.h.b16 %v554
    %v3302 = vunpack.c.l.b16 %v555
    %v3303 = vunpack.c.h.b16 %v555
    %v3304 = vunpack.c.l.b16 %v556
    %v3305 = vunpack.c.h.b16 %v556
    %v3306 = vunpack.c.l.b16 %v557
    %v3307 = vunpack.c.h.b16 %v557
    %v3308 = vunpack.c.l.b16 %v558
    %v3309 = vunpack.c.h.b16 %v558
    %v3310 = vunpack.c.l.b16 %v559
    %v3311 = vunpack.c.h.b16 %v559
    %v3312 = vunpack.c.l.b16 %v560
    %v3313 = vunpack.c.h.b16 %v560
    %v3314 = vunpack.c.l.b16 %v561
    %v3315 = vunpack.c.h.b16 %v561
    %v3316 = vunpack.c.l.b16 %v562
    %v3317 = vunpack.c.h.b16 %v562
    %v3318 = vunpack.c.l.b16 %v563
    %v3319 = vunpack.c.h.b16 %v563
    %v3320 = vunpack.c.l.b16 %v564
    %v3321 = vunpack.c.h.b16 %v564
    %v3322 = vunpack.c.l.b16 %v565
    %v3323 = vunpack.c.h.b16 %v565
    %v3324 = vunpack.c.l.b16 %v566
    %v3325 = vunpack.c.h.b16 %v566
    %v3326 = vunpack.c.l.b16 %v567
    %v3327 = vunpack.c.h.b16 %v567
    %v3328 = vunpack.c.l.b16 %v568
    %v3329 = vunpack.c.h.b16 %v568
    %v3330 = vunpack.c.l.b16 %v569
    %v3331 = vunpack.c.h.b16 %v569
    %v3332 = vunpack.c.l.b16 %v570
    %v3333 = vunpack.c.h.b16 %v570
    %v3334 = vunpack.c.l.b16 %v571
    %v3335 = vunpack.c.h.b16 %v571
    %v3336 = vunpack.c.l.b16 %v572
    %v3337 = vunpack.c.h.b16 %v572
    %v3338 = vunpack.c.l.b16 %v573
    %v3339 = vunpack.c.h.b16 %v573
    %v3340 = vunpack.c.l.b16 %v574
    %v3341 = vunpack.c.h.b16 %v574
    %v3342 = vunpack.c.l.b16 %v575
    %v3343 = vunpack.c.h.b16 %v575
    %v3344 = vunpack.c.l.b16 %v576
    %v3345 = vunpack.c.h.b16 %v576
    %v3346 = vunpack.c.l.b16 %v577
    %v3347 = vunpack.c.h.b16 %v577
    %v3348 = vunpack.c.l.b16 %v578
    %v3349 = vunpack.c.h.b16 %v578
    %v3350 = vunpack.c.l.b16 %v579
    %v3351 = vunpack.c.h.b16 %v579
    %v3352 = vunpack.c.l.b16 %v580
    %v3353 = vunpack.c.h.b16 %v580
    %v3354 = vunpack.c.l.b16 %v581
    %v3355 = vunpack.c.h.b16 %v581
    %v3356 = vunpack.c.l.b16 %v582
    %v3357 = vunpack.c.h.b16 %v582
    %v3358 = vunpack.c.l.b16 %v583
    %v3359 = vunpack.c.h.b16 %v583
    %v3360 = vunpack.c.l.b16 %v584
    %v3361 = vunpack.c.h.b16 %v584
    %v3362 = vunpack.c.l.b16 %v585
    %v3363 = vunpack.c.h.b16 %v585
    %v3364 = vunpack.c.l.b16 %v586
    %v3365 = vunpack.c.h.b16 %v586
    %v3366 = vunpack.c.l.b16 %v587
    %v3367 = vunpack.c.h.b16 %v587
    %v3368 = vunpack.c.l.b16 %v588
    %v3369 = vunpack.c.h.b16 %v588
    %v3370 = vunpack.c.l.b16 %v589
    %v3371 = vunpack.c.h.b16 %v589
    %v3372 = vunpack.c.l.b16 %v590
    %v3373 = vunpack.c.h.b16 %v590
    %v3374 = vunpack.c.l.b16 %v591
    %v3375 = vunpack.c.h.b16 %v591
    %v3376 = vunpack.c.l.b16 %v592
    %v3377 = vunpack.c.h.b16 %v592
    %v3378 = vunpack.c.l.b16 %v593
    %v3379 = vunpack.c.h.b16 %v593
    %v3380 = vunpack.c.l.b16 %v594
    %v3381 = vunpack.c.h.b16 %v594
    %v3382 = vunpack.c.l.b16 %v595
    %v3383 = vunpack.c.h.b16 %v595
    %v3384 = vunpack.c.l.b16 %v596
    %v3385 = vunpack.c.h.b16 %v596
    %v3386 = vunpack.c.l.b16 %v597
    %v3387 = vunpack.c.h.b16 %v597
    %v3388 = vunpack.c.l.b16 %v598
    %v3389 = vunpack.c.h.b16 %v598
    %v3390 = vunpack.c.l.b16 %v599
    %v3391 = vunpack.c.h.b16 %v599
    %v3392 = vunpack.c.l.b16 %v600
    %v3393 = vunpack.c.h.b16 %v600
    %v3394 = vunpack.c.l.b16 %v601
    %v3395 = vunpack.c.h.b16 %v601
    %v3396 = vunpack.c.l.b16 %v602
    %v3397 = vunpack.c.h.b16 %v602
    %v3398 = vunpack.c.l.b16 %v603
    %v3399 = vunpack.c.h.b16 %v603
    %v3400 = vunpack.c.l.b16 %v604
    %v3401 = vunpack.c.h.b16 %v604
    %v3402 = vunpack.c.l.b16 %v605
    %v3403 = vunpack.c.h.b16 %v605
    %v3404 = vunpack.c.l.b16 %v606
    %v3405 = vunpack.c.h.b16 %v606
    %v3406 = vunpack.c.l.b16 %v607
    %v3407 = vunpack.c.h.b16 %v607
    %v3408 = vunpack.c.l.b16 %v608
    %v3409 = vunpack.c.h.b16 %v608
    %v3410 = vunpack.c.l.b16 %v609
    %v3411 = vunpack.c.h.b16 %v609
    %v3412 = vunpack.c.l.b16 %v610
    %v3413 = vunpack.c.h.b16 %v610
    %v3414 = vunpack.c.l.b16 %v611
    %v3415 = vunpack.c.h.b16 %v611
    %v3416 = vunpack.c.l.b16 %v612
    %v3417 = vunpack.c.h.b16 %v612
    %v3418 = vunpack.c.l.b16 %v613
    %v3419 = vunpack.c.h.b16 %v613
    %v3420 = vunpack.c.l.b16 %v614
    %v3421 = vunpack.c.h.b16 %v614
    %v3422 = vunpack.c.l.b16 %v615
    %v3423 = vunpack.c.h.b16 %v615
    %v3424 = vunpack.c.l.b16 %v616
    %v3425 = vunpack.c.h.b16 %v616
    %v3426 = vunpack.c.l.b16 %v617
    %v3427 = vunpack.c.h.b16 %v617
    %v3428 = vunpack.c.l.b16 %v618
    %v3429 = vunpack.c.h.b16 %v618
    %v3430 = vunpack.c.l.b16 %v619
    %v3431 = vunpack.c.h.b16 %v619
    %v3432 = vunpack.c.l.b16 %v620
    %v3433 = vunpack.c.h.b16 %v620
    %v3434 = vunpack.c.l.b16 %v621
    %v3435 = vunpack.c.h.b16 %v621
    %v3436 = vunpack.c.l.b16 %v622
    %v3437 = vunpack.c.h.b16 %v622
    %v3438 = vunpack.c.l.b16 %v623
    %v3439 = vunpack.c.h.b16 %v623
    %v3440 = vunpack.c.l.b16 %v624
    %v3441 = vunpack.c.h.b16 %v624
    %v3442 = vunpack.c.l.b16 %v625
    %v3443 = vunpack.c.h.b16 %v625
    %v3444 = vunpack.c.l.b16 %v626
    %v3445 = vunpack.c.h.b16 %v626
    %v3446 = vunpack.c.l.b16 %v627
    %v3447 = vunpack.c.h.b16 %v627
    %v3448 = vunpack.c.l.b16 %v628
    %v3449 = vunpack.c.h.b16 %v628
    %v3450 = vunpack.c.l.b16 %v629
    %v3451 = vunpack.c.h.b16 %v629
    %v3452 = vunpack.c.l.b16 %v630
    %v3453 = vunpack.c.h.b16 %v630
    %v3454 = vunpack.c.l.b16 %v631
    %v3455 = vunpack.c.h.b16 %v631
    %v3456 = vunpack.c.l.b16 %v632
    %v3457 = vunpack.c.h.b16 %v632
    %v3458 = vunpack.c.l.b16 %v633
    %v3459 = vunpack.c.h.b16 %v633
    %v3460 = vunpack.c.l.b16 %v634
    %v3461 = vunpack.c.h.b16 %v634
    %v3462 = vunpack.c.l.b16 %v635
    %v3463 = vunpack.c.h.b16 %v635
    %v3464 = vunpack.c.l.b16 %v636
    %v3465 = vunpack.c.h.b16 %v636
    %v3466 = vunpack.c.l.b16 %v637
    %v3467 = vunpack.c.h.b16 %v637
    %v3468 = vunpack.c.l.b16 %v638
    %v3469 = vunpack.c.h.b16 %v638
    %v3470 = vunpack.c.l.b16 %v639
    %v3471 = vunpack.c.h.b16 %v639
    %v3472 = vunpack.c.l.b16 %v640
    %v3473 = vunpack.c.h.b16 %v640
    %v3474 = vunpack.c.l.b16 %v641
    %v3475 = vunpack.c.h.b16 %v641
    %v3476 = vunpack.c.l.b16 %v642
    %v3477 = vunpack.c.h.b16 %v642
    %v3478 = vunpack.c.l.b16 %v643
    %v3479 = vunpack.c.h.b16 %v643
    %v3480 = vunpack.c.l.b16 %v644
    %v3481 = vunpack.c.h.b16 %v644
    %v3482 = vunpack.c.l.b16 %v645
    %v3483 = vunpack.c.h.b16 %v645
    %v3484 = vunpack.c.l.b16 %v646
    %v3485 = vunpack.c.h.b16 %v646
    %v3486 = vunpack.c.l.b16 %v647
    %v3487 = vunpack.c.h.b16 %v647
    %v3488 = vunpack.c.l.b16 %v648
    %v3489 = vunpack.c.h.b16 %v648
    %v3490 = vunpack.c.l.b16 %v649
    %v3491 = vunpack.c.h.b16 %v649
    %v3492 = vunpack.c.l.b16 %v650
    %v3493 = vunpack.c.h.b16 %v650
    %v3494 = vunpack.c.l.b16 %v651
    %v3495 = vunpack.c.h.b16 %v651
    %v3496 = vunpack.c.l.b16 %v652
    %v3497 = vunpack.c.h.b16 %v652
    %v3498 = vunpack.c.l.b16 %v653
    %v3499 = vunpack.c.h.b16 %v653
    %v3500 = vunpack.c.l.b16 %v654
    %v3501 = vunpack.c.h.b16 %v654
    %v3502 = vunpack.c.l.b16 %v655
    %v3503 = vunpack.c.h.b16 %v655
    %v3504 = vunpack.c.l.b16 %v656
    %v3505 = vunpack.c.h.b16 %v656
    %v3506 = vunpack.c.l.b16 %v657
    %v3507 = vunpack.c.h.b16 %v657
    %v3508 = vpack.c.b16 %v3260, %v3252
    %v3509 = vpack.c.b16 %v3261, %v3253
    %v3510 = vpack.c.b16 %v3262, %v3254
    %v3511 = vpack.c.b16 %v3263, %v3255
    %v3512 = vpack.c.b16 %v3264, %v3256
    %v3513 = vpack.c.b16 %v3265, %v3257
    %v3514 = vpack.c.b16 %v3266, %v3258
    %v3515 = vpack.c.b16 %v3267, %v3259
    %v3516 = vpack.c.b16 %v3276, %v3268
    %v3517 = vpack.c.b16 %v3277, %v3269
    %v3518 = vpack.c.b16 %v3278, %v3270
    %v3519 = vpack.c.b16 %v3279, %v3271
    %v3520 = vpack.c.b16 %v3280, %v3272
    %v3521 = vpack.c.b16 %v3281, %v3273
    %v3522 = vpack.c.b16 %v3282, %v3274
    %v3523 = vpack.c.b16 %v3283, %v3275
    %v3524 = vpack.c.b16 %v3292, %v3284
    %v3525 = vpack.c.b16 %v3293, %v3285
    %v3526 = vpack.c.b16 %v3294, %v3286
    %v3527 = vpack.c.b16 %v3295, %v3287
    %v3528 = vpack.c.b16 %v3296, %v3288
    %v3529 = vpack.c.b16 %v3297, %v3289
    %v3530 = vpack.c.b16 %v3298, %v3290
    %v3531 = vpack.c.b16 %v3299, %v3291
    %v3532 = vpack.c.b16 %v3308, %v3300
    %v3533 = vpack.c.b16 %v3309, %v3301
    %v3534 = vpack.c.b16 %v3310, %v3302
    %v3535 = vpack.c.b16 %v3311, %v3303
    %v3536 = vpack.c.b16 %v3312, %v3304
    %v3537 = vpack.c.b16 %v3313, %v3305
    %v3538 = vpack.c.b16 %v3314, %v3306
    %v3539 = vpack.c.b16 %v3315, %v3307
    %v3540 = vpack.c.b16 %v3324, %v3316
    %v3541 = vpack.c.b16 %v3325, %v3317
    %v3542 = vpack.c.b16 %v3326, %v3318
    %v3543 = vpack.c.b16 %v3327, %v3319
    %v3544 = vpack.c.b16 %v3328, %v3320
    %v3545 = vpack.c.b16 %v3329, %v3321
    %v3546 = vpack.c.b16 %v3330, %v3322
    %v3547 = vpack.c.b16 %v3331, %v3323
    %v3548 = vpack.c.b16 %v3340, %v3332
    %v3549 = vpack.c.b16 %v3341, %v3333
    %v3550 = vpack.c.b16 %v3342, %v3334
    %v3551 = vpack.c.b16 %v3343, %v3335
    %v3552 = vpack.c.b16 %v3344, %v3336
    %v3553 = vpack.c.b16 %v3345, %v3337
    %v3554 = vpack.c.b16 %v3346, %v3338
    %v3555 = vpack.c.b16 %v3347, %v3339
    %v3556 = vpack.c.b16 %v3356, %v3348
    %v3557 = vpack.c.b16 %v3357, %v3349
    %v3558 = vpack.c.b16 %v3358, %v3350
    %v3559 = vpack.c.b16 %v3359, %v3351
    %v3560 = vpack.c.b16 %v3360, %v3352
    %v3561 = vpack.c.b16 %v3361, %v3353
    %v3562 = vpack.c.b16 %v3362, %v3354
    %v3563 = vpack.c.b16 %v3363, %v3355
    %v3564 = vpack.c.b16 %v3372, %v3364
    %v3565 = vpack.c.b16 %v3373, %v3365
    %v3566 = vpack.c.b16 %v3374, %v3366
    %v3567 = vpack.c.b16 %v3375, %v3367
    %v3568 = vpack.c.b16 %v3376, %v3368
    %v3569 = vpack.c.b16 %v3377, %v3369
    %v3570 = vpack.c.b16 %v3378, %v3370
    %v3571 = vpack.c.b16 %v3379, %v3371
    %v3572 = vpack.c.b16 %v3388, %v3380
    %v3573 = vpack.c.b16 %v3389, %v3381
    %v3574 = vpack.c.b16 %v3390, %v3382
    %v3575 = vpack.c.b16 %v3391, %v3383
    %v3576 = vpack.c.b16 %v3392, %v3384
    %v3577 = vpack.c.b16 %v3393, %v3385
    %v3578 = vpack.c.b16 %v3394, %v3386
    %v3579 = vpack.c.b16 %v3395, %v3387
    %v3580 = vpack.c.b16 %v3404, %v3396
    %v3581 = vpack.c.b16 %v3405, %v3397
    %v3582 = vpack.c.b16 %v3406, %v3398
    %v3583 = vpack.c.b16 %v3407, %v3399
    %v3584 = vpack.c.b16 %v3408, %v3400
    %v3585 = vpack.c.b16 %v3409, %v3401
    %v3586 = vpack.c.b16 %v3410, %v3402
    %v3587 = vpack.c.b16 %v3411, %v3403
    %v3588 = vpack.c.b16 %v3420, %v3412
    %v3589 = vpack.c.b16 %v3421, %v3413
    %v3590 = vpack.c.b16 %v3422, %v3414
    %v3591 = vpack.c.b16 %v3423, %v3415
    %v3592 = vpack.c.b16 %v3424, %v3416
    %v3593 = vpack.c.b16 %v3425, %v3417
    %v3594 = vpack.c.b16 %v3426, %v3418
    %v3595 = vpack.c.b16 %v3427, %v3419
    %v3596 = vpack.c.b16 %v3436, %v3428
    %v3597 = vpack.c.b16 %v3437, %v3429
    %v3598 = vpack.c.b16 %v3438, %v3430
    %v3599 = vpack.c.b16 %v3439, %v3431
    %v3600 = vpack.c.b16 %v3440, %v3432
    %v3601 = vpack.c.b16 %v3441, %v3433
    %v3602 = vpack.c.b16 %v3442, %v3434
    %v3603 = vpack.c.b16 %v3443, %v3435
    %v3604 = vpack.c.b16 %v3452, %v3444
    %v3605 = vpack.c.b16 %v3453, %v3445
    %v3606 = vpack.c.b16 %v3454, %v3446
    %v3607 = vpack.c.b16 %v3455, %v3447
    %v3608 = vpack.c.b16 %v3456, %v3448
    %v3609 = vpack.c.b16 %v3457, %v3449
    %v3610 = vpack.c.b16 %v3458, %v3450
    %v3611 = vpack.c.b16 %v3459, %v3451
    %v3612 = vpack.c.b16 %v3468, %v3460
    %v3613 = vpack.c.b16 %v3469, %v3461
    %v3614 = vpack.c.b16 %v3470, %v3462
    %v3615 = vpack.c.b16 %v3471, %v3463
    %v3616 = vpack.c.b16 %v3472, %v3464
    %v3617 = vpack.c.b16 %v3473, %v3465
    %v3618 = vpack.c.b16 %v3474, %v3466
    %v3619 = vpack.c.b16 %v3475, %v3467
    %v3620 = vpack.c.b16 %v3484, %v3476
    %v3621 = vpack.c.b16 %v3485, %v3477
    %v3622 = vpack.c.b16 %v3486, %v3478
    %v3623 = vpack.c.b16 %v3487, %v3479
    %v3624 = vpack.c.b16 %v3488, %v3480
    %v3625 = vpack.c.b16 %v3489, %v3481
    %v3626 = vpack.c.b16 %v3490, %v3482
    %v3627 = vpack.c.b16 %v3491, %v3483
    %v3628 = vpack.c.b16 %v3500, %v3492
    %v3629 = vpack.c.b16 %v3501, %v3493
    %v3630 = vpack.c.b16 %v3502, %v3494
    %v3631 = vpack.c.b16 %v3503, %v3495
    %v3632 = vpack.c.b16 %v3504, %v3496
    %v3633 = vpack.c.b16 %v3505, %v3497
    %v3634 = vpack.c.b16 %v3506, %v3498
    %v3635 = vpack.c.b16 %v3507, %v3499
    %v3892 = vunpack.c.l.b16 %v658
    %v3893 = vunpack.c.l.b16 %v659
    %v3894 = vunpack.c.l.b16 %v660
    %v3895 = vunpack.c.l.b16 %v661
    %v3896 = vunpack.c.l.b16 %v662
    %v3897 = vunpack.c.l.b16 %v663
    %v3898 = vunpack.c.l.b16 %v664
    %v3899 = vunpack.c.l.b16 %v665
    %v3900 = vunpack.c.l.b16 %v666
    %v3901 = vunpack.c.l.b16 %v667
    %v3902 = vunpack.c.l.b16 %v668
    %v3903 = vunpack.c.l.b16 %v669
    %v3904 = vunpack.c.l.b16 %v670
    %v3905 = vunpack.c.l.b16 %v671
    %v3906 = vunpack.c.l.b16 %v672
    %v3907 = vunpack.c.l.b16 %v673
    %v3908 = vunpack.c.l.b16 %v674
    %v3909 = vunpack.c.l.b16 %v675
    %v3910 = vunpack.c.l.b16 %v676
    %v3911 = vunpack.c.l.b16 %v677
    %v3912 = vunpack.c.l.b16 %v678
    %v3913 = vunpack.c.l.b16 %v679
    %v3914 = vunpack.c.l.b16 %v680
    %v3915 = vunpack.c.l.b16 %v681
    %v3916 = vunpack.c.l.b16 %v682
    %v3917 = vunpack.c.l.b16 %v683
    %v3918 = vunpack.c.l.b16 %v684
    %v3919 = vunpack.c.l.b16 %v685
    %v3920 = vunpack.c.l.b16 %v686
    %v3921 = vunpack.c.l.b16 %v687
    %v3922 = vunpack.c.l.b16 %v688
    %v3923 = vunpack.c.l.b16 %v689
    %v3924 = vunpack.c.l.b16 %v690
    %v3925 = vunpack.c.l.b16 %v691
    %v3926 = vunpack.c.l.b16 %v692
    %v3927 = vunpack.c.l.b16 %v693
    %v3928 = vunpack.c.l.b16 %v694
    %v3929 = vunpack.c.l.b16 %v695
    %v3930 = vunpack.c.l.b16 %v696
    %v3931 = vunpack.c.l.b16 %v697
    %v3932 = vunpack.c.l.b16 %v698
    %v3933 = vunpack.c.l.b16 %v699
    %v3934 = vunpack.c.l.b16 %v700
    %v3935 = vunpack.c.l.b16 %v701
    %v3936 = vunpack.c.l.b16 %v702
    %v3937 = vunpack.c.l.b16 %v703
    %v3938 = vunpack.c.l.b16 %v704
    %v3939 = vunpack.c.l.b16 %v705
    %v3940 = vunpack.c.l.b16 %v706
    %v3941 = vunpack.c.l.b16 %v707
    %v3942 = vunpack.c.l.b16 %v708
    %v3943 = vunpack.c.l.b16 %v709
    %v3944 = vunpack.c.l.b16 %v710
    %v3945 = vunpack.c.l.b16 %v711
    %v3946 = vunpack.c.l.b16 %v712
    %v3947 = vunpack.c.l.b16 %v713
    %v3948 = vunpack.c.l.b16 %v714
    %v3949 = vunpack.c.l.b16 %v715
    %v3950 = vunpack.c.l.b16 %v716
    %v3951 = vunpack.c.l.b16 %v717
    %v3952 = vunpack.c.l.b16 %v718
    %v3953 = vunpack.c.l.b16 %v719
    %v3954 = vunpack.c.l.b16 %v720
    %v3955 = vunpack.c.l.b16 %v721
    %v3956 = vunpack.c.l.b16 %v722
    %v3957 = vunpack.c.l.b16 %v723
    %v3958 = vunpack.c.l.b16 %v724
    %v3959 = vunpack.c.l.b16 %v725
    %v3960 = vunpack.c.l.b16 %v726
    %v3961 = vunpack.c.l.b16 %v727
    %v3962 = vunpack.c.l.b16 %v728
    %v3963 = vunpack.c.l.b16 %v729
    %v3964 = vunpack.c.l.b16 %v730
    %v3965 = vunpack.c.l.b16 %v731
    %v3966 = vunpack.c.l.b16 %v732
    %v3967 = vunpack.c.l.b16 %v733
    %v3968 = vunpack.c.l.b16 %v734
    %v3969 = vunpack.c.l.b16 %v735
    %v3970 = vunpack.c.l.b16 %v736
    %v3971 = vunpack.c.l.b16 %v737
    %v3972 = vunpack.c.l.b16 %v738
    %v3973 = vunpack.c.l.b16 %v739
    %v3974 = vunpack.c.l.b16 %v740
    %v3975 = vunpack.c.l.b16 %v741
    %v3976 = vunpack.c.l.b16 %v742
    %v3977 = vunpack.c.l.b16 %v743
    %v3978 = vunpack.c.l.b16 %v744
    %v3979 = vunpack.c.l.b16 %v745
    %v3980 = vunpack.c.l.b16 %v746
    %v3981 = vunpack.c.l.b16 %v747
    %v3982 = vunpack.c.l.b16 %v748
    %v3983 = vunpack.c.l.b16 %v749
    %v3984 = vunpack.c.l.b16 %v750
    %v3985 = vunpack.c.l.b16 %v751
    %v3986 = vunpack.c.l.b16 %v752
    %v3987 = vunpack.c.l.b16 %v753
    %v3988 = vunpack.c.l.b16 %v754
    %v3989 = vunpack.c.l.b16 %v755
    %v3990 = vunpack.c.l.b16 %v756
    %v3991 = vunpack.c.l.b16 %v757
    %v3992 = vunpack.c.l.b16 %v758
    %v3993 = vunpack.c.l.b16 %v759
    %v3994 = vunpack.c.l.b16 %v760
    %v3995 = vunpack.c.l.b16 %v761
    %v3996 = vunpack.c.l.b16 %v762
    %v3997 = vunpack.c.l.b16 %v763
    %v3998 = vunpack.c.l.b16 %v764
    %v3999 = vunpack.c.l.b16 %v765
    %v4000 = vunpack.c.l.b16 %v766
    %v4001 = vunpack.c.l.b16 %v767
    %v4002 = vunpack.c.l.b16 %v768
    %v4003 = vunpack.c.l.b16 %v769
    %v4004 = vunpack.c.l.b16 %v770
    %v4005 = vunpack.c.l.b16 %v771
    %v4006 = vunpack.c.l.b16 %v772
    %v4007 = vunpack.c.l.b16 %v773
    %v4008 = vunpack.c.l.b16 %v774
    %v4009 = vunpack.c.l.b16 %v775
    %v4010 = vunpack.c.l.b16 %v776
    %v4011 = vunpack.c.l.b16 %v777
    %v4012 = vunpack.c.l.b16 %v778
    %v4013 = vunpack.c.l.b16 %v779
    %v4014 = vunpack.c.l.b16 %v780
    %v4015 = vunpack.c.l.b16 %v781
    %v4016 = vunpack.c.l.b16 %v782
    %v4017 = vunpack.c.l.b16 %v783
    %v4018 = vunpack.c.l.b16 %v784
    %v4019 = vunpack.c.l.b16 %v785
    %v4020 = vpack.c.b16 %v3893, %v3892
    %v4021 = vpack.c.b16 %v3895, %v3894
    %v4022 = vpack.c.b16 %v3897, %v3896
    %v4023 = vpack.c.b16 %v3899, %v3898
    %v4024 = vpack.c.b16 %v3901, %v3900
    %v4025 = vpack.c.b16 %v3903, %v3902
    %v4026 = vpack.c.b16 %v3905, %v3904
    %v4027 = vpack.c.b16 %v3907, %v3906
    %v4028 = vpack.c.b16 %v3909, %v3908
    %v4029 = vpack.c.b16 %v3911, %v3910
    %v4030 = vpack.c.b16 %v3913, %v3912
    %v4031 = vpack.c.b16 %v3915, %v3914
    %v4032 = vpack.c.b16 %v3917, %v3916
    %v4033 = vpack.c.b16 %v3919, %v3918
    %v4034 = vpack.c.b16 %v3921, %v3920
    %v4035 = vpack.c.b16 %v3923, %v3922
    %v4036 = vpack.c.b16 %v3925, %v3924
    %v4037 = vpack.c.b16 %v3927, %v3926
    %v4038 = vpack.c.b16 %v3929, %v3928
    %v4039 = vpack.c.b16 %v3931, %v3930
    %v4040 = vpack.c.b16 %v3933, %v3932
    %v4041 = vpack.c.b16 %v3935, %v3934
    %v4042 = vpack.c.b16 %v3937, %v3936
    %v4043 = vpack.c.b16 %v3939, %v3938
    %v4044 = vpack.c.b16 %v3941, %v3940
    %v4045 = vpack.c.b16 %v3943, %v3942
    %v4046 = vpack.c.b16 %v3945, %v3944
    %v4047 = vpack.c.b16 %v3947, %v3946
    %v4048 = vpack.c.b16 %v3949, %v3948
    %v4049 = vpack.c.b16 %v3951, %v3950
    %v4050 = vpack.c.b16 %v3953, %v3952
    %v4051 = vpack.c.b16 %v3955, %v3954
    %v4052 = vpack.c.b16 %v3957, %v3956
    %v4053 = vpack.c.b16 %v3959, %v3958
    %v4054 = vpack.c.b16 %v3961, %v3960
    %v4055 = vpack.c.b16 %v3963, %v3962
    %v4056 = vpack.c.b16 %v3965, %v3964
    %v4057 = vpack.c.b16 %v3967, %v3966
    %v4058 = vpack.c.b16 %v3969, %v3968
    %v4059 = vpack.c.b16 %v3971, %v3970
    %v4060 = vpack.c.b16 %v3973, %v3972
    %v4061 = vpack.c.b16 %v3975, %v3974
    %v4062 = vpack.c.b16 %v3977, %v3976
    %v4063 = vpack.c.b16 %v3979, %v3978
    %v4064 = vpack.c.b16 %v3981, %v3980
    %v4065 = vpack.c.b16 %v3983, %v3982
    %v4066 = vpack.c.b16 %v3985, %v3984
    %v4067 = vpack.c.b16 %v3987, %v3986
    %v4068 = vpack.c.b16 %v3989, %v3988
    %v4069 = vpack.c.b16 %v3991, %v3990
    %v4070 = vpack.c.b16 %v3993, %v3992
    %v4071 = vpack.c.b16 %v3995, %v3994
    %v4072 = vpack.c.b16 %v3997, %v3996
    %v4073 = vpack.c.b16 %v3999, %v3998
    %v4074 = vpack.c.b16 %v4001, %v4000
    %v4075 = vpack.c.b16 %v4003, %v4002
    %v4076 = vpack.c.b16 %v4005, %v4004
    %v4077 = vpack.c.b16 %v4007, %v4006
    %v4078 = vpack.c.b16 %v4009, %v4008
    %v4079 = vpack.c.b16 %v4011, %v4010
    %v4080 = vpack.c.b16 %v4013, %v4012
    %v4081 = vpack.c.b16 %v4015, %v4014
    %v4082 = vpack.c.b16 %v4017, %v4016
    %v4083 = vpack.c.b16 %v4019, %v4018
    %4148 = vmatpush.bf16.msra.mxu0 %v4027
    %4149 = vmatpush.bf16.msra.mxu0 %v4026
    %4150 = vmatpush.bf16.msra.mxu0 %v4025
    %4151 = vmatpush.bf16.msra.mxu0 %v4024
    %4152 = vmatpush.bf16.msra.mxu0 %v4023
    %4153 = vmatpush.bf16.msra.mxu0 %v4022
    %4154 = vmatpush.bf16.msra.mxu0 %v4021
    %4155 = vmatpush.bf16.msra.mxu0 %v4020
    %4156 = vmatmul.bf16.gmra.mxu0 %v3508
    %v4157 = vpop.f32.mrf.mxu0
    %v4158 = vadd.f32 0.0, %v4157
    %v4159 = vpop.f32.mrf.mxu0
    %v4160 = vadd.f32 0.0, %v4159
    %4161 = vmatmul.bf16.gmra.mxu0 %v3516
    %v4162 = vpop.f32.mrf.mxu0
    %v4163 = vadd.f32 0.0, %v4162
    %v4164 = vpop.f32.mrf.mxu0
    %v4165 = vadd.f32 0.0, %v4164
    %4166 = vmatmul.bf16.gmra.mxu0 %v3524
    %v4167 = vpop.f32.mrf.mxu0
    %v4168 = vadd.f32 0.0, %v4167
    %v4169 = vpop.f32.mrf.mxu0
    %v4170 = vadd.f32 0.0, %v4169
    %4171 = vmatmul.bf16.gmra.mxu0 %v3532
    %v4172 = vpop.f32.mrf.mxu0
    %v4173 = vadd.f32 0.0, %v4172
    %v4174 = vpop.f32.mrf.mxu0
    %v4175 = vadd.f32 0.0, %v4174
    %4176 = vmatmul.bf16.gmra.mxu0 %v3540
    %v4177 = vpop.f32.mrf.mxu0
    %v4178 = vadd.f32 0.0, %v4177
    %v4179 = vpop.f32.mrf.mxu0
    %v4180 = vadd.f32 0.0, %v4179
    %4181 = vmatmul.bf16.gmra.mxu0 %v3548
    %v4182 = vpop.f32.mrf.mxu0
    %v4183 = vadd.f32 0.0, %v4182
    %v4184 = vpop.f32.mrf.mxu0
    %v4185 = vadd.f32 0.0, %v4184
    %4186 = vmatmul.bf16.gmra.mxu0 %v3556
    %v4187 = vpop.f32.mrf.mxu0
    %v4188 = vadd.f32 0.0, %v4187
    %v4189 = vpop.f32.mrf.mxu0
    %v4190 = vadd.f32 0.0, %v4189
    %4191 = vmatmul.bf16.gmra.mxu0 %v3564
    %v4192 = vpop.f32.mrf.mxu0
    %v4193 = vadd.f32 0.0, %v4192
    %v4194 = vpop.f32.mrf.mxu0
    %v4195 = vadd.f32 0.0, %v4194
    %4196 = vmatmul.bf16.gmra.mxu0 %v3572
    %v4197 = vpop.f32.mrf.mxu0
    %v4198 = vadd.f32 0.0, %v4197
    %v4199 = vpop.f32.mrf.mxu0
    %v4200 = vadd.f32 0.0, %v4199
    %4201 = vmatmul.bf16.gmra.mxu0 %v3580
    %v4202 = vpop.f32.mrf.mxu0
    %v4203 = vadd.f32 0.0, %v4202
    %v4204 = vpop.f32.mrf.mxu0
    %v4205 = vadd.f32 0.0, %v4204
    %4206 = vmatmul.bf16.gmra.mxu0 %v3588
    %v4207 = vpop.f32.mrf.mxu0
    %v4208 = vadd.f32 0.0, %v4207
    %v4209 = vpop.f32.mrf.mxu0
    %v4210 = vadd.f32 0.0, %v4209
    %4211 = vmatmul.bf16.gmra.mxu0 %v3596
    %v4212 = vpop.f32.mrf.mxu0
    %v4213 = vadd.f32 0.0, %v4212
    %v4214 = vpop.f32.mrf.mxu0
    %v4215 = vadd.f32 0.0, %v4214
    %4216 = vmatmul.bf16.gmra.mxu0 %v3604
    %v4217 = vpop.f32.mrf.mxu0
    %v4218 = vadd.f32 0.0, %v4217
    %v4219 = vpop.f32.mrf.mxu0
    %v4220 = vadd.f32 0.0, %v4219
    %4221 = vmatmul.bf16.gmra.mxu0 %v3612
    %v4222 = vpop.f32.mrf.mxu0
    %v4223 = vadd.f32 0.0, %v4222
    %v4224 = vpop.f32.mrf.mxu0
    %v4225 = vadd.f32 0.0, %v4224
    %4226 = vmatmul.bf16.gmra.mxu0 %v3620
    %v4227 = vpop.f32.mrf.mxu0
    %v4228 = vadd.f32 0.0, %v4227
    %v4229 = vpop.f32.mrf.mxu0
    %v4230 = vadd.f32 0.0, %v4229
    %4231 = vmatmul.bf16.gmra.mxu0 %v3628
    %v4232 = vpop.f32.mrf.mxu0
    %v4233 = vadd.f32 0.0, %v4232
    %v4234 = vpop.f32.mrf.mxu0
    %v4235 = vadd.f32 0.0, %v4234
    %4236 = vdwg.mxu0
    %4237 = vmatpush.bf16.msra.mxu0 %v4035
    %4238 = vmatpush.bf16.msra.mxu0 %v4034
    %4239 = vmatpush.bf16.msra.mxu0 %v4033
    %4240 = vmatpush.bf16.msra.mxu0 %v4032
    %4241 = vmatpush.bf16.msra.mxu0 %v4031
    %4242 = vmatpush.bf16.msra.mxu0 %v4030
    %4243 = vmatpush.bf16.msra.mxu0 %v4029
    %4244 = vmatpush.bf16.msra.mxu0 %v4028
    %4245 = vmatmul.bf16.gmra.mxu0 %v3509
    %v4246 = vpop.f32.mrf.mxu0
    %v4247 = vadd.f32 %v4158, %v4246
    %v4248 = vpop.f32.mrf.mxu0
    %v4249 = vadd.f32 %v4160, %v4248
    %4250 = vmatmul.bf16.gmra.mxu0 %v3517
    %v4251 = vpop.f32.mrf.mxu0
    %v4252 = vadd.f32 %v4163, %v4251
    %v4253 = vpop.f32.mrf.mxu0
    %v4254 = vadd.f32 %v4165, %v4253
    %4255 = vmatmul.bf16.gmra.mxu0 %v3525
    %v4256 = vpop.f32.mrf.mxu0
    %v4257 = vadd.f32 %v4168, %v4256
    %v4258 = vpop.f32.mrf.mxu0
    %v4259 = vadd.f32 %v4170, %v4258
    %4260 = vmatmul.bf16.gmra.mxu0 %v3533
    %v4261 = vpop.f32.mrf.mxu0
    %v4262 = vadd.f32 %v4173, %v4261
    %v4263 = vpop.f32.mrf.mxu0
    %v4264 = vadd.f32 %v4175, %v4263
    %4265 = vmatmul.bf16.gmra.mxu0 %v3541
    %v4266 = vpop.f32.mrf.mxu0
    %v4267 = vadd.f32 %v4178, %v4266
    %v4268 = vpop.f32.mrf.mxu0
    %v4269 = vadd.f32 %v4180, %v4268
    %4270 = vmatmul.bf16.gmra.mxu0 %v3549
    %v4271 = vpop.f32.mrf.mxu0
    %v4272 = vadd.f32 %v4183, %v4271
    %v4273 = vpop.f32.mrf.mxu0
    %v4274 = vadd.f32 %v4185, %v4273
    %4275 = vmatmul.bf16.gmra.mxu0 %v3557
    %v4276 = vpop.f32.mrf.mxu0
    %v4277 = vadd.f32 %v4188, %v4276
    %v4278 = vpop.f32.mrf.mxu0
    %v4279 = vadd.f32 %v4190, %v4278
    %4280 = vmatmul.bf16.gmra.mxu0 %v3565
    %v4281 = vpop.f32.mrf.mxu0
    %v4282 = vadd.f32 %v4193, %v4281
    %v4283 = vpop.f32.mrf.mxu0
    %v4284 = vadd.f32 %v4195, %v4283
    %4285 = vmatmul.bf16.gmra.mxu0 %v3573
    %v4286 = vpop.f32.mrf.mxu0
    %v4287 = vadd.f32 %v4198, %v4286
    %v4288 = vpop.f32.mrf.mxu0
    %v4289 = vadd.f32 %v4200, %v4288
    %4290 = vmatmul.bf16.gmra.mxu0 %v3581
    %v4291 = vpop.f32.mrf.mxu0
    %v4292 = vadd.f32 %v4203, %v4291
    %v4293 = vpop.f32.mrf.mxu0
    %v4294 = vadd.f32 %v4205, %v4293
    %4295 = vmatmul.bf16.gmra.mxu0 %v3589
    %v4296 = vpop.f32.mrf.mxu0
    %v4297 = vadd.f32 %v4208, %v4296
    %v4298 = vpop.f32.mrf.mxu0
    %v4299 = vadd.f32 %v4210, %v4298
    %4300 = vmatmul.bf16.gmra.mxu0 %v3597
    %v4301 = vpop.f32.mrf.mxu0
    %v4302 = vadd.f32 %v4213, %v4301
    %v4303 = vpop.f32.mrf.mxu0
    %v4304 = vadd.f32 %v4215, %v4303
    %4305 = vmatmul.bf16.gmra.mxu0 %v3605
    %v4306 = vpop.f32.mrf.mxu0
    %v4307 = vadd.f32 %v4218, %v4306
    %v4308 = vpop.f32.mrf.mxu0
    %v4309 = vadd.f32 %v4220, %v4308
    %4310 = vmatmul.bf16.gmra.mxu0 %v3613
    %v4311 = vpop.f32.mrf.mxu0
    %v4312 = vadd.f32 %v4223, %v4311
    %v4313 = vpop.f32.mrf.mxu0
    %v4314 = vadd.f32 %v4225, %v4313
    %4315 = vmatmul.bf16.gmra.mxu0 %v3621
    %v4316 = vpop.f32.mrf.mxu0
    %v4317 = vadd.f32 %v4228, %v4316
    %v4318 = vpop.f32.mrf.mxu0
    %v4319 = vadd.f32 %v4230, %v4318
    %4320 = vmatmul.bf16.gmra.mxu0 %v3629
    %v4321 = vpop.f32.mrf.mxu0
    %v4322 = vadd.f32 %v4233, %v4321
    %v4323 = vpop.f32.mrf.mxu0
    %v4324 = vadd.f32 %v4235, %v4323
    %4325 = vdwg.mxu0
    %4326 = vmatpush.bf16.msra.mxu0 %v4043
    %4327 = vmatpush.bf16.msra.mxu0 %v4042
    %4328 = vmatpush.bf16.msra.mxu0 %v4041
    %4329 = vmatpush.bf16.msra.mxu0 %v4040
    %4330 = vmatpush.bf16.msra.mxu0 %v4039
    %4331 = vmatpush.bf16.msra.mxu0 %v4038
    %4332 = vmatpush.bf16.msra.mxu0 %v4037
    %4333 = vmatpush.bf16.msra.mxu0 %v4036
    %4334 = vmatmul.bf16.gmra.mxu0 %v3510
    %v4335 = vpop.f32.mrf.mxu0
    %v4336 = vadd.f32 %v4247, %v4335
    %v4337 = vpop.f32.mrf.mxu0
    %v4338 = vadd.f32 %v4249, %v4337
    %4339 = vmatmul.bf16.gmra.mxu0 %v3518
    %v4340 = vpop.f32.mrf.mxu0
    %v4341 = vadd.f32 %v4252, %v4340
    %v4342 = vpop.f32.mrf.mxu0
    %v4343 = vadd.f32 %v4254, %v4342
    %4344 = vmatmul.bf16.gmra.mxu0 %v3526
    %v4345 = vpop.f32.mrf.mxu0
    %v4346 = vadd.f32 %v4257, %v4345
    %v4347 = vpop.f32.mrf.mxu0
    %v4348 = vadd.f32 %v4259, %v4347
    %4349 = vmatmul.bf16.gmra.mxu0 %v3534
    %v4350 = vpop.f32.mrf.mxu0
    %v4351 = vadd.f32 %v4262, %v4350
    %v4352 = vpop.f32.mrf.mxu0
    %v4353 = vadd.f32 %v4264, %v4352
    %4354 = vmatmul.bf16.gmra.mxu0 %v3542
    %v4355 = vpop.f32.mrf.mxu0
    %v4356 = vadd.f32 %v4267, %v4355
    %v4357 = vpop.f32.mrf.mxu0
    %v4358 = vadd.f32 %v4269, %v4357
    %4359 = vmatmul.bf16.gmra.mxu0 %v3550
    %v4360 = vpop.f32.mrf.mxu0
    %v4361 = vadd.f32 %v4272, %v4360
    %v4362 = vpop.f32.mrf.mxu0
    %v4363 = vadd.f32 %v4274, %v4362
    %4364 = vmatmul.bf16.gmra.mxu0 %v3558
    %v4365 = vpop.f32.mrf.mxu0
    %v4366 = vadd.f32 %v4277, %v4365
    %v4367 = vpop.f32.mrf.mxu0
    %v4368 = vadd.f32 %v4279, %v4367
    %4369 = vmatmul.bf16.gmra.mxu0 %v3566
    %v4370 = vpop.f32.mrf.mxu0
    %v4371 = vadd.f32 %v4282, %v4370
    %v4372 = vpop.f32.mrf.mxu0
    %v4373 = vadd.f32 %v4284, %v4372
    %4374 = vmatmul.bf16.gmra.mxu0 %v3574
    %v4375 = vpop.f32.mrf.mxu0
    %v4376 = vadd.f32 %v4287, %v4375
    %v4377 = vpop.f32.mrf.mxu0
    %v4378 = vadd.f32 %v4289, %v4377
    %4379 = vmatmul.bf16.gmra.mxu0 %v3582
    %v4380 = vpop.f32.mrf.mxu0
    %v4381 = vadd.f32 %v4292, %v4380
    %v4382 = vpop.f32.mrf.mxu0
    %v4383 = vadd.f32 %v4294, %v4382
    %4384 = vmatmul.bf16.gmra.mxu0 %v3590
    %v4385 = vpop.f32.mrf.mxu0
    %v4386 = vadd.f32 %v4297, %v4385
    %v4387 = vpop.f32.mrf.mxu0
    %v4388 = vadd.f32 %v4299, %v4387
    %4389 = vmatmul.bf16.gmra.mxu0 %v3598
    %v4390 = vpop.f32.mrf.mxu0
    %v4391 = vadd.f32 %v4302, %v4390
    %v4392 = vpop.f32.mrf.mxu0
    %v4393 = vadd.f32 %v4304, %v4392
    %4394 = vmatmul.bf16.gmra.mxu0 %v3606
    %v4395 = vpop.f32.mrf.mxu0
    %v4396 = vadd.f32 %v4307, %v4395
    %v4397 = vpop.f32.mrf.mxu0
    %v4398 = vadd.f32 %v4309, %v4397
    %4399 = vmatmul.bf16.gmra.mxu0 %v3614
    %v4400 = vpop.f32.mrf.mxu0
    %v4401 = vadd.f32 %v4312, %v4400
    %v4402 = vpop.f32.mrf.mxu0
    %v4403 = vadd.f32 %v4314, %v4402
    %4404 = vmatmul.bf16.gmra.mxu0 %v3622
    %v4405 = vpop.f32.mrf.mxu0
    %v4406 = vadd.f32 %v4317, %v4405
    %v4407 = vpop.f32.mrf.mxu0
    %v4408 = vadd.f32 %v4319, %v4407
    %4409 = vmatmul.bf16.gmra.mxu0 %v3630
    %v4410 = vpop.f32.mrf.mxu0
    %v4411 = vadd.f32 %v4322, %v4410
    %v4412 = vpop.f32.mrf.mxu0
    %v4413 = vadd.f32 %v4324, %v4412
    %4414 = vdwg.mxu0
    %4415 = vmatpush.bf16.msra.mxu0 %v4051
    %4416 = vmatpush.bf16.msra.mxu0 %v4050
    %4417 = vmatpush.bf16.msra.mxu0 %v4049
    %4418 = vmatpush.bf16.msra.mxu0 %v4048
    %4419 = vmatpush.bf16.msra.mxu0 %v4047
    %4420 = vmatpush.bf16.msra.mxu0 %v4046
    %4421 = vmatpush.bf16.msra.mxu0 %v4045
    %4422 = vmatpush.bf16.msra.mxu0 %v4044
    %4423 = vmatmul.bf16.gmra.mxu0 %v3511
    %v4424 = vpop.f32.mrf.mxu0
    %v4425 = vadd.f32 %v4336, %v4424
    %v4426 = vpop.f32.mrf.mxu0
    %v4427 = vadd.f32 %v4338, %v4426
    %4428 = vmatmul.bf16.gmra.mxu0 %v3519
    %v4429 = vpop.f32.mrf.mxu0
    %v4430 = vadd.f32 %v4341, %v4429
    %v4431 = vpop.f32.mrf.mxu0
    %v4432 = vadd.f32 %v4343, %v4431
    %4433 = vmatmul.bf16.gmra.mxu0 %v3527
    %v4434 = vpop.f32.mrf.mxu0
    %v4435 = vadd.f32 %v4346, %v4434
    %v4436 = vpop.f32.mrf.mxu0
    %v4437 = vadd.f32 %v4348, %v4436
    %4438 = vmatmul.bf16.gmra.mxu0 %v3535
    %v4439 = vpop.f32.mrf.mxu0
    %v4440 = vadd.f32 %v4351, %v4439
    %v4441 = vpop.f32.mrf.mxu0
    %v4442 = vadd.f32 %v4353, %v4441
    %4443 = vmatmul.bf16.gmra.mxu0 %v3543
    %v4444 = vpop.f32.mrf.mxu0
    %v4445 = vadd.f32 %v4356, %v4444
    %v4446 = vpop.f32.mrf.mxu0
    %v4447 = vadd.f32 %v4358, %v4446
    %4448 = vmatmul.bf16.gmra.mxu0 %v3551
    %v4449 = vpop.f32.mrf.mxu0
    %v4450 = vadd.f32 %v4361, %v4449
    %v4451 = vpop.f32.mrf.mxu0
    %v4452 = vadd.f32 %v4363, %v4451
    %4453 = vmatmul.bf16.gmra.mxu0 %v3559
    %v4454 = vpop.f32.mrf.mxu0
    %v4455 = vadd.f32 %v4366, %v4454
    %v4456 = vpop.f32.mrf.mxu0
    %v4457 = vadd.f32 %v4368, %v4456
    %4458 = vmatmul.bf16.gmra.mxu0 %v3567
    %v4459 = vpop.f32.mrf.mxu0
    %v4460 = vadd.f32 %v4371, %v4459
    %v4461 = vpop.f32.mrf.mxu0
    %v4462 = vadd.f32 %v4373, %v4461
    %4463 = vmatmul.bf16.gmra.mxu0 %v3575
    %v4464 = vpop.f32.mrf.mxu0
    %v4465 = vadd.f32 %v4376, %v4464
    %v4466 = vpop.f32.mrf.mxu0
    %v4467 = vadd.f32 %v4378, %v4466
    %4468 = vmatmul.bf16.gmra.mxu0 %v3583
    %v4469 = vpop.f32.mrf.mxu0
    %v4470 = vadd.f32 %v4381, %v4469
    %v4471 = vpop.f32.mrf.mxu0
    %v4472 = vadd.f32 %v4383, %v4471
    %4473 = vmatmul.bf16.gmra.mxu0 %v3591
    %v4474 = vpop.f32.mrf.mxu0
    %v4475 = vadd.f32 %v4386, %v4474
    %v4476 = vpop.f32.mrf.mxu0
    %v4477 = vadd.f32 %v4388, %v4476
    %4478 = vmatmul.bf16.gmra.mxu0 %v3599
    %v4479 = vpop.f32.mrf.mxu0
    %v4480 = vadd.f32 %v4391, %v4479
    %v4481 = vpop.f32.mrf.mxu0
    %v4482 = vadd.f32 %v4393, %v4481
    %4483 = vmatmul.bf16.gmra.mxu0 %v3607
    %v4484 = vpop.f32.mrf.mxu0
    %v4485 = vadd.f32 %v4396, %v4484
    %v4486 = vpop.f32.mrf.mxu0
    %v4487 = vadd.f32 %v4398, %v4486
    %4488 = vmatmul.bf16.gmra.mxu0 %v3615
    %v4489 = vpop.f32.mrf.mxu0
    %v4490 = vadd.f32 %v4401, %v4489
    %v4491 = vpop.f32.mrf.mxu0
    %v4492 = vadd.f32 %v4403, %v4491
    %4493 = vmatmul.bf16.gmra.mxu0 %v3623
    %v4494 = vpop.f32.mrf.mxu0
    %v4495 = vadd.f32 %v4406, %v4494
    %v4496 = vpop.f32.mrf.mxu0
    %v4497 = vadd.f32 %v4408, %v4496
    %4498 = vmatmul.bf16.gmra.mxu0 %v3631
    %v4499 = vpop.f32.mrf.mxu0
    %v4500 = vadd.f32 %v4411, %v4499
    %v4501 = vpop.f32.mrf.mxu0
    %v4502 = vadd.f32 %v4413, %v4501
    %4503 = vdwg.mxu0
    %4504 = vmatpush.bf16.msra.mxu0 %v4059
    %4505 = vmatpush.bf16.msra.mxu0 %v4058
    %4506 = vmatpush.bf16.msra.mxu0 %v4057
    %4507 = vmatpush.bf16.msra.mxu0 %v4056
    %4508 = vmatpush.bf16.msra.mxu0 %v4055
    %4509 = vmatpush.bf16.msra.mxu0 %v4054
    %4510 = vmatpush.bf16.msra.mxu0 %v4053
    %4511 = vmatpush.bf16.msra.mxu0 %v4052
    %4512 = vmatmul.bf16.gmra.mxu0 %v3512
    %v4513 = vpop.f32.mrf.mxu0
    %v4514 = vadd.f32 %v4425, %v4513
    %v4515 = vpop.f32.mrf.mxu0
    %v4516 = vadd.f32 %v4427, %v4515
    %4517 = vmatmul.bf16.gmra.mxu0 %v3520
    %v4518 = vpop.f32.mrf.mxu0
    %v4519 = vadd.f32 %v4430, %v4518
    %v4520 = vpop.f32.mrf.mxu0
    %v4521 = vadd.f32 %v4432, %v4520
    %4522 = vmatmul.bf16.gmra.mxu0 %v3528
    %v4523 = vpop.f32.mrf.mxu0
    %v4524 = vadd.f32 %v4435, %v4523
    %v4525 = vpop.f32.mrf.mxu0
    %v4526 = vadd.f32 %v4437, %v4525
    %4527 = vmatmul.bf16.gmra.mxu0 %v3536
    %v4528 = vpop.f32.mrf.mxu0
    %v4529 = vadd.f32 %v4440, %v4528
    %v4530 = vpop.f32.mrf.mxu0
    %v4531 = vadd.f32 %v4442, %v4530
    %4532 = vmatmul.bf16.gmra.mxu0 %v3544
    %v4533 = vpop.f32.mrf.mxu0
    %v4534 = vadd.f32 %v4445, %v4533
    %v4535 = vpop.f32.mrf.mxu0
    %v4536 = vadd.f32 %v4447, %v4535
    %4537 = vmatmul.bf16.gmra.mxu0 %v3552
    %v4538 = vpop.f32.mrf.mxu0
    %v4539 = vadd.f32 %v4450, %v4538
    %v4540 = vpop.f32.mrf.mxu0
    %v4541 = vadd.f32 %v4452, %v4540
    %4542 = vmatmul.bf16.gmra.mxu0 %v3560
    %v4543 = vpop.f32.mrf.mxu0
    %v4544 = vadd.f32 %v4455, %v4543
    %v4545 = vpop.f32.mrf.mxu0
    %v4546 = vadd.f32 %v4457, %v4545
    %4547 = vmatmul.bf16.gmra.mxu0 %v3568
    %v4548 = vpop.f32.mrf.mxu0
    %v4549 = vadd.f32 %v4460, %v4548
    %v4550 = vpop.f32.mrf.mxu0
    %v4551 = vadd.f32 %v4462, %v4550
    %4552 = vmatmul.bf16.gmra.mxu0 %v3576
    %v4553 = vpop.f32.mrf.mxu0
    %v4554 = vadd.f32 %v4465, %v4553
    %v4555 = vpop.f32.mrf.mxu0
    %v4556 = vadd.f32 %v4467, %v4555
    %4557 = vmatmul.bf16.gmra.mxu0 %v3584
    %v4558 = vpop.f32.mrf.mxu0
    %v4559 = vadd.f32 %v4470, %v4558
    %v4560 = vpop.f32.mrf.mxu0
    %v4561 = vadd.f32 %v4472, %v4560
    %4562 = vmatmul.bf16.gmra.mxu0 %v3592
    %v4563 = vpop.f32.mrf.mxu0
    %v4564 = vadd.f32 %v4475, %v4563
    %v4565 = vpop.f32.mrf.mxu0
    %v4566 = vadd.f32 %v4477, %v4565
    %4567 = vmatmul.bf16.gmra.mxu0 %v3600
    %v4568 = vpop.f32.mrf.mxu0
    %v4569 = vadd.f32 %v4480, %v4568
    %v4570 = vpop.f32.mrf.mxu0
    %v4571 = vadd.f32 %v4482, %v4570
    %4572 = vmatmul.bf16.gmra.mxu0 %v3608
    %v4573 = vpop.f32.mrf.mxu0
    %v4574 = vadd.f32 %v4485, %v4573
    %v4575 = vpop.f32.mrf.mxu0
    %v4576 = vadd.f32 %v4487, %v4575
    %4577 = vmatmul.bf16.gmra.mxu0 %v3616
    %v4578 = vpop.f32.mrf.mxu0
    %v4579 = vadd.f32 %v4490, %v4578
    %v4580 = vpop.f32.mrf.mxu0
    %v4581 = vadd.f32 %v4492, %v4580
    %4582 = vmatmul.bf16.gmra.mxu0 %v3624
    %v4583 = vpop.f32.mrf.mxu0
    %v4584 = vadd.f32 %v4495, %v4583
    %v4585 = vpop.f32.mrf.mxu0
    %v4586 = vadd.f32 %v4497, %v4585
    %4587 = vmatmul.bf16.gmra.mxu0 %v3632
    %v4588 = vpop.f32.mrf.mxu0
    %v4589 = vadd.f32 %v4500, %v4588
    %v4590 = vpop.f32.mrf.mxu0
    %v4591 = vadd.f32 %v4502, %v4590
    %4592 = vdwg.mxu0
    %4593 = vmatpush.bf16.msra.mxu0 %v4067
    %4594 = vmatpush.bf16.msra.mxu0 %v4066
    %4595 = vmatpush.bf16.msra.mxu0 %v4065
    %4596 = vmatpush.bf16.msra.mxu0 %v4064
    %4597 = vmatpush.bf16.msra.mxu0 %v4063
    %4598 = vmatpush.bf16.msra.mxu0 %v4062
    %4599 = vmatpush.bf16.msra.mxu0 %v4061
    %4600 = vmatpush.bf16.msra.mxu0 %v4060
    %4601 = vmatmul.bf16.gmra.mxu0 %v3513
    %v4602 = vpop.f32.mrf.mxu0
    %v4603 = vadd.f32 %v4514, %v4602
    %v4604 = vpop.f32.mrf.mxu0
    %v4605 = vadd.f32 %v4516, %v4604
    %4606 = vmatmul.bf16.gmra.mxu0 %v3521
    %v4607 = vpop.f32.mrf.mxu0
    %v4608 = vadd.f32 %v4519, %v4607
    %v4609 = vpop.f32.mrf.mxu0
    %v4610 = vadd.f32 %v4521, %v4609
    %4611 = vmatmul.bf16.gmra.mxu0 %v3529
    %v4612 = vpop.f32.mrf.mxu0
    %v4613 = vadd.f32 %v4524, %v4612
    %v4614 = vpop.f32.mrf.mxu0
    %v4615 = vadd.f32 %v4526, %v4614
    %4616 = vmatmul.bf16.gmra.mxu0 %v3537
    %v4617 = vpop.f32.mrf.mxu0
    %v4618 = vadd.f32 %v4529, %v4617
    %v4619 = vpop.f32.mrf.mxu0
    %v4620 = vadd.f32 %v4531, %v4619
    %4621 = vmatmul.bf16.gmra.mxu0 %v3545
    %v4622 = vpop.f32.mrf.mxu0
    %v4623 = vadd.f32 %v4534, %v4622
    %v4624 = vpop.f32.mrf.mxu0
    %v4625 = vadd.f32 %v4536, %v4624
    %4626 = vmatmul.bf16.gmra.mxu0 %v3553
    %v4627 = vpop.f32.mrf.mxu0
    %v4628 = vadd.f32 %v4539, %v4627
    %v4629 = vpop.f32.mrf.mxu0
    %v4630 = vadd.f32 %v4541, %v4629
    %4631 = vmatmul.bf16.gmra.mxu0 %v3561
    %v4632 = vpop.f32.mrf.mxu0
    %v4633 = vadd.f32 %v4544, %v4632
    %v4634 = vpop.f32.mrf.mxu0
    %v4635 = vadd.f32 %v4546, %v4634
    %4636 = vmatmul.bf16.gmra.mxu0 %v3569
    %v4637 = vpop.f32.mrf.mxu0
    %v4638 = vadd.f32 %v4549, %v4637
    %v4639 = vpop.f32.mrf.mxu0
    %v4640 = vadd.f32 %v4551, %v4639
    %4641 = vmatmul.bf16.gmra.mxu0 %v3577
    %v4642 = vpop.f32.mrf.mxu0
    %v4643 = vadd.f32 %v4554, %v4642
    %v4644 = vpop.f32.mrf.mxu0
    %v4645 = vadd.f32 %v4556, %v4644
    %4646 = vmatmul.bf16.gmra.mxu0 %v3585
    %v4647 = vpop.f32.mrf.mxu0
    %v4648 = vadd.f32 %v4559, %v4647
    %v4649 = vpop.f32.mrf.mxu0
    %v4650 = vadd.f32 %v4561, %v4649
    %4651 = vmatmul.bf16.gmra.mxu0 %v3593
    %v4652 = vpop.f32.mrf.mxu0
    %v4653 = vadd.f32 %v4564, %v4652
    %v4654 = vpop.f32.mrf.mxu0
    %v4655 = vadd.f32 %v4566, %v4654
    %4656 = vmatmul.bf16.gmra.mxu0 %v3601
    %v4657 = vpop.f32.mrf.mxu0
    %v4658 = vadd.f32 %v4569, %v4657
    %v4659 = vpop.f32.mrf.mxu0
    %v4660 = vadd.f32 %v4571, %v4659
    %4661 = vmatmul.bf16.gmra.mxu0 %v3609
    %v4662 = vpop.f32.mrf.mxu0
    %v4663 = vadd.f32 %v4574, %v4662
    %v4664 = vpop.f32.mrf.mxu0
    %v4665 = vadd.f32 %v4576, %v4664
    %4666 = vmatmul.bf16.gmra.mxu0 %v3617
    %v4667 = vpop.f32.mrf.mxu0
    %v4668 = vadd.f32 %v4579, %v4667
    %v4669 = vpop.f32.mrf.mxu0
    %v4670 = vadd.f32 %v4581, %v4669
    %4671 = vmatmul.bf16.gmra.mxu0 %v3625
    %v4672 = vpop.f32.mrf.mxu0
    %v4673 = vadd.f32 %v4584, %v4672
    %v4674 = vpop.f32.mrf.mxu0
    %v4675 = vadd.f32 %v4586, %v4674
    %4676 = vmatmul.bf16.gmra.mxu0 %v3633
    %v4677 = vpop.f32.mrf.mxu0
    %v4678 = vadd.f32 %v4589, %v4677
    %v4679 = vpop.f32.mrf.mxu0
    %v4680 = vadd.f32 %v4591, %v4679
    %4681 = vdwg.mxu0
    %4682 = vmatpush.bf16.msra.mxu0 %v4075
    %4683 = vmatpush.bf16.msra.mxu0 %v4074
    %4684 = vmatpush.bf16.msra.mxu0 %v4073
    %4685 = vmatpush.bf16.msra.mxu0 %v4072
    %4686 = vmatpush.bf16.msra.mxu0 %v4071
    %4687 = vmatpush.bf16.msra.mxu0 %v4070
    %4688 = vmatpush.bf16.msra.mxu0 %v4069
    %4689 = vmatpush.bf16.msra.mxu0 %v4068
    %4690 = vmatmul.bf16.gmra.mxu0 %v3514
    %v4691 = vpop.f32.mrf.mxu0
    %v4692 = vadd.f32 %v4603, %v4691
    %v4693 = vpop.f32.mrf.mxu0
    %v4694 = vadd.f32 %v4605, %v4693
    %4695 = vmatmul.bf16.gmra.mxu0 %v3522
    %v4696 = vpop.f32.mrf.mxu0
    %v4697 = vadd.f32 %v4608, %v4696
    %v4698 = vpop.f32.mrf.mxu0
    %v4699 = vadd.f32 %v4610, %v4698
    %4700 = vmatmul.bf16.gmra.mxu0 %v3530
    %v4701 = vpop.f32.mrf.mxu0
    %v4702 = vadd.f32 %v4613, %v4701
    %v4703 = vpop.f32.mrf.mxu0
    %v4704 = vadd.f32 %v4615, %v4703
    %4705 = vmatmul.bf16.gmra.mxu0 %v3538
    %v4706 = vpop.f32.mrf.mxu0
    %v4707 = vadd.f32 %v4618, %v4706
    %v4708 = vpop.f32.mrf.mxu0
    %v4709 = vadd.f32 %v4620, %v4708
    %4710 = vmatmul.bf16.gmra.mxu0 %v3546
    %v4711 = vpop.f32.mrf.mxu0
    %v4712 = vadd.f32 %v4623, %v4711
    %v4713 = vpop.f32.mrf.mxu0
    %v4714 = vadd.f32 %v4625, %v4713
    %4715 = vmatmul.bf16.gmra.mxu0 %v3554
    %v4716 = vpop.f32.mrf.mxu0
    %v4717 = vadd.f32 %v4628, %v4716
    %v4718 = vpop.f32.mrf.mxu0
    %v4719 = vadd.f32 %v4630, %v4718
    %4720 = vmatmul.bf16.gmra.mxu0 %v3562
    %v4721 = vpop.f32.mrf.mxu0
    %v4722 = vadd.f32 %v4633, %v4721
    %v4723 = vpop.f32.mrf.mxu0
    %v4724 = vadd.f32 %v4635, %v4723
    %4725 = vmatmul.bf16.gmra.mxu0 %v3570
    %v4726 = vpop.f32.mrf.mxu0
    %v4727 = vadd.f32 %v4638, %v4726
    %v4728 = vpop.f32.mrf.mxu0
    %v4729 = vadd.f32 %v4640, %v4728
    %4730 = vmatmul.bf16.gmra.mxu0 %v3578
    %v4731 = vpop.f32.mrf.mxu0
    %v4732 = vadd.f32 %v4643, %v4731
    %v4733 = vpop.f32.mrf.mxu0
    %v4734 = vadd.f32 %v4645, %v4733
    %4735 = vmatmul.bf16.gmra.mxu0 %v3586
    %v4736 = vpop.f32.mrf.mxu0
    %v4737 = vadd.f32 %v4648, %v4736
    %v4738 = vpop.f32.mrf.mxu0
    %v4739 = vadd.f32 %v4650, %v4738
    %4740 = vmatmul.bf16.gmra.mxu0 %v3594
    %v4741 = vpop.f32.mrf.mxu0
    %v4742 = vadd.f32 %v4653, %v4741
    %v4743 = vpop.f32.mrf.mxu0
    %v4744 = vadd.f32 %v4655, %v4743
    %4745 = vmatmul.bf16.gmra.mxu0 %v3602
    %v4746 = vpop.f32.mrf.mxu0
    %v4747 = vadd.f32 %v4658, %v4746
    %v4748 = vpop.f32.mrf.mxu0
    %v4749 = vadd.f32 %v4660, %v4748
    %4750 = vmatmul.bf16.gmra.mxu0 %v3610
    %v4751 = vpop.f32.mrf.mxu0
    %v4752 = vadd.f32 %v4663, %v4751
    %v4753 = vpop.f32.mrf.mxu0
    %v4754 = vadd.f32 %v4665, %v4753
    %4755 = vmatmul.bf16.gmra.mxu0 %v3618
    %v4756 = vpop.f32.mrf.mxu0
    %v4757 = vadd.f32 %v4668, %v4756
    %v4758 = vpop.f32.mrf.mxu0
    %v4759 = vadd.f32 %v4670, %v4758
    %4760 = vmatmul.bf16.gmra.mxu0 %v3626
    %v4761 = vpop.f32.mrf.mxu0
    %v4762 = vadd.f32 %v4673, %v4761
    %v4763 = vpop.f32.mrf.mxu0
    %v4764 = vadd.f32 %v4675, %v4763
    %4765 = vmatmul.bf16.gmra.mxu0 %v3634
    %v4766 = vpop.f32.mrf.mxu0
    %v4767 = vadd.f32 %v4678, %v4766
    %v4768 = vpop.f32.mrf.mxu0
    %v4769 = vadd.f32 %v4680, %v4768
    %4770 = vdwg.mxu0
    %4771 = vmatpush.bf16.msra.mxu0 %v4083
    %4772 = vmatpush.bf16.msra.mxu0 %v4082
    %4773 = vmatpush.bf16.msra.mxu0 %v4081
    %4774 = vmatpush.bf16.msra.mxu0 %v4080
    %4775 = vmatpush.bf16.msra.mxu0 %v4079
    %4776 = vmatpush.bf16.msra.mxu0 %v4078
    %4777 = vmatpush.bf16.msra.mxu0 %v4077
    %4778 = vmatpush.bf16.msra.mxu0 %v4076
    %4779 = vmatmul.bf16.gmra.mxu0 %v3515
    %v4780 = vpop.f32.mrf.mxu0
    %v4781 = vadd.f32 %v4692, %v4780
    %v4782 = vpop.f32.mrf.mxu0
    %v4783 = vadd.f32 %v4694, %v4782
    %4784 = vmatmul.bf16.gmra.mxu0 %v3523
    %v4785 = vpop.f32.mrf.mxu0
    %v4786 = vadd.f32 %v4697, %v4785
    %v4787 = vpop.f32.mrf.mxu0
    %v4788 = vadd.f32 %v4699, %v4787
    %4789 = vmatmul.bf16.gmra.mxu0 %v3531
    %v4790 = vpop.f32.mrf.mxu0
    %v4791 = vadd.f32 %v4702, %v4790
    %v4792 = vpop.f32.mrf.mxu0
    %v4793 = vadd.f32 %v4704, %v4792
    %4794 = vmatmul.bf16.gmra.mxu0 %v3539
    %v4795 = vpop.f32.mrf.mxu0
    %v4796 = vadd.f32 %v4707, %v4795
    %v4797 = vpop.f32.mrf.mxu0
    %v4798 = vadd.f32 %v4709, %v4797
    %4799 = vmatmul.bf16.gmra.mxu0 %v3547
    %v4800 = vpop.f32.mrf.mxu0
    %v4801 = vadd.f32 %v4712, %v4800
    %v4802 = vpop.f32.mrf.mxu0
    %v4803 = vadd.f32 %v4714, %v4802
    %4804 = vmatmul.bf16.gmra.mxu0 %v3555
    %v4805 = vpop.f32.mrf.mxu0
    %v4806 = vadd.f32 %v4717, %v4805
    %v4807 = vpop.f32.mrf.mxu0
    %v4808 = vadd.f32 %v4719, %v4807
    %4809 = vmatmul.bf16.gmra.mxu0 %v3563
    %v4810 = vpop.f32.mrf.mxu0
    %v4811 = vadd.f32 %v4722, %v4810
    %v4812 = vpop.f32.mrf.mxu0
    %v4813 = vadd.f32 %v4724, %v4812
    %4814 = vmatmul.bf16.gmra.mxu0 %v3571
    %v4815 = vpop.f32.mrf.mxu0
    %v4816 = vadd.f32 %v4727, %v4815
    %v4817 = vpop.f32.mrf.mxu0
    %v4818 = vadd.f32 %v4729, %v4817
    %4819 = vmatmul.bf16.gmra.mxu0 %v3579
    %v4820 = vpop.f32.mrf.mxu0
    %v4821 = vadd.f32 %v4732, %v4820
    %v4822 = vpop.f32.mrf.mxu0
    %v4823 = vadd.f32 %v4734, %v4822
    %4824 = vmatmul.bf16.gmra.mxu0 %v3587
    %v4825 = vpop.f32.mrf.mxu0
    %v4826 = vadd.f32 %v4737, %v4825
    %v4827 = vpop.f32.mrf.mxu0
    %v4828 = vadd.f32 %v4739, %v4827
    %4829 = vmatmul.bf16.gmra.mxu0 %v3595
    %v4830 = vpop.f32.mrf.mxu0
    %v4831 = vadd.f32 %v4742, %v4830
    %v4832 = vpop.f32.mrf.mxu0
    %v4833 = vadd.f32 %v4744, %v4832
    %4834 = vmatmul.bf16.gmra.mxu0 %v3603
    %v4835 = vpop.f32.mrf.mxu0
    %v4836 = vadd.f32 %v4747, %v4835
    %v4837 = vpop.f32.mrf.mxu0
    %v4838 = vadd.f32 %v4749, %v4837
    %4839 = vmatmul.bf16.gmra.mxu0 %v3611
    %v4840 = vpop.f32.mrf.mxu0
    %v4841 = vadd.f32 %v4752, %v4840
    %v4842 = vpop.f32.mrf.mxu0
    %v4843 = vadd.f32 %v4754, %v4842
    %4844 = vmatmul.bf16.gmra.mxu0 %v3619
    %v4845 = vpop.f32.mrf.mxu0
    %v4846 = vadd.f32 %v4757, %v4845
    %v4847 = vpop.f32.mrf.mxu0
    %v4848 = vadd.f32 %v4759, %v4847
    %4849 = vmatmul.bf16.gmra.mxu0 %v3627
    %v4850 = vpop.f32.mrf.mxu0
    %v4851 = vadd.f32 %v4762, %v4850
    %v4852 = vpop.f32.mrf.mxu0
    %v4853 = vadd.f32 %v4764, %v4852
    %4854 = vmatmul.bf16.gmra.mxu0 %v3635
    %v4855 = vpop.f32.mrf.mxu0
    %v4856 = vadd.f32 %v4767, %v4855
    %v4857 = vpop.f32.mrf.mxu0
    %v4858 = vadd.f32 %v4769, %v4857
    %4859 = vdwg.mxu0
    %v4860 = vpack.c.bf16 %v2979, %v2979
    %v4861 = vpack.c.bf16 %v4783, %v4781
    %v4862 = vpack.c.bf16 %v4788, %v4786
    %v4863 = vpack.c.bf16 %v4793, %v4791
    %v4864 = vpack.c.bf16 %v4798, %v4796
    %v4865 = vpack.c.bf16 %v4803, %v4801
    %v4866 = vpack.c.bf16 %v4808, %v4806
    %v4867 = vpack.c.bf16 %v4813, %v4811
    %v4868 = vpack.c.bf16 %v4818, %v4816
    %v4869 = vpack.c.bf16 %v4823, %v4821
    %v4870 = vpack.c.bf16 %v4828, %v4826
    %v4871 = vpack.c.bf16 %v4833, %v4831
    %v4872 = vpack.c.bf16 %v4838, %v4836
    %v4873 = vpack.c.bf16 %v4843, %v4841
    %v4874 = vpack.c.bf16 %v4848, %v4846
    %v4875 = vpack.c.bf16 %v4853, %v4851
    %v4876 = vpack.c.bf16 %v4858, %v4856
    %4877 = vmatpush.bf16.xpose.msra.mxu0 %v4868
    %4878 = vmatpush.bf16.xpose.msra.mxu0 %v4867
    %4879 = vmatpush.bf16.xpose.msra.mxu0 %v4866
    %4880 = vmatpush.bf16.xpose.msra.mxu0 %v4865
    %4881 = vmatpush.bf16.xpose.msra.mxu0 %v4864
    %4882 = vmatpush.bf16.xpose.msra.mxu0 %v4863
    %4883 = vmatpush.bf16.xpose.msra.mxu0 %v4862
    %4884 = vmatpush.bf16.xpose.msra.mxu0 %v4861
    %4885 = vmatmul.bf16.gmra.mxu0 %v4860
    %v4886 = vpop.f32.mrf.mxu0
    %v4887 = vadd.f32 0.0, %v4886
    %v4888 = vpop.f32.mrf.mxu0
    %4889 = vdwg.mxu0
    %4890 = vmatpush.bf16.xpose.msra.mxu0 %v4876
    %4891 = vmatpush.bf16.xpose.msra.mxu0 %v4875
    %4892 = vmatpush.bf16.xpose.msra.mxu0 %v4874
    %4893 = vmatpush.bf16.xpose.msra.mxu0 %v4873
    %4894 = vmatpush.bf16.xpose.msra.mxu0 %v4872
    %4895 = vmatpush.bf16.xpose.msra.mxu0 %v4871
    %4896 = vmatpush.bf16.xpose.msra.mxu0 %v4870
    %4897 = vmatpush.bf16.xpose.msra.mxu0 %v4869
    %4898 = vmatmul.bf16.gmra.mxu0 %v4860
    %v4899 = vpop.f32.mrf.mxu0
    %v4900 = vadd.f32 0.0, %v4899
    %v4901 = vpop.f32.mrf.mxu0
    %4902 = vdwg.mxu0
    %v4935 = vunpack.c.l.b16 %v498
    %v4936 = vunpack.c.l.b16 %v499
    %v4937 = vunpack.c.l.b16 %v500
    %v4938 = vunpack.c.l.b16 %v501
    %v4939 = vunpack.c.l.b16 %v502
    %v4940 = vunpack.c.l.b16 %v503
    %v4941 = vunpack.c.l.b16 %v504
    %v4942 = vunpack.c.l.b16 %v505
    %v4943 = vunpack.c.l.b16 %v506
    %v4944 = vunpack.c.l.b16 %v507
    %v4945 = vunpack.c.l.b16 %v508
    %v4946 = vunpack.c.l.b16 %v509
    %v4947 = vunpack.c.l.b16 %v510
    %v4948 = vunpack.c.l.b16 %v511
    %v4949 = vunpack.c.l.b16 %v512
    %v4950 = vunpack.c.l.b16 %v513
    %v4951 = vunpack.c.l.b16 %v514
    %v4952 = vunpack.c.l.b16 %v515
    %v4953 = vunpack.c.l.b16 %v516
    %v4954 = vunpack.c.l.b16 %v517
    %v4955 = vunpack.c.l.b16 %v518
    %v4956 = vunpack.c.l.b16 %v519
    %v4957 = vunpack.c.l.b16 %v520
    %v4958 = vunpack.c.l.b16 %v521
    %v4959 = vunpack.c.l.b16 %v522
    %v4960 = vunpack.c.l.b16 %v523
    %v4961 = vunpack.c.l.b16 %v524
    %v4962 = vunpack.c.l.b16 %v525
    %v4963 = vunpack.c.l.b16 %v526
    %v4964 = vunpack.c.l.b16 %v527
    %v4965 = vunpack.c.l.b16 %v528
    %v4966 = vunpack.c.l.b16 %v529
    %v4967 = vpack.c.b16 %v4936, %v4935
    %v4968 = vpack.c.b16 %v4938, %v4937
    %v4969 = vpack.c.b16 %v4940, %v4939
    %v4970 = vpack.c.b16 %v4942, %v4941
    %v4971 = vpack.c.b16 %v4944, %v4943
    %v4972 = vpack.c.b16 %v4946, %v4945
    %v4973 = vpack.c.b16 %v4948, %v4947
    %v4974 = vpack.c.b16 %v4950, %v4949
    %v4975 = vpack.c.b16 %v4952, %v4951
    %v4976 = vpack.c.b16 %v4954, %v4953
    %v4977 = vpack.c.b16 %v4956, %v4955
    %v4978 = vpack.c.b16 %v4958, %v4957
    %v4979 = vpack.c.b16 %v4960, %v4959
    %v4980 = vpack.c.b16 %v4962, %v4961
    %v4981 = vpack.c.b16 %v4964, %v4963
    %v4982 = vpack.c.b16 %v4966, %v4965
    %4999 = vmatpush.bf16.xpose.msra.mxu0 %v4974
    %5000 = vmatpush.bf16.xpose.msra.mxu0 %v4973
    %5001 = vmatpush.bf16.xpose.msra.mxu0 %v4972
    %5002 = vmatpush.bf16.xpose.msra.mxu0 %v4971
    %5003 = vmatpush.bf16.xpose.msra.mxu0 %v4970
    %5004 = vmatpush.bf16.xpose.msra.mxu0 %v4969
    %5005 = vmatpush.bf16.xpose.msra.mxu0 %v4968
    %5006 = vmatpush.bf16.xpose.msra.mxu0 %v4967
    %5007 = vmatmul.bf16.gmra.mxu0 %v3123
    %v5008 = vpop.f32.mrf.mxu0
    %v5009 = vadd.f32 %v4887, %v5008
    %v5010 = vpop.f32.mrf.mxu0
    %5011 = vdwg.mxu0
    %5012 = vmatpush.bf16.xpose.msra.mxu0 %v4982
    %5013 = vmatpush.bf16.xpose.msra.mxu0 %v4981
    %5014 = vmatpush.bf16.xpose.msra.mxu0 %v4980
    %5015 = vmatpush.bf16.xpose.msra.mxu0 %v4979
    %5016 = vmatpush.bf16.xpose.msra.mxu0 %v4978
    %5017 = vmatpush.bf16.xpose.msra.mxu0 %v4977
    %5018 = vmatpush.bf16.xpose.msra.mxu0 %v4976
    %5019 = vmatpush.bf16.xpose.msra.mxu0 %v4975
    %5020 = vmatmul.bf16.gmra.mxu0 %v3123
    %v5021 = vpop.f32.mrf.mxu0
    %v5022 = vadd.f32 %v4900, %v5021
    %v5023 = vpop.f32.mrf.mxu0
    %5024 = vdwg.mxu0
    %v5025 = vld [vmem:[%s7] sm:$0xff]
    %v5026 = vld [vmem:[%s7 + $0x8] sm:$0xff]
    %v5027 = vmax.f32 %v5009, %v5022
    %5028 = vmax.xlane.f32.xlu0 %v5027
    %v5029 = vpop.xlane.xlu0 %5028
    %v5030 = vsub.f32 %v5009, %v5029
    %v5031 = vsub.f32 %v5022, %v5029
    %v5032 = vmul.f32 %v5030, 1.442695
    %v5033 = vpow.pop %v5032
    %v5034 = vmul.f32 %v5031, 1.442695
    %v5035 = vpow.pop %v5034
    %v5036 = vadd.f32 %v5033, %v5035
    %5037 = vadd.xlane.f32.xlu0 %v5036
    %v5038 = vpop.xlane.xlu0 %5037
    %v5039 = vlog2.pop %v5038
    %v5040 = vmul.f32 %v5039, 0.6931472
    %v5041 = vadd.f32 %v5029, %v5040
    %v5042 = vsub.f32 %v5009, %v5041
    %v5043 = vsub.f32 %v5022, %v5041
    %v5044 = vmul.f32 %v5025, %v5042
    %v5045 = vmul.f32 %v5026, %v5043
    %v5046 = vadd.f32 %v5044, %v5045
    %5047 = vadd.xlane.f32.xlu0 %v5046
    %v5048 = vpop.xlane.xlu0 %5047
    %v5049 = vsub.f32 0.0, %v5048
    %v5050 = vrot.slane %v5049, 4
    %v5051 = vadd.f32 %v5049, %v5050
    %v5052 = vrot.slane %v5051, 2
    %v5053 = vadd.f32 %v5051, %v5052
    %v5054 = vrot.slane %v5053, 1
    %v5055 = vadd.f32 %v5053, %v5054
    %v5056 = vrcp.pop 8.0
    %v5057 = vmul.f32 8.0, %v5056
    %v5058 = vsub.f32 1.0, %v5057
    %v5059 = vmul.f32 %v5056, %v5058
    %v5060 = vadd.f32 %v5056, %v5059
    %vm5061 = vweird.f32 %v5056
    %v5062 = vsel %vm5061, %v5056, %v5060
    %v5063 = vmul.f32 %v5055, %v5062
    %vm5064 = vcmask 0
    %5065 = vst.msk [vmem:[#allocation11] sm:$0x1] %vm5064, %v5063
    // Predicated region
    $region54: #{forward.1} parent=1 // pred_check
      _
    $region55: #{forward.1} parent=1 // pred_check_branch
      %5067 = sbr.rel (0) target = $region57
    $region56: #{forward.1} parent=1 // pred_region
      %5069 = vsyncadd [#allocation4], 0
      %s5071 = sshll.u32 [#allocation11], 4
      %s5072 = int_to_ptr.vmem [resolvable:$true] %s5071
      %s5073 = sshll.u32 %s8, 4
      %s5074 = int_to_ptr.hbm [resolvable:$true] %s5073
      %5076 = dma.vmem_to_hbm [thread:$0]  %s5072, 16, %s5074, [#allocation4]
    $region57: #{forward.1} parent=1 // pred_fallthru
      _
    // Predicated region
    $region58: #{forward.1} parent=1 // pred_check
      _
    $region59: #{forward.1} parent=1 // pred_check_branch
      %5078 = sbr.rel (0) target = $region61
    $region60: #{forward.1} parent=1 // pred_region
      %5080 = dma.done [#allocation4], 16
    $region61: #{forward.1} parent=1 // pred_fallthru
      _
    %5081 = vsyncpa [#allocation3], 1
    %5082 = vsyncpa [#allocation6], 1
    %5083 = vsyncpa [#allocation9], 1
    %5084 = vsyncpa [#allocation4], 1

</llo_original>
